<compile_context>
chip_gen: v7x
topology: tpu7x:2x2x1
jax: 0.10.0
libtpu: 0.0.40
codegen_flags: <defaults>
</compile_context>

<pallas_src>
import functools

import jax
import jax.numpy as jnp
import numpy as np
from jax.experimental import pallas as pl
from jax.experimental.pallas import tpu as pltpu


def _dit_kernel(x_ref, ar_ref, ai_ref, art_ref, ait_ref,
                brt_ref, bit_ref, brtpbit_ref,
                br_ref, bi_ref, brmbi_ref,
                wr_ref, wi_ref,
                o_ref, z1r_s, z1i_s,
                *, c_blk, w_dim, norm):
    # x_ref:     (1, H, c_blk*W)  channel-fused plane slab for one batch element
    # ar/ai:     (m1, H)          Th real/imag
    # art/ait:   (H, m1)          Th^T real/imag (pre-transposed in wrapper)
    # brt/bit:   (W, m2)          Tw^T real/imag;  brtpbit = brt + bit
    # br/bi:     (m2, W)          Tw real/imag;    brmbi   = br - bi
    # wr/wi:     (c_blk, m1, m2)  learned complex weights for this channel block
    # o_ref:     (1, H, c_blk*W)
    # z1r_s/z1i_s: (m1, c_blk*W)  VMEM scratch for the inverse-W-transform result
    f32 = jnp.float32

    X = x_ref[0]                                   # (H, c_blk*W), real
    ar = ar_ref[...]
    ai = ai_ref[...]

    # Step 1: Y1 = Th @ X for all channels at once (lane-dense N = c_blk*W).
    y1r = jnp.dot(ar, X, preferred_element_type=f32)      # (m1, c_blk*W)
    y1i = jnp.dot(ai, X, preferred_element_type=f32)      # (m1, c_blk*W)

    brt = brt_ref[...]
    bit = bit_ref[...]
    brtpbit = brtpbit_ref[...]
    br = br_ref[...]
    bi = bi_ref[...]
    brmbi = brmbi_ref[...]

    # Steps 2-4: tiny per-channel mode-space work (m1 x m2), unrolled at trace
    # time. Flop count here is negligible next to steps 1/5; keeping it as
    # plain 2-D dots + static lane slices avoids risky in-kernel reshapes.
    for c in range(c_blk):
        sl = slice(c * w_dim, (c + 1) * w_dim)
        y1r_c = y1r[:, sl]                         # (m1, W)
        y1i_c = y1i[:, sl]                         # (m1, W)

        # Step 2 (Karatsuba): Y2 = Y1 @ Tw^T, with Tw^T = brt + i*bit.
        t1 = jnp.dot(y1r_c, brt, preferred_element_type=f32)            # (m1, m2)
        t2 = jnp.dot(y1i_c, bit, preferred_element_type=f32)            # (m1, m2)
        t3 = jnp.dot(y1r_c + y1i_c, brtpbit, preferred_element_type=f32)
        y2r = t1 - t2
        y2i = t3 - t1 - t2

        # Step 3: elementwise multiply by this channel's learned complex weights.
        wr_c = wr_ref[c]                           # (m1, m2)
        wi_c = wi_ref[c]                           # (m1, m2)
        pr = y2r * wr_c - y2i * wi_c
        pi = y2r * wi_c + y2i * wr_c

        # Step 4 (Karatsuba): Z1 = P @ conj(Tw), with conj(Tw) = br - i*bi.
        s1 = jnp.dot(pr, br, preferred_element_type=f32)                 # (m1, W)
        s2 = jnp.dot(pi, bi, preferred_element_type=f32)                 # (m1, W)
        s3 = jnp.dot(pr + pi, brmbi, preferred_element_type=f32)         # (m1, W)
        z1r_s[:, sl] = s1 + s2
        z1i_s[:, sl] = s3 - s1 + s2

    # Step 5: Out = Re(Th^H @ Z1) = Th^T_r @ z1r + Th^T_i @ z1i, lane-dense,
    # all channels at once. Store is a single lane-dense (H, c_blk*W) slab.
    art = art_ref[...]
    ait = ait_ref[...]
    out = (jnp.dot(art, z1r_s[...], preferred_element_type=f32)
           + jnp.dot(ait, z1i_s[...], preferred_element_type=f32))       # (H, c_blk*W)
    o_ref[0] = out * norm


def dit_forward(x, th_r, th_i, tw_r, tw_i, w_r, w_i, *, c_blk=None):
    """x: (B, C, H, W) float32. Basis/weights split into real/imag parts."""
    B, C, H, W = x.shape
    m1 = th_r.shape[0]
    m2 = tw_r.shape[0]
    if c_blk is None:
        c_blk = C                      # for very large C, pick a divisor of C
    assert C % c_blk == 0
    n_cb = C // c_blk
    norm = 1.0 / (H * W)

    # Layout plumbing OUTSIDE the kernel: fuse the channel axis into the lane
    # dim so the kernel sees lane-dense (H, c_blk*W) slabs.
    x_l = jnp.transpose(x, (0, 2, 1, 3)).reshape(B, H, C * W)

    # Constant basis matrices, pre-transposed / pre-combined in the wrapper
    # (never re-derived inside the kernel).
    ar, ai = th_r, th_i                # (m1, H)
    art, ait = th_r.T, th_i.T          # (H, m1)
    br, bi = tw_r, tw_i                # (m2, W)
    brt, bit = tw_r.T, tw_i.T          # (W, m2)
    brtpbit = brt + bit                # Karatsuba helper for step 2
    brmbi = br - bi                    # Karatsuba helper for step 4 (conj)

    kernel = functools.partial(_dit_kernel, c_blk=c_blk, w_dim=W, norm=norm)

    out_l = pl.pallas_call(
        kernel,
        out_shape=jax.ShapeDtypeStruct((B, H, C * W), jnp.float32),
        # Channel-block outer, batch inner: the weight block index only depends
        # on cb, so weights are fetched once per channel block and reused
        # across all B inner steps.
        grid=(n_cb, B),
        in_specs=[
            pl.BlockSpec((1, H, c_blk * W), lambda cb, b: (b, 0, cb)),   # x slab
            pl.BlockSpec((m1, H), lambda cb, b: (0, 0)),                 # Th real
            pl.BlockSpec((m1, H), lambda cb, b: (0, 0)),                 # Th imag
            pl.BlockSpec((H, m1), lambda cb, b: (0, 0)),                 # Th^T real
            pl.BlockSpec((H, m1), lambda cb, b: (0, 0)),                 # Th^T imag
            pl.BlockSpec((W, m2), lambda cb, b: (0, 0)),                 # Tw^T real
            pl.BlockSpec((W, m2), lambda cb, b: (0, 0)),                 # Tw^T imag
            pl.BlockSpec((W, m2), lambda cb, b: (0, 0)),                 # Tw^T r+i
            pl.BlockSpec((m2, W), lambda cb, b: (0, 0)),                 # Tw real
            pl.BlockSpec((m2, W), lambda cb, b: (0, 0)),                 # Tw imag
            pl.BlockSpec((m2, W), lambda cb, b: (0, 0)),                 # Tw r-i
            pl.BlockSpec((c_blk, m1, m2), lambda cb, b: (cb, 0, 0)),     # weights r
            pl.BlockSpec((c_blk, m1, m2), lambda cb, b: (cb, 0, 0)),     # weights i
        ],
        out_specs=pl.BlockSpec((1, H, c_blk * W), lambda cb, b: (b, 0, cb)),
        scratch_shapes=[pltpu.VMEM((m1, c_blk * W), jnp.float32),
                        pltpu.VMEM((m1, c_blk * W), jnp.float32)],
        compiler_params=pltpu.CompilerParams(
            dimension_semantics=("parallel", "parallel"),
            # Blocks here are tiny (KBs); explicit limit is safe on all of
            # v5e/v6e/v7x and leaves room to grow c_blk on bigger problems.
            vmem_limit_bytes=32 * 1024 * 1024),
    )(x_l, ar, ai, art, ait, brt, bit, brtpbit, br, bi, brmbi, w_r, w_i)

    # Undo the wrapper-side layout plumbing.
    return jnp.transpose(out_l.reshape(B, H, C, W), (0, 2, 1, 3))


def _make_fourier_basis(m, n):
    """exp(-2*pi*i*u*k/n) for u in [0, m), k in [0, n) — returns (real, imag)."""
    u = np.arange(m, dtype=np.float64)[:, None]
    k = np.arange(n, dtype=np.float64)[None, :]
    phase = -2.0 * np.pi * u * k / n
    return (np.cos(phase).astype(np.float32), np.sin(phase).astype(np.float32))


def _reference(x, th_r, th_i, tw_r, tw_i, w_r, w_i):
    """Pure-JAX complex reference mirroring the PyTorch einsum chain."""
    th = th_r.astype(jnp.complex64) + 1j * th_i.astype(jnp.complex64)
    tw = tw_r.astype(jnp.complex64) + 1j * tw_i.astype(jnp.complex64)
    w = w_r.astype(jnp.complex64) + 1j * w_i.astype(jnp.complex64)
    H, W = x.shape[-2], x.shape[-1]
    xc = x.astype(jnp.complex64)
    t1 = jnp.einsum('bchw,mh->bcmw', xc, th)
    t2 = jnp.einsum('bcmw,nw->bcmn', t1, tw)
    p = t2 * w[None]
    r1 = jnp.einsum('bcmn,wn->bcmw', p, jnp.conj(tw).T)
    r2 = jnp.einsum('bcmw,hm->bchw', r1, jnp.conj(th).T)
    return (r2 * (1.0 / (H * W))).real


if __name__ == "__main__":
    B, C, H, W = 2, 4, 16, 16
    m1, m2 = 8, 8

    key = jax.random.PRNGKey(0)
    kx, kwr, kwi = jax.random.split(key, 3)

    x = jax.random.normal(kx, (B, C, H, W), dtype=jnp.float32)

    # Deterministic 'fourier' initialization of the transform bases.
    th_r_np, th_i_np = _make_fourier_basis(m1, H)
    tw_r_np, tw_i_np = _make_fourier_basis(m2, W)
    th_r = jnp.asarray(th_r_np)
    th_i = jnp.asarray(th_i_np)
    tw_r = jnp.asarray(tw_r_np)
    tw_i = jnp.asarray(tw_i_np)

    # learned_weights_freq ~ complex standard normal (deterministic via PRNGKey).
    w_r = jax.random.normal(kwr, (C, m1, m2), dtype=jnp.float32)
    w_i = jax.random.normal(kwi, (C, m1, m2), dtype=jnp.float32)

    out = dit_forward(x, th_r, th_i, tw_r, tw_i, w_r, w_i)
    out = jax.block_until_ready(out)

    ref = jax.block_until_ready(_reference(x, th_r, th_i, tw_r, tw_i, w_r, w_i))
    np.testing.assert_allclose(np.asarray(out), np.asarray(ref),
                               rtol=1e-4, atol=1e-4)

    print("KERNEL_OK")
</pallas_src>

<mosaic_0001>
module attributes {stable_mosaic.version = 11 : i64} {
  func.func @_dit_kernel(%arg0: i32, %arg1: i32, %arg2: memref<1x16x64xf32, #tpu.memory_space<vmem>>, %arg3: memref<8x16xf32, #tpu.memory_space<vmem>>, %arg4: memref<8x16xf32, #tpu.memory_space<vmem>>, %arg5: memref<16x8xf32, #tpu.memory_space<vmem>>, %arg6: memref<16x8xf32, #tpu.memory_space<vmem>>, %arg7: memref<16x8xf32, #tpu.memory_space<vmem>>, %arg8: memref<16x8xf32, #tpu.memory_space<vmem>>, %arg9: memref<16x8xf32, #tpu.memory_space<vmem>>, %arg10: memref<8x16xf32, #tpu.memory_space<vmem>>, %arg11: memref<8x16xf32, #tpu.memory_space<vmem>>, %arg12: memref<8x16xf32, #tpu.memory_space<vmem>>, %arg13: memref<4x8x8xf32, #tpu.memory_space<vmem>>, %arg14: memref<4x8x8xf32, #tpu.memory_space<vmem>>, %arg15: memref<1x16x64xf32, #tpu.memory_space<vmem>>, %arg16: memref<8x64xf32, #tpu.memory_space<vmem>>, %arg17: memref<8x64xf32, #tpu.memory_space<vmem>>) attributes {dimension_semantics = [#tpu.dimension_semantics<parallel>, #tpu.dimension_semantics<parallel>], iteration_bounds = array<i64: 1, 2>, scalar_prefetch = 0 : i64, scratch_operands = 2 : i64, tpu.core_type = #tpu.core_type<tc>, window_params = [{transform_indices = @transform_0, window_bounds = array<i64: 1, 16, 64>}, {pipeline_mode = #tpu.pipeline_mode<synchronous>, transform_indices = @transform_1, window_bounds = array<i64: 8, 16>}, {pipeline_mode = #tpu.pipeline_mode<synchronous>, transform_indices = @transform_2, window_bounds = array<i64: 8, 16>}, {pipeline_mode = #tpu.pipeline_mode<synchronous>, transform_indices = @transform_3, window_bounds = array<i64: 16, 8>}, {pipeline_mode = #tpu.pipeline_mode<synchronous>, transform_indices = @transform_4, window_bounds = array<i64: 16, 8>}, {pipeline_mode = #tpu.pipeline_mode<synchronous>, transform_indices = @transform_5, window_bounds = array<i64: 16, 8>}, {pipeline_mode = #tpu.pipeline_mode<synchronous>, transform_indices = @transform_6, window_bounds = array<i64: 16, 8>}, {pipeline_mode = #tpu.pipeline_mode<synchronous>, transform_indices = @transform_7, window_bounds = array<i64: 16, 8>}, {pipeline_mode = #tpu.pipeline_mode<synchronous>, transform_indices = @transform_8, window_bounds = array<i64: 8, 16>}, {pipeline_mode = #tpu.pipeline_mode<synchronous>, transform_indices = @transform_9, window_bounds = array<i64: 8, 16>}, {pipeline_mode = #tpu.pipeline_mode<synchronous>, transform_indices = @transform_10, window_bounds = array<i64: 8, 16>}, {transform_indices = @transform_11, window_bounds = array<i64: 4, 8, 8>}, {transform_indices = @transform_12, window_bounds = array<i64: 4, 8, 8>}, {transform_indices = @transform_13, window_bounds = array<i64: 1, 16, 64>}]} {
    %c0 = arith.constant 0 : index
    %c0_0 = arith.constant 0 : index
    %c0_1 = arith.constant 0 : index
    %0 = vector.load %arg2[%c0, %c0_0, %c0_1] : memref<1x16x64xf32, #tpu.memory_space<vmem>>, vector<1x16x64xf32>
    %1 = vector.shape_cast %0 : vector<1x16x64xf32> to vector<16x64xf32>
    %c0_2 = arith.constant 0 : index
    %c0_3 = arith.constant 0 : index
    %2 = vector.load %arg3[%c0_2, %c0_3] : memref<8x16xf32, #tpu.memory_space<vmem>>, vector<8x16xf32>
    %c0_4 = arith.constant 0 : index
    %c0_5 = arith.constant 0 : index
    %3 = vector.load %arg4[%c0_4, %c0_5] : memref<8x16xf32, #tpu.memory_space<vmem>>, vector<8x16xf32>
    %cst = arith.constant dense<0.000000e+00> : vector<8x64xf32>
    %4 = tpu.matmul %2, %1, %cst {dimension_numbers = #tpu.dot_dimension_numbers<[1], [0], [0], [1], [0, 0, 1, 1], [], []>} : vector<8x16xf32>, vector<16x64xf32>, vector<8x64xf32> -> vector<8x64xf32>
    %cst_6 = arith.constant dense<0.000000e+00> : vector<8x64xf32>
    %5 = tpu.matmul %3, %1, %cst_6 {dimension_numbers = #tpu.dot_dimension_numbers<[1], [0], [0], [1], [0, 0, 1, 1], [], []>} : vector<8x16xf32>, vector<16x64xf32>, vector<8x64xf32> -> vector<8x64xf32>
    %c0_7 = arith.constant 0 : index
    %c0_8 = arith.constant 0 : index
    %6 = vector.load %arg7[%c0_7, %c0_8] : memref<16x8xf32, #tpu.memory_space<vmem>>, vector<16x8xf32>
    %c0_9 = arith.constant 0 : index
    %c0_10 = arith.constant 0 : index
    %7 = vector.load %arg8[%c0_9, %c0_10] : memref<16x8xf32, #tpu.memory_space<vmem>>, vector<16x8xf32>
    %c0_11 = arith.constant 0 : index
    %c0_12 = arith.constant 0 : index
    %8 = vector.load %arg9[%c0_11, %c0_12] : memref<16x8xf32, #tpu.memory_space<vmem>>, vector<16x8xf32>
    %c0_13 = arith.constant 0 : index
    %c0_14 = arith.constant 0 : index
    %9 = vector.load %arg10[%c0_13, %c0_14] : memref<8x16xf32, #tpu.memory_space<vmem>>, vector<8x16xf32>
    %c0_15 = arith.constant 0 : index
    %c0_16 = arith.constant 0 : index
    %10 = vector.load %arg11[%c0_15, %c0_16] : memref<8x16xf32, #tpu.memory_space<vmem>>, vector<8x16xf32>
    %c0_17 = arith.constant 0 : index
    %c0_18 = arith.constant 0 : index
    %11 = vector.load %arg12[%c0_17, %c0_18] : memref<8x16xf32, #tpu.memory_space<vmem>>, vector<8x16xf32>
    %12 = vector.extract_strided_slice %4 {offsets = [0, 0], sizes = [8, 16], strides = [1, 1]} : vector<8x64xf32> to vector<8x16xf32>
    %13 = vector.extract_strided_slice %5 {offsets = [0, 0], sizes = [8, 16], strides = [1, 1]} : vector<8x64xf32> to vector<8x16xf32>
    %cst_19 = arith.constant dense<0.000000e+00> : vector<8x8xf32>
    %14 = tpu.matmul %12, %6, %cst_19 {dimension_numbers = #tpu.dot_dimension_numbers<[1], [0], [0], [1], [0, 0, 1, 1], [], []>} : vector<8x16xf32>, vector<16x8xf32>, vector<8x8xf32> -> vector<8x8xf32>
    %cst_20 = arith.constant dense<0.000000e+00> : vector<8x8xf32>
    %15 = tpu.matmul %13, %7, %cst_20 {dimension_numbers = #tpu.dot_dimension_numbers<[1], [0], [0], [1], [0, 0, 1, 1], [], []>} : vector<8x16xf32>, vector<16x8xf32>, vector<8x8xf32> -> vector<8x8xf32>
    %16 = arith.addf %12, %13 : vector<8x16xf32>
    %cst_21 = arith.constant dense<0.000000e+00> : vector<8x8xf32>
    %17 = tpu.matmul %16, %8, %cst_21 {dimension_numbers = #tpu.dot_dimension_numbers<[1], [0], [0], [1], [0, 0, 1, 1], [], []>} : vector<8x16xf32>, vector<16x8xf32>, vector<8x8xf32> -> vector<8x8xf32>
    %18 = arith.subf %14, %15 : vector<8x8xf32>
    %19 = arith.subf %17, %14 : vector<8x8xf32>
    %20 = arith.subf %19, %15 : vector<8x8xf32>
    %c0_22 = arith.constant 0 : index
    %c0_23 = arith.constant 0 : index
    %c0_24 = arith.constant 0 : index
    %21 = vector.load %arg13[%c0_22, %c0_23, %c0_24] : memref<4x8x8xf32, #tpu.memory_space<vmem>>, vector<1x8x8xf32>
    %22 = vector.shape_cast %21 : vector<1x8x8xf32> to vector<8x8xf32>
    %c0_25 = arith.constant 0 : index
    %c0_26 = arith.constant 0 : index
    %c0_27 = arith.constant 0 : index
    %23 = vector.load %arg14[%c0_25, %c0_26, %c0_27] : memref<4x8x8xf32, #tpu.memory_space<vmem>>, vector<1x8x8xf32>
    %24 = vector.shape_cast %23 : vector<1x8x8xf32> to vector<8x8xf32>
    %25 = arith.mulf %18, %22 : vector<8x8xf32>
    %26 = arith.mulf %20, %24 : vector<8x8xf32>
    %27 = arith.subf %25, %26 : vector<8x8xf32>
    %28 = arith.mulf %18, %24 : vector<8x8xf32>
    %29 = arith.mulf %20, %22 : vector<8x8xf32>
    %30 = arith.addf %28, %29 : vector<8x8xf32>
    %cst_28 = arith.constant dense<0.000000e+00> : vector<8x16xf32>
    %31 = tpu.matmul %27, %9, %cst_28 {dimension_numbers = #tpu.dot_dimension_numbers<[1], [0], [0], [1], [0, 0, 1, 1], [], []>} : vector<8x8xf32>, vector<8x16xf32>, vector<8x16xf32> -> vector<8x16xf32>
    %cst_29 = arith.constant dense<0.000000e+00> : vector<8x16xf32>
    %32 = tpu.matmul %30, %10, %cst_29 {dimension_numbers = #tpu.dot_dimension_numbers<[1], [0], [0], [1], [0, 0, 1, 1], [], []>} : vector<8x8xf32>, vector<8x16xf32>, vector<8x16xf32> -> vector<8x16xf32>
    %33 = arith.addf %27, %30 : vector<8x8xf32>
    %cst_30 = arith.constant dense<0.000000e+00> : vector<8x16xf32>
    %34 = tpu.matmul %33, %11, %cst_30 {dimension_numbers = #tpu.dot_dimension_numbers<[1], [0], [0], [1], [0, 0, 1, 1], [], []>} : vector<8x8xf32>, vector<8x16xf32>, vector<8x16xf32> -> vector<8x16xf32>
    %35 = arith.addf %31, %32 : vector<8x16xf32>
    %c0_31 = arith.constant 0 : index
    %c0_32 = arith.constant 0 : index
    %36 = vector.load %arg16[%c0_31, %c0_32] : memref<8x64xf32, #tpu.memory_space<vmem>>, vector<8x16xf32>
    tpu.vector_store %arg16[%c0_31, %c0_32], %35 {strides = array<i32>} : memref<8x64xf32, #tpu.memory_space<vmem>>, vector<8x16xf32>,
    %37 = arith.subf %34, %31 : vector<8x16xf32>
    %38 = arith.addf %37, %32 : vector<8x16xf32>
    %c0_33 = arith.constant 0 : index
    %c0_34 = arith.constant 0 : index
    %39 = vector.load %arg17[%c0_33, %c0_34] : memref<8x64xf32, #tpu.memory_space<vmem>>, vector<8x16xf32>
    tpu.vector_store %arg17[%c0_33, %c0_34], %38 {strides = array<i32>} : memref<8x64xf32, #tpu.memory_space<vmem>>, vector<8x16xf32>,
    %40 = vector.extract_strided_slice %4 {offsets = [0, 16], sizes = [8, 16], strides = [1, 1]} : vector<8x64xf32> to vector<8x16xf32>
    %41 = vector.extract_strided_slice %5 {offsets = [0, 16], sizes = [8, 16], strides = [1, 1]} : vector<8x64xf32> to vector<8x16xf32>
    %cst_35 = arith.constant dense<0.000000e+00> : vector<8x8xf32>
    %42 = tpu.matmul %40, %6, %cst_35 {dimension_numbers = #tpu.dot_dimension_numbers<[1], [0], [0], [1], [0, 0, 1, 1], [], []>} : vector<8x16xf32>, vector<16x8xf32>, vector<8x8xf32> -> vector<8x8xf32>
    %cst_36 = arith.constant dense<0.000000e+00> : vector<8x8xf32>
    %43 = tpu.matmul %41, %7, %cst_36 {dimension_numbers = #tpu.dot_dimension_numbers<[1], [0], [0], [1], [0, 0, 1, 1], [], []>} : vector<8x16xf32>, vector<16x8xf32>, vector<8x8xf32> -> vector<8x8xf32>
    %44 = arith.addf %40, %41 : vector<8x16xf32>
    %cst_37 = arith.constant dense<0.000000e+00> : vector<8x8xf32>
    %45 = tpu.matmul %44, %8, %cst_37 {dimension_numbers = #tpu.dot_dimension_numbers<[1], [0], [0], [1], [0, 0, 1, 1], [], []>} : vector<8x16xf32>, vector<16x8xf32>, vector<8x8xf32> -> vector<8x8xf32>
    %46 = arith.subf %42, %43 : vector<8x8xf32>
    %47 = arith.subf %45, %42 : vector<8x8xf32>
    %48 = arith.subf %47, %43 : vector<8x8xf32>
    %c1 = arith.constant 1 : index
    %c0_38 = arith.constant 0 : index
    %c0_39 = arith.constant 0 : index
    %49 = vector.load %arg13[%c1, %c0_38, %c0_39] : memref<4x8x8xf32, #tpu.memory_space<vmem>>, vector<1x8x8xf32>
    %50 = vector.shape_cast %49 : vector<1x8x8xf32> to vector<8x8xf32>
    %c1_40 = arith.constant 1 : index
    %c0_41 = arith.constant 0 : index
    %c0_42 = arith.constant 0 : index
    %51 = vector.load %arg14[%c1_40, %c0_41, %c0_42] : memref<4x8x8xf32, #tpu.memory_space<vmem>>, vector<1x8x8xf32>
    %52 = vector.shape_cast %51 : vector<1x8x8xf32> to vector<8x8xf32>
    %53 = arith.mulf %46, %50 : vector<8x8xf32>
    %54 = arith.mulf %48, %52 : vector<8x8xf32>
    %55 = arith.subf %53, %54 : vector<8x8xf32>
    %56 = arith.mulf %46, %52 : vector<8x8xf32>
    %57 = arith.mulf %48, %50 : vector<8x8xf32>
    %58 = arith.addf %56, %57 : vector<8x8xf32>
    %cst_43 = arith.constant dense<0.000000e+00> : vector<8x16xf32>
    %59 = tpu.matmul %55, %9, %cst_43 {dimension_numbers = #tpu.dot_dimension_numbers<[1], [0], [0], [1], [0, 0, 1, 1], [], []>} : vector<8x8xf32>, vector<8x16xf32>, vector<8x16xf32> -> vector<8x16xf32>
    %cst_44 = arith.constant dense<0.000000e+00> : vector<8x16xf32>
    %60 = tpu.matmul %58, %10, %cst_44 {dimension_numbers = #tpu.dot_dimension_numbers<[1], [0], [0], [1], [0, 0, 1, 1], [], []>} : vector<8x8xf32>, vector<8x16xf32>, vector<8x16xf32> -> vector<8x16xf32>
    %61 = arith.addf %55, %58 : vector<8x8xf32>
    %cst_45 = arith.constant dense<0.000000e+00> : vector<8x16xf32>
    %62 = tpu.matmul %61, %11, %cst_45 {dimension_numbers = #tpu.dot_dimension_numbers<[1], [0], [0], [1], [0, 0, 1, 1], [], []>} : vector<8x8xf32>, vector<8x16xf32>, vector<8x16xf32> -> vector<8x16xf32>
    %63 = arith.addf %59, %60 : vector<8x16xf32>
    %c0_46 = arith.constant 0 : index
    %c16 = arith.constant 16 : index
    %64 = vector.load %arg16[%c0_46, %c16] : memref<8x64xf32, #tpu.memory_space<vmem>>, vector<8x16xf32>
    tpu.vector_store %arg16[%c0_46, %c16], %63 {strides = array<i32>} : memref<8x64xf32, #tpu.memory_space<vmem>>, vector<8x16xf32>,
    %65 = arith.subf %62, %59 : vector<8x16xf32>
    %66 = arith.addf %65, %60 : vector<8x16xf32>
    %c0_47 = arith.constant 0 : index
    %c16_48 = arith.constant 16 : index
    %67 = vector.load %arg17[%c0_47, %c16_48] : memref<8x64xf32, #tpu.memory_space<vmem>>, vector<8x16xf32>
    tpu.vector_store %arg17[%c0_47, %c16_48], %66 {strides = array<i32>} : memref<8x64xf32, #tpu.memory_space<vmem>>, vector<8x16xf32>,
    %68 = vector.extract_strided_slice %4 {offsets = [0, 32], sizes = [8, 16], strides = [1, 1]} : vector<8x64xf32> to vector<8x16xf32>
    %69 = vector.extract_strided_slice %5 {offsets = [0, 32], sizes = [8, 16], strides = [1, 1]} : vector<8x64xf32> to vector<8x16xf32>
    %cst_49 = arith.constant dense<0.000000e+00> : vector<8x8xf32>
    %70 = tpu.matmul %68, %6, %cst_49 {dimension_numbers = #tpu.dot_dimension_numbers<[1], [0], [0], [1], [0, 0, 1, 1], [], []>} : vector<8x16xf32>, vector<16x8xf32>, vector<8x8xf32> -> vector<8x8xf32>
    %cst_50 = arith.constant dense<0.000000e+00> : vector<8x8xf32>
    %71 = tpu.matmul %69, %7, %cst_50 {dimension_numbers = #tpu.dot_dimension_numbers<[1], [0], [0], [1], [0, 0, 1, 1], [], []>} : vector<8x16xf32>, vector<16x8xf32>, vector<8x8xf32> -> vector<8x8xf32>
    %72 = arith.addf %68, %69 : vector<8x16xf32>
    %cst_51 = arith.constant dense<0.000000e+00> : vector<8x8xf32>
    %73 = tpu.matmul %72, %8, %cst_51 {dimension_numbers = #tpu.dot_dimension_numbers<[1], [0], [0], [1], [0, 0, 1, 1], [], []>} : vector<8x16xf32>, vector<16x8xf32>, vector<8x8xf32> -> vector<8x8xf32>
    %74 = arith.subf %70, %71 : vector<8x8xf32>
    %75 = arith.subf %73, %70 : vector<8x8xf32>
    %76 = arith.subf %75, %71 : vector<8x8xf32>
    %c2 = arith.constant 2 : index
    %c0_52 = arith.constant 0 : index
    %c0_53 = arith.constant 0 : index
    %77 = vector.load %arg13[%c2, %c0_52, %c0_53] : memref<4x8x8xf32, #tpu.memory_space<vmem>>, vector<1x8x8xf32>
    %78 = vector.shape_cast %77 : vector<1x8x8xf32> to vector<8x8xf32>
    %c2_54 = arith.constant 2 : index
    %c0_55 = arith.constant 0 : index
    %c0_56 = arith.constant 0 : index
    %79 = vector.load %arg14[%c2_54, %c0_55, %c0_56] : memref<4x8x8xf32, #tpu.memory_space<vmem>>, vector<1x8x8xf32>
    %80 = vector.shape_cast %79 : vector<1x8x8xf32> to vector<8x8xf32>
    %81 = arith.mulf %74, %78 : vector<8x8xf32>
    %82 = arith.mulf %76, %80 : vector<8x8xf32>
    %83 = arith.subf %81, %82 : vector<8x8xf32>
    %84 = arith.mulf %74, %80 : vector<8x8xf32>
    %85 = arith.mulf %76, %78 : vector<8x8xf32>
    %86 = arith.addf %84, %85 : vector<8x8xf32>
    %cst_57 = arith.constant dense<0.000000e+00> : vector<8x16xf32>
    %87 = tpu.matmul %83, %9, %cst_57 {dimension_numbers = #tpu.dot_dimension_numbers<[1], [0], [0], [1], [0, 0, 1, 1], [], []>} : vector<8x8xf32>, vector<8x16xf32>, vector<8x16xf32> -> vector<8x16xf32>
    %cst_58 = arith.constant dense<0.000000e+00> : vector<8x16xf32>
    %88 = tpu.matmul %86, %10, %cst_58 {dimension_numbers = #tpu.dot_dimension_numbers<[1], [0], [0], [1], [0, 0, 1, 1], [], []>} : vector<8x8xf32>, vector<8x16xf32>, vector<8x16xf32> -> vector<8x16xf32>
    %89 = arith.addf %83, %86 : vector<8x8xf32>
    %cst_59 = arith.constant dense<0.000000e+00> : vector<8x16xf32>
    %90 = tpu.matmul %89, %11, %cst_59 {dimension_numbers = #tpu.dot_dimension_numbers<[1], [0], [0], [1], [0, 0, 1, 1], [], []>} : vector<8x8xf32>, vector<8x16xf32>, vector<8x16xf32> -> vector<8x16xf32>
    %91 = arith.addf %87, %88 : vector<8x16xf32>
    %c0_60 = arith.constant 0 : index
    %c32 = arith.constant 32 : index
    %92 = vector.load %arg16[%c0_60, %c32] : memref<8x64xf32, #tpu.memory_space<vmem>>, vector<8x16xf32>
    tpu.vector_store %arg16[%c0_60, %c32], %91 {strides = array<i32>} : memref<8x64xf32, #tpu.memory_space<vmem>>, vector<8x16xf32>,
    %93 = arith.subf %90, %87 : vector<8x16xf32>
    %94 = arith.addf %93, %88 : vector<8x16xf32>
    %c0_61 = arith.constant 0 : index
    %c32_62 = arith.constant 32 : index
    %95 = vector.load %arg17[%c0_61, %c32_62] : memref<8x64xf32, #tpu.memory_space<vmem>>, vector<8x16xf32>
    tpu.vector_store %arg17[%c0_61, %c32_62], %94 {strides = array<i32>} : memref<8x64xf32, #tpu.memory_space<vmem>>, vector<8x16xf32>,
    %96 = vector.extract_strided_slice %4 {offsets = [0, 48], sizes = [8, 16], strides = [1, 1]} : vector<8x64xf32> to vector<8x16xf32>
    %97 = vector.extract_strided_slice %5 {offsets = [0, 48], sizes = [8, 16], strides = [1, 1]} : vector<8x64xf32> to vector<8x16xf32>
    %cst_63 = arith.constant dense<0.000000e+00> : vector<8x8xf32>
    %98 = tpu.matmul %96, %6, %cst_63 {dimension_numbers = #tpu.dot_dimension_numbers<[1], [0], [0], [1], [0, 0, 1, 1], [], []>} : vector<8x16xf32>, vector<16x8xf32>, vector<8x8xf32> -> vector<8x8xf32>
    %cst_64 = arith.constant dense<0.000000e+00> : vector<8x8xf32>
    %99 = tpu.matmul %97, %7, %cst_64 {dimension_numbers = #tpu.dot_dimension_numbers<[1], [0], [0], [1], [0, 0, 1, 1], [], []>} : vector<8x16xf32>, vector<16x8xf32>, vector<8x8xf32> -> vector<8x8xf32>
    %100 = arith.addf %96, %97 : vector<8x16xf32>
    %cst_65 = arith.constant dense<0.000000e+00> : vector<8x8xf32>
    %101 = tpu.matmul %100, %8, %cst_65 {dimension_numbers = #tpu.dot_dimension_numbers<[1], [0], [0], [1], [0, 0, 1, 1], [], []>} : vector<8x16xf32>, vector<16x8xf32>, vector<8x8xf32> -> vector<8x8xf32>
    %102 = arith.subf %98, %99 : vector<8x8xf32>
    %103 = arith.subf %101, %98 : vector<8x8xf32>
    %104 = arith.subf %103, %99 : vector<8x8xf32>
    %c3 = arith.constant 3 : index
    %c0_66 = arith.constant 0 : index
    %c0_67 = arith.constant 0 : index
    %105 = vector.load %arg13[%c3, %c0_66, %c0_67] : memref<4x8x8xf32, #tpu.memory_space<vmem>>, vector<1x8x8xf32>
    %106 = vector.shape_cast %105 : vector<1x8x8xf32> to vector<8x8xf32>
    %c3_68 = arith.constant 3 : index
    %c0_69 = arith.constant 0 : index
    %c0_70 = arith.constant 0 : index
    %107 = vector.load %arg14[%c3_68, %c0_69, %c0_70] : memref<4x8x8xf32, #tpu.memory_space<vmem>>, vector<1x8x8xf32>
    %108 = vector.shape_cast %107 : vector<1x8x8xf32> to vector<8x8xf32>
    %109 = arith.mulf %102, %106 : vector<8x8xf32>
    %110 = arith.mulf %104, %108 : vector<8x8xf32>
    %111 = arith.subf %109, %110 : vector<8x8xf32>
    %112 = arith.mulf %102, %108 : vector<8x8xf32>
    %113 = arith.mulf %104, %106 : vector<8x8xf32>
    %114 = arith.addf %112, %113 : vector<8x8xf32>
    %cst_71 = arith.constant dense<0.000000e+00> : vector<8x16xf32>
    %115 = tpu.matmul %111, %9, %cst_71 {dimension_numbers = #tpu.dot_dimension_numbers<[1], [0], [0], [1], [0, 0, 1, 1], [], []>} : vector<8x8xf32>, vector<8x16xf32>, vector<8x16xf32> -> vector<8x16xf32>
    %cst_72 = arith.constant dense<0.000000e+00> : vector<8x16xf32>
    %116 = tpu.matmul %114, %10, %cst_72 {dimension_numbers = #tpu.dot_dimension_numbers<[1], [0], [0], [1], [0, 0, 1, 1], [], []>} : vector<8x8xf32>, vector<8x16xf32>, vector<8x16xf32> -> vector<8x16xf32>
    %117 = arith.addf %111, %114 : vector<8x8xf32>
    %cst_73 = arith.constant dense<0.000000e+00> : vector<8x16xf32>
    %118 = tpu.matmul %117, %11, %cst_73 {dimension_numbers = #tpu.dot_dimension_numbers<[1], [0], [0], [1], [0, 0, 1, 1], [], []>} : vector<8x8xf32>, vector<8x16xf32>, vector<8x16xf32> -> vector<8x16xf32>
    %119 = arith.addf %115, %116 : vector<8x16xf32>
    %c0_74 = arith.constant 0 : index
    %c48 = arith.constant 48 : index
    %120 = vector.load %arg16[%c0_74, %c48] : memref<8x64xf32, #tpu.memory_space<vmem>>, vector<8x16xf32>
    tpu.vector_store %arg16[%c0_74, %c48], %119 {strides = array<i32>} : memref<8x64xf32, #tpu.memory_space<vmem>>, vector<8x16xf32>,
    %121 = arith.subf %118, %115 : vector<8x16xf32>
    %122 = arith.addf %121, %116 : vector<8x16xf32>
    %c0_75 = arith.constant 0 : index
    %c48_76 = arith.constant 48 : index
    %123 = vector.load %arg17[%c0_75, %c48_76] : memref<8x64xf32, #tpu.memory_space<vmem>>, vector<8x16xf32>
    tpu.vector_store %arg17[%c0_75, %c48_76], %122 {strides = array<i32>} : memref<8x64xf32, #tpu.memory_space<vmem>>, vector<8x16xf32>,
    %c0_77 = arith.constant 0 : index
    %c0_78 = arith.constant 0 : index
    %124 = vector.load %arg5[%c0_77, %c0_78] : memref<16x8xf32, #tpu.memory_space<vmem>>, vector<16x8xf32>
    %c0_79 = arith.constant 0 : index
    %c0_80 = arith.constant 0 : index
    %125 = vector.load %arg6[%c0_79, %c0_80] : memref<16x8xf32, #tpu.memory_space<vmem>>, vector<16x8xf32>
    %c0_81 = arith.constant 0 : index
    %c0_82 = arith.constant 0 : index
    %126 = vector.load %arg16[%c0_81, %c0_82] : memref<8x64xf32, #tpu.memory_space<vmem>>, vector<8x64xf32>
    %cst_83 = arith.constant dense<0.000000e+00> : vector<16x64xf32>
    %127 = tpu.matmul %124, %126, %cst_83 {dimension_numbers = #tpu.dot_dimension_numbers<[1], [0], [0], [1], [0, 0, 1, 1], [], []>} : vector<16x8xf32>, vector<8x64xf32>, vector<16x64xf32> -> vector<16x64xf32>
    %c0_84 = arith.constant 0 : index
    %c0_85 = arith.constant 0 : index
    %128 = vector.load %arg17[%c0_84, %c0_85] : memref<8x64xf32, #tpu.memory_space<vmem>>, vector<8x64xf32>
    %cst_86 = arith.constant dense<0.000000e+00> : vector<16x64xf32>
    %129 = tpu.matmul %125, %128, %cst_86 {dimension_numbers = #tpu.dot_dimension_numbers<[1], [0], [0], [1], [0, 0, 1, 1], [], []>} : vector<16x8xf32>, vector<8x64xf32>, vector<16x64xf32> -> vector<16x64xf32>
    %130 = arith.addf %127, %129 : vector<16x64xf32>
    %cst_87 = arith.constant 3.906250e-03 : f32
    %131 = vector.broadcast %cst_87 : f32 to vector<16x64xf32>
    %132 = arith.mulf %130, %131 : vector<16x64xf32>
    %c0_88 = arith.constant 0 : index
    %c0_89 = arith.constant 0 : index
    %c0_90 = arith.constant 0 : index
    %133 = vector.load %arg15[%c0_88, %c0_89, %c0_90] : memref<1x16x64xf32, #tpu.memory_space<vmem>>, vector<1x16x64xf32>
    %134 = vector.shape_cast %133 : vector<1x16x64xf32> to vector<16x64xf32>
    %135 = vector.shape_cast %132 : vector<16x64xf32> to vector<1x16x64xf32>
    tpu.vector_store %arg15[%c0_88, %c0_89, %c0_90], %135 {strides = array<i32>} : memref<1x16x64xf32, #tpu.memory_space<vmem>>, vector<1x16x64xf32>,
    return
  }
  func.func @transform_0(%arg0: i32, %arg1: i32) -> (i32, i32, i32) {
    %c0_i32 = arith.constant 0 : i32
    %c0_i32_0 = arith.constant 0 : i32
    return %arg1, %c0_i32, %arg0 : i32, i32, i32
  }
  func.func @transform_1(%arg0: i32, %arg1: i32) -> (i32, i32) {
    %c0_i32 = arith.constant 0 : i32
    %c0_i32_0 = arith.constant 0 : i32
    %c0_i32_1 = arith.constant 0 : i32
    return %c0_i32, %c0_i32_0 : i32, i32
  }
  func.func @transform_2(%arg0: i32, %arg1: i32) -> (i32, i32) {
    %c0_i32 = arith.constant 0 : i32
    %c0_i32_0 = arith.constant 0 : i32
    %c0_i32_1 = arith.constant 0 : i32
    return %c0_i32, %c0_i32_0 : i32, i32
  }
  func.func @transform_3(%arg0: i32, %arg1: i32) -> (i32, i32) {
    %c0_i32 = arith.constant 0 : i32
    %c0_i32_0 = arith.constant 0 : i32
    %c0_i32_1 = arith.constant 0 : i32
    return %c0_i32, %c0_i32_0 : i32, i32
  }
  func.func @transform_4(%arg0: i32, %arg1: i32) -> (i32, i32) {
    %c0_i32 = arith.constant 0 : i32
    %c0_i32_0 = arith.constant 0 : i32
    %c0_i32_1 = arith.constant 0 : i32
    return %c0_i32, %c0_i32_0 : i32, i32
  }
  func.func @transform_5(%arg0: i32, %arg1: i32) -> (i32, i32) {
    %c0_i32 = arith.constant 0 : i32
    %c0_i32_0 = arith.constant 0 : i32
    %c0_i32_1 = arith.constant 0 : i32
    return %c0_i32, %c0_i32_0 : i32, i32
  }
  func.func @transform_6(%arg0: i32, %arg1: i32) -> (i32, i32) {
    %c0_i32 = arith.constant 0 : i32
    %c0_i32_0 = arith.constant 0 : i32
    %c0_i32_1 = arith.constant 0 : i32
    return %c0_i32, %c0_i32_0 : i32, i32
  }
  func.func @transform_7(%arg0: i32, %arg1: i32) -> (i32, i32) {
    %c0_i32 = arith.constant 0 : i32
    %c0_i32_0 = arith.constant 0 : i32
    %c0_i32_1 = arith.constant 0 : i32
    return %c0_i32, %c0_i32_0 : i32, i32
  }
  func.func @transform_8(%arg0: i32, %arg1: i32) -> (i32, i32) {
    %c0_i32 = arith.constant 0 : i32
    %c0_i32_0 = arith.constant 0 : i32
    %c0_i32_1 = arith.constant 0 : i32
    return %c0_i32, %c0_i32_0 : i32, i32
  }
  func.func @transform_9(%arg0: i32, %arg1: i32) -> (i32, i32) {
    %c0_i32 = arith.constant 0 : i32
    %c0_i32_0 = arith.constant 0 : i32
    %c0_i32_1 = arith.constant 0 : i32
    return %c0_i32, %c0_i32_0 : i32, i32
  }
  func.func @transform_10(%arg0: i32, %arg1: i32) -> (i32, i32) {
    %c0_i32 = arith.constant 0 : i32
    %c0_i32_0 = arith.constant 0 : i32
    %c0_i32_1 = arith.constant 0 : i32
    return %c0_i32, %c0_i32_0 : i32, i32
  }
  func.func @transform_11(%arg0: i32, %arg1: i32) -> (i32, i32, i32) {
    %c0_i32 = arith.constant 0 : i32
    %c0_i32_0 = arith.constant 0 : i32
    %c0_i32_1 = arith.constant 0 : i32
    return %arg0, %c0_i32, %c0_i32_0 : i32, i32, i32
  }
  func.func @transform_12(%arg0: i32, %arg1: i32) -> (i32, i32, i32) {
    %c0_i32 = arith.constant 0 : i32
    %c0_i32_0 = arith.constant 0 : i32
    %c0_i32_1 = arith.constant 0 : i32
    return %arg0, %c0_i32, %c0_i32_0 : i32, i32, i32
  }
  func.func @transform_13(%arg0: i32, %arg1: i32) -> (i32, i32, i32) {
    %c0_i32 = arith.constant 0 : i32
    %c0_i32_0 = arith.constant 0 : i32
    return %arg1, %c0_i32, %arg0 : i32, i32, i32
  }
}

</mosaic_0001>

<llo_original>
// kernel: tpu_custom_call.1
$region0: #{tpu_custom_call.1}
  #allocation0 [shape = 'u32[]', space=smem, size = 0x4, offset = 0x4, fixed_abs, tag = 'smem constant byte address 0x4 - core index']
  #allocation1 [shape = 'u32[144,128]{1,0:T(1,128)}', space=vmem, size = 0x12000, scoped, tag = 'internal scratch']
  #allocation2 [shape = 'f32[8,64]{1,0:T(8,128)}', space=vmem, size = 0x1000, scoped, tag = 'scratch operand']
  #allocation3 [shape = 'f32[8,64]{1,0:T(8,128)}', space=vmem, size = 0x1000, scoped, tag = 'scratch operand']
  %s0 = inlined_call_operand.vmem [shape: f32[2,16,64], index: 0, kind: input, shape index: {}]
  %s1 = inlined_call_operand.hbm [shape: f32[8,16], index: 1, kind: input, shape index: {}]
  %s2 = inlined_call_operand.hbm [shape: f32[8,16], index: 2, kind: input, shape index: {}]
  %s3 = inlined_call_operand.vmem [shape: f32[16,8], index: 3, kind: input, shape index: {}]
  %s4 = inlined_call_operand.vmem [shape: f32[16,8], index: 4, kind: input, shape index: {}]
  %s5 = inlined_call_operand.vmem [shape: f32[16,8], index: 5, kind: input, shape index: {}]
  %s6 = inlined_call_operand.vmem [shape: f32[16,8], index: 6, kind: input, shape index: {}]
  %s7 = inlined_call_operand.vmem [shape: f32[16,8], index: 7, kind: input, shape index: {}]
  %s8 = inlined_call_operand.vmem [shape: f32[8,16], index: 8, kind: input, shape index: {}]
  %s9 = inlined_call_operand.vmem [shape: f32[8,16], index: 9, kind: input, shape index: {}]
  %s10 = inlined_call_operand.hbm [shape: f32[8,16], index: 10, kind: input, shape index: {}]
  %s11 = inlined_call_operand.vmem [shape: f32[4,8,8], index: 11, kind: input, shape index: {}]
  %s12 = inlined_call_operand.vmem [shape: f32[4,8,8], index: 12, kind: input, shape index: {}]
  %s13 = inlined_call_operand.hbm [shape: f32[2,16,64], index: 13, kind: output, shape index: {}]
  %s14 = sld [smem:[#allocation0]]
  $region97: #{tpu_custom_call.1} parent=0
    _
  %s16 = ssub.s32 1, %s14
  %s17 = scalar_select 0, %s16, %s14
  $region1: #{tpu_custom_call.1} parent=0
    #allocation4 [shape = 'u8[4096]{0}', space=vmem, size = 0x1000, scoped, tag = 'input window, operand 1, single buffered']
    #allocation5 [shape = 's32[2]{0}', space=sflag, size = 0x8, scoped, tag = 'scoped memory for tpu_custom_call.1']
    #allocation6 [shape = 's32[2]{0}', space=sflag, size = 0x8, scoped, tag = 'scoped memory for tpu_custom_call.1']
    #allocation7 [shape = 'u8[4096]{0}', space=vmem, size = 0x1000, scoped, tag = 'input window, operand 2, single buffered']
    #allocation8 [shape = 's32[1]{0}', space=sflag, size = 0x4, scoped, tag = 'scoped memory for tpu_custom_call.1']
    #allocation9 [shape = 'u8[4096]{0}', space=vmem, size = 0x1000, scoped, tag = 'input window, operand 10, single buffered']
    #allocation10 [shape = 'u8[16384]{0}', space=vmem, size = 0x4000, scoped, tag = 'output window, operand 0']
    %18 = vsyncpa [#allocation5], 0
    %19 = vsyncpa [#allocation8], 0
    %20 = vsyncpa [#allocation6], 0
    %s21 = scalar_lea.sflag [#allocation6], 1
    %22 = vsyncpa %s21, 0
    loop: start=0, step=1, limit=4
    $region2: #{tpu_custom_call.1} parent=1 // loop_pre_header
      _
    $region3: #{tpu_custom_call.1} parent=1 // loop_header
      %s24 = sphi 0, %s28
      %p25 = scmp.ge.s32.totalorder %s24, 4
      %s31 = sphi 0, %s43
      %s32 = sphi 0, %s39
      %s33 = sphi 0, %s31
      %s34 = sphi 0, %s32
      %s35 = sphi 0, %s33
      %s36 = sphi 0, %s34
      %s48 = sphi 0, %s50
      %s51 = sphi 0, %s48
      %s52 = sphi 0, %s51
      %s68 = sphi 0, %s52
      %s72 = sphi 0, %s72
      %s74 = sphi 0, %s72
      %s75 = sphi 0, %s74
      %s89 = sphi 0, %s75
      %s93 = sphi 0, %s93
      %s95 = sphi 0, %s93
      %s96 = sphi 0, %s95
      %s110 = sphi 0, %s96
      %s114 = sphi 0, %s114
      %s116 = sphi 0, %s114
      %s117 = sphi 0, %s116
      %s131 = sphi 0, %s117
      %s135 = sphi 0, %s135
      %s137 = sphi 0, %s135
      %s138 = sphi 0, %s137
      %s152 = sphi 0, %s138
      %s156 = sphi 0, %s156
      %s158 = sphi 0, %s156
      %s159 = sphi 0, %s158
      %s173 = sphi 0, %s159
      %s177 = sphi 0, %s177
      %s179 = sphi 0, %s177
      %s180 = sphi 0, %s179
      %s194 = sphi 0, %s180
      %s198 = sphi 0, %s198
      %s200 = sphi 0, %s198
      %s201 = sphi 0, %s200
      %s215 = sphi 0, %s201
      %s219 = sphi 0, %s219
      %s221 = sphi 0, %s219
      %s222 = sphi 0, %s221
      %s236 = sphi 0, %s222
      %s240 = sphi 0, %s240
      %s242 = sphi 0, %s240
      %s243 = sphi 0, %s242
      %s257 = sphi 0, %s243
      %s261 = sphi 0, %s261
      %s263 = sphi 0, %s261
      %s264 = sphi 0, %s263
      %s278 = sphi 0, %s264
      %s284 = sphi 0, %s286
      %s287 = sphi 0, %s284
      %s288 = sphi 0, %s287
      %s304 = sphi 0, %s288
      %s310 = sphi 0, %s312
      %s313 = sphi 0, %s310
      %s314 = sphi 0, %s313
      %s330 = sphi 0, %s314
      %s338 = sphi 0, %s340
      %s341 = sphi 0, %s338
      %s342 = sphi 0, %s341
      %s358 = sphi 0, %s342
    $region4: #{tpu_custom_call.1} parent=1 // loop_header_branch
      %27 = sbr.rel (%p25) target = $region8
    $region5: #{tpu_custom_call.1} parent=1 // loop_body
      %s29 = ssub.s32 %s24, 1
      %s30 = ssub.s32 %s24, 2
      %s37 = sadd.s32 1, %s32
      %p38 = scmp.ge.s32.totalorder %s37, 2
      %s39 = scalar_select %p38, 0, %s37
      %s40 = sadd.s32 1, %s31
      %s41 = scalar_select %p38, %s40, %s31
      %p42 = scmp.ge.s32.totalorder %s41, 1
      %s43 = scalar_select %p42, 0, %s41
      %s44 = ssub.s32 %s32, %s39
      %s45 = ssub.s32 %s31, %s43
      %s46 = sor.u32 %s44, %s45
      %p47 = scmp.eq.s32.totalorder %s46, 0
      %s49 = sadd.s32 %s48, 1
      %s50 = scalar_select %p47, %s48, %s49
      %p53 = pneg %p47
      %p54 = scmp.eq.s32.totalorder %s24, 1
      %p55 = por %p53, %p54
      %p56 = scmp.ne.s32.totalorder %s48, %s51
      %p57 = scmp.eq.s32.totalorder %s24, 0
      %p58 = por %p56, %p57
      %p59 = scmp.ne.s32.totalorder %s48, %s51
      %p60 = scmp.eq.s32.totalorder %s29, 1
      %p61 = por %p59, %p60
      %p62 = scmp.ne.s32.totalorder %s51, %s52
      %p63 = scmp.eq.s32.totalorder %s29, 0
      %p64 = por %p62, %p63
      %p65 = scmp.ne.s32.totalorder %s51, %s52
      %p66 = scmp.eq.s32.totalorder %s30, 1
      %p67 = por %p65, %p66
      %p69 = scmp.ne.s32.totalorder %s52, %s68
      %p70 = scmp.eq.s32.totalorder %s30, 0
      %p71 = por %p69, %p70
      %s73 = sadd.s32 %s72, 1
      %p76 = scmp.eq.s32.totalorder %s24, 1
      %p77 = scmp.ne.s32.totalorder %s72, %s74
      %p78 = scmp.eq.s32.totalorder %s24, 0
      %p79 = por %p77, %p78
      %p80 = scmp.ne.s32.totalorder %s72, %s74
      %p81 = scmp.eq.s32.totalorder %s29, 1
      %p82 = por %p80, %p81
      %p83 = scmp.ne.s32.totalorder %s74, %s75
      %p84 = scmp.eq.s32.totalorder %s29, 0
      %p85 = por %p83, %p84
      %p86 = scmp.ne.s32.totalorder %s74, %s75
      %p87 = scmp.eq.s32.totalorder %s30, 1
      %p88 = por %p86, %p87
      %p90 = scmp.ne.s32.totalorder %s75, %s89
      %p91 = scmp.eq.s32.totalorder %s30, 0
      %p92 = por %p90, %p91
      %s94 = sadd.s32 %s93, 1
      %p97 = scmp.eq.s32.totalorder %s24, 1
      %p98 = scmp.ne.s32.totalorder %s93, %s95
      %p99 = scmp.eq.s32.totalorder %s24, 0
      %p100 = por %p98, %p99
      %p101 = scmp.ne.s32.totalorder %s93, %s95
      %p102 = scmp.eq.s32.totalorder %s29, 1
      %p103 = por %p101, %p102
      %p104 = scmp.ne.s32.totalorder %s95, %s96
      %p105 = scmp.eq.s32.totalorder %s29, 0
      %p106 = por %p104, %p105
      %p107 = scmp.ne.s32.totalorder %s95, %s96
      %p108 = scmp.eq.s32.totalorder %s30, 1
      %p109 = por %p107, %p108
      %p111 = scmp.ne.s32.totalorder %s96, %s110
      %p112 = scmp.eq.s32.totalorder %s30, 0
      %p113 = por %p111, %p112
      %s115 = sadd.s32 %s114, 1
      %p118 = scmp.eq.s32.totalorder %s24, 1
      %p119 = scmp.ne.s32.totalorder %s114, %s116
      %p120 = scmp.eq.s32.totalorder %s24, 0
      %p121 = por %p119, %p120
      %p122 = scmp.ne.s32.totalorder %s114, %s116
      %p123 = scmp.eq.s32.totalorder %s29, 1
      %p124 = por %p122, %p123
      %p125 = scmp.ne.s32.totalorder %s116, %s117
      %p126 = scmp.eq.s32.totalorder %s29, 0
      %p127 = por %p125, %p126
      %p128 = scmp.ne.s32.totalorder %s116, %s117
      %p129 = scmp.eq.s32.totalorder %s30, 1
      %p130 = por %p128, %p129
      %p132 = scmp.ne.s32.totalorder %s117, %s131
      %p133 = scmp.eq.s32.totalorder %s30, 0
      %p134 = por %p132, %p133
      %s136 = sadd.s32 %s135, 1
      %p139 = scmp.eq.s32.totalorder %s24, 1
      %p140 = scmp.ne.s32.totalorder %s135, %s137
      %p141 = scmp.eq.s32.totalorder %s24, 0
      %p142 = por %p140, %p141
      %p143 = scmp.ne.s32.totalorder %s135, %s137
      %p144 = scmp.eq.s32.totalorder %s29, 1
      %p145 = por %p143, %p144
      %p146 = scmp.ne.s32.totalorder %s137, %s138
      %p147 = scmp.eq.s32.totalorder %s29, 0
      %p148 = por %p146, %p147
      %p149 = scmp.ne.s32.totalorder %s137, %s138
      %p150 = scmp.eq.s32.totalorder %s30, 1
      %p151 = por %p149, %p150
      %p153 = scmp.ne.s32.totalorder %s138, %s152
      %p154 = scmp.eq.s32.totalorder %s30, 0
      %p155 = por %p153, %p154
      %s157 = sadd.s32 %s156, 1
      %p160 = scmp.eq.s32.totalorder %s24, 1
      %p161 = scmp.ne.s32.totalorder %s156, %s158
      %p162 = scmp.eq.s32.totalorder %s24, 0
      %p163 = por %p161, %p162
      %p164 = scmp.ne.s32.totalorder %s156, %s158
      %p165 = scmp.eq.s32.totalorder %s29, 1
      %p166 = por %p164, %p165
      %p167 = scmp.ne.s32.totalorder %s158, %s159
      %p168 = scmp.eq.s32.totalorder %s29, 0
      %p169 = por %p167, %p168
      %p170 = scmp.ne.s32.totalorder %s158, %s159
      %p171 = scmp.eq.s32.totalorder %s30, 1
      %p172 = por %p170, %p171
      %p174 = scmp.ne.s32.totalorder %s159, %s173
      %p175 = scmp.eq.s32.totalorder %s30, 0
      %p176 = por %p174, %p175
      %s178 = sadd.s32 %s177, 1
      %p181 = scmp.eq.s32.totalorder %s24, 1
      %p182 = scmp.ne.s32.totalorder %s177, %s179
      %p183 = scmp.eq.s32.totalorder %s24, 0
      %p184 = por %p182, %p183
      %p185 = scmp.ne.s32.totalorder %s177, %s179
      %p186 = scmp.eq.s32.totalorder %s29, 1
      %p187 = por %p185, %p186
      %p188 = scmp.ne.s32.totalorder %s179, %s180
      %p189 = scmp.eq.s32.totalorder %s29, 0
      %p190 = por %p188, %p189
      %p191 = scmp.ne.s32.totalorder %s179, %s180
      %p192 = scmp.eq.s32.totalorder %s30, 1
      %p193 = por %p191, %p192
      %p195 = scmp.ne.s32.totalorder %s180, %s194
      %p196 = scmp.eq.s32.totalorder %s30, 0
      %p197 = por %p195, %p196
      %s199 = sadd.s32 %s198, 1
      %p202 = scmp.eq.s32.totalorder %s24, 1
      %p203 = scmp.ne.s32.totalorder %s198, %s200
      %p204 = scmp.eq.s32.totalorder %s24, 0
      %p205 = por %p203, %p204
      %p206 = scmp.ne.s32.totalorder %s198, %s200
      %p207 = scmp.eq.s32.totalorder %s29, 1
      %p208 = por %p206, %p207
      %p209 = scmp.ne.s32.totalorder %s200, %s201
      %p210 = scmp.eq.s32.totalorder %s29, 0
      %p211 = por %p209, %p210
      %p212 = scmp.ne.s32.totalorder %s200, %s201
      %p213 = scmp.eq.s32.totalorder %s30, 1
      %p214 = por %p212, %p213
      %p216 = scmp.ne.s32.totalorder %s201, %s215
      %p217 = scmp.eq.s32.totalorder %s30, 0
      %p218 = por %p216, %p217
      %s220 = sadd.s32 %s219, 1
      %p223 = scmp.eq.s32.totalorder %s24, 1
      %p224 = scmp.ne.s32.totalorder %s219, %s221
      %p225 = scmp.eq.s32.totalorder %s24, 0
      %p226 = por %p224, %p225
      %p227 = scmp.ne.s32.totalorder %s219, %s221
      %p228 = scmp.eq.s32.totalorder %s29, 1
      %p229 = por %p227, %p228
      %p230 = scmp.ne.s32.totalorder %s221, %s222
      %p231 = scmp.eq.s32.totalorder %s29, 0
      %p232 = por %p230, %p231
      %p233 = scmp.ne.s32.totalorder %s221, %s222
      %p234 = scmp.eq.s32.totalorder %s30, 1
      %p235 = por %p233, %p234
      %p237 = scmp.ne.s32.totalorder %s222, %s236
      %p238 = scmp.eq.s32.totalorder %s30, 0
      %p239 = por %p237, %p238
      %s241 = sadd.s32 %s240, 1
      %p244 = scmp.eq.s32.totalorder %s24, 1
      %p245 = scmp.ne.s32.totalorder %s240, %s242
      %p246 = scmp.eq.s32.totalorder %s24, 0
      %p247 = por %p245, %p246
      %p248 = scmp.ne.s32.totalorder %s240, %s242
      %p249 = scmp.eq.s32.totalorder %s29, 1
      %p250 = por %p248, %p249
      %p251 = scmp.ne.s32.totalorder %s242, %s243
      %p252 = scmp.eq.s32.totalorder %s29, 0
      %p253 = por %p251, %p252
      %p254 = scmp.ne.s32.totalorder %s242, %s243
      %p255 = scmp.eq.s32.totalorder %s30, 1
      %p256 = por %p254, %p255
      %p258 = scmp.ne.s32.totalorder %s243, %s257
      %p259 = scmp.eq.s32.totalorder %s30, 0
      %p260 = por %p258, %p259
      %s262 = sadd.s32 %s261, 1
      %p265 = scmp.eq.s32.totalorder %s24, 1
      %p266 = scmp.ne.s32.totalorder %s261, %s263
      %p267 = scmp.eq.s32.totalorder %s24, 0
      %p268 = por %p266, %p267
      %p269 = scmp.ne.s32.totalorder %s261, %s263
      %p270 = scmp.eq.s32.totalorder %s29, 1
      %p271 = por %p269, %p270
      %p272 = scmp.ne.s32.totalorder %s263, %s264
      %p273 = scmp.eq.s32.totalorder %s29, 0
      %p274 = por %p272, %p273
      %p275 = scmp.ne.s32.totalorder %s263, %s264
      %p276 = scmp.eq.s32.totalorder %s30, 1
      %p277 = por %p275, %p276
      %p279 = scmp.ne.s32.totalorder %s264, %s278
      %p280 = scmp.eq.s32.totalorder %s30, 0
      %p281 = por %p279, %p280
      %s282 = ssub.s32 %s31, %s43
      %p283 = scmp.eq.s32.totalorder %s282, 0
      %s285 = sadd.s32 %s284, 1
      %s286 = scalar_select %p283, %s284, %s285
      %p289 = pneg %p283
      %p290 = scmp.eq.s32.totalorder %s24, 1
      %p291 = por %p289, %p290
      %p292 = scmp.ne.s32.totalorder %s284, %s287
      %p293 = scmp.eq.s32.totalorder %s24, 0
      %p294 = por %p292, %p293
      %p295 = scmp.ne.s32.totalorder %s284, %s287
      %p296 = scmp.eq.s32.totalorder %s29, 1
      %p297 = por %p295, %p296
      %p298 = scmp.ne.s32.totalorder %s287, %s288
      %p299 = scmp.eq.s32.totalorder %s29, 0
      %p300 = por %p298, %p299
      %p301 = scmp.ne.s32.totalorder %s287, %s288
      %p302 = scmp.eq.s32.totalorder %s30, 1
      %p303 = por %p301, %p302
      %p305 = scmp.ne.s32.totalorder %s288, %s304
      %p306 = scmp.eq.s32.totalorder %s30, 0
      %p307 = por %p305, %p306
      %s308 = ssub.s32 %s31, %s43
      %p309 = scmp.eq.s32.totalorder %s308, 0
      %s311 = sadd.s32 %s310, 1
      %s312 = scalar_select %p309, %s310, %s311
      %p315 = pneg %p309
      %p316 = scmp.eq.s32.totalorder %s24, 1
      %p317 = por %p315, %p316
      %p318 = scmp.ne.s32.totalorder %s310, %s313
      %p319 = scmp.eq.s32.totalorder %s24, 0
      %p320 = por %p318, %p319
      %p321 = scmp.ne.s32.totalorder %s310, %s313
      %p322 = scmp.eq.s32.totalorder %s29, 1
      %p323 = por %p321, %p322
      %p324 = scmp.ne.s32.totalorder %s313, %s314
      %p325 = scmp.eq.s32.totalorder %s29, 0
      %p326 = por %p324, %p325
      %p327 = scmp.ne.s32.totalorder %s313, %s314
      %p328 = scmp.eq.s32.totalorder %s30, 1
      %p329 = por %p327, %p328
      %p331 = scmp.ne.s32.totalorder %s314, %s330
      %p332 = scmp.eq.s32.totalorder %s30, 0
      %p333 = por %p331, %p332
      %s334 = ssub.s32 %s32, %s39
      %s335 = ssub.s32 %s31, %s43
      %s336 = sor.u32 %s334, %s335
      %p337 = scmp.eq.s32.totalorder %s336, 0
      %s339 = sadd.s32 %s338, 1
      %s340 = scalar_select %p337, %s338, %s339
      %p343 = pneg %p337
      %p344 = scmp.eq.s32.totalorder %s24, 1
      %p345 = por %p343, %p344
      %p346 = scmp.ne.s32.totalorder %s338, %s341
      %p347 = scmp.eq.s32.totalorder %s24, 0
      %p348 = por %p346, %p347
      %p349 = scmp.ne.s32.totalorder %s338, %s341
      %p350 = scmp.eq.s32.totalorder %s29, 1
      %p351 = por %p349, %p350
      %p352 = scmp.ne.s32.totalorder %s341, %s342
      %p353 = scmp.eq.s32.totalorder %s29, 0
      %p354 = por %p352, %p353
      %p355 = scmp.ne.s32.totalorder %s341, %s342
      %p356 = scmp.eq.s32.totalorder %s30, 1
      %p357 = por %p355, %p356
      %p359 = scmp.ne.s32.totalorder %s342, %s358
      %p360 = scmp.eq.s32.totalorder %s30, 0
      %p361 = por %p359, %p360
      %p362 = scmp.le.s32.totalorder 1, %s24
      %p363 = scmp.lt.s32.totalorder %s24, 3
      %p364 = pnand %p362, %p363
      %p365 = pneg %p364
      // Predicated region
      $region9: #{tpu_custom_call.1} parent=5 // pred_check
        _
      $region10: #{tpu_custom_call.1} parent=5 // pred_check_branch
        %367 = sbr.rel (%p364) target = $region12
      $region11: #{tpu_custom_call.1} parent=5 // pred_region
        %s368 = ssub.s32 %s24, 1
        // Predicated region
        $region13: #{tpu_custom_call.1} parent=11 // pred_check
          %p369 = pneg %p85
        $region14: #{tpu_custom_call.1} parent=11 // pred_check_branch
          %371 = sbr.rel (%p369) target = $region16
        $region15: #{tpu_custom_call.1} parent=11 // pred_region
          %s373 = ssub.s32 128, 128
          %374 = vsyncadd [#allocation5], %s373
          %s376 = sshll.u32 [#allocation4], 4
          %s377 = int_to_ptr.vmem [resolvable:$true] %s376
          %379 = dma.hbm_to_vmem [thread:$0]  %s1, 128, %s377, [#allocation5]
        $region16: #{tpu_custom_call.1} parent=11 // pred_fallthru
          _
        // Predicated region
        $region17: #{tpu_custom_call.1} parent=11 // pred_check
          %p380 = pneg %p106
        $region18: #{tpu_custom_call.1} parent=11 // pred_check_branch
          %382 = sbr.rel (%p380) target = $region20
        $region19: #{tpu_custom_call.1} parent=11 // pred_region
          %s384 = ssub.s32 128, 128
          %385 = vsyncadd [#allocation8], %s384
          %s387 = sshll.u32 [#allocation7], 4
          %s388 = int_to_ptr.vmem [resolvable:$true] %s387
          %390 = dma.hbm_to_vmem [thread:$0]  %s2, 128, %s388, [#allocation8]
        $region20: #{tpu_custom_call.1} parent=11 // pred_fallthru
          _
        // Predicated region
        $region21: #{tpu_custom_call.1} parent=11 // pred_check
          %p391 = pneg %p127
        $region22: #{tpu_custom_call.1} parent=11 // pred_check_branch
          %393 = sbr.rel (%p391) target = $region24
        $region23: #{tpu_custom_call.1} parent=11 // pred_region
          _
        $region24: #{tpu_custom_call.1} parent=11 // pred_fallthru
          _
        // Predicated region
        $region25: #{tpu_custom_call.1} parent=11 // pred_check
          %p394 = pneg %p148
        $region26: #{tpu_custom_call.1} parent=11 // pred_check_branch
          %396 = sbr.rel (%p394) target = $region28
        $region27: #{tpu_custom_call.1} parent=11 // pred_region
          _
        $region28: #{tpu_custom_call.1} parent=11 // pred_fallthru
          _
        // Predicated region
        $region29: #{tpu_custom_call.1} parent=11 // pred_check
          %p397 = pneg %p169
        $region30: #{tpu_custom_call.1} parent=11 // pred_check_branch
          %399 = sbr.rel (%p397) target = $region32
        $region31: #{tpu_custom_call.1} parent=11 // pred_region
          _
        $region32: #{tpu_custom_call.1} parent=11 // pred_fallthru
          _
        // Predicated region
        $region33: #{tpu_custom_call.1} parent=11 // pred_check
          %p400 = pneg %p190
        $region34: #{tpu_custom_call.1} parent=11 // pred_check_branch
          %402 = sbr.rel (%p400) target = $region36
        $region35: #{tpu_custom_call.1} parent=11 // pred_region
          _
        $region36: #{tpu_custom_call.1} parent=11 // pred_fallthru
          _
        // Predicated region
        $region37: #{tpu_custom_call.1} parent=11 // pred_check
          %p403 = pneg %p211
        $region38: #{tpu_custom_call.1} parent=11 // pred_check_branch
          %405 = sbr.rel (%p403) target = $region40
        $region39: #{tpu_custom_call.1} parent=11 // pred_region
          _
        $region40: #{tpu_custom_call.1} parent=11 // pred_fallthru
          _
        // Predicated region
        $region41: #{tpu_custom_call.1} parent=11 // pred_check
          %p406 = pneg %p232
        $region42: #{tpu_custom_call.1} parent=11 // pred_check_branch
          %408 = sbr.rel (%p406) target = $region44
        $region43: #{tpu_custom_call.1} parent=11 // pred_region
          _
        $region44: #{tpu_custom_call.1} parent=11 // pred_fallthru
          _
        // Predicated region
        $region45: #{tpu_custom_call.1} parent=11 // pred_check
          %p409 = pneg %p253
        $region46: #{tpu_custom_call.1} parent=11 // pred_check_branch
          %411 = sbr.rel (%p409) target = $region48
        $region47: #{tpu_custom_call.1} parent=11 // pred_region
          _
        $region48: #{tpu_custom_call.1} parent=11 // pred_fallthru
          _
        // Predicated region
        $region49: #{tpu_custom_call.1} parent=11 // pred_check
          %p412 = pneg %p274
        $region50: #{tpu_custom_call.1} parent=11 // pred_check_branch
          %414 = sbr.rel (%p412) target = $region52
        $region51: #{tpu_custom_call.1} parent=11 // pred_region
          %s416 = ssub.s32 128, 128
          %417 = vsyncadd [#allocation8], %s416
          %s419 = sshll.u32 [#allocation9], 4
          %s420 = int_to_ptr.vmem [resolvable:$true] %s419
          %422 = dma.hbm_to_vmem [thread:$0]  %s10, 128, %s420, [#allocation8]
        $region52: #{tpu_custom_call.1} parent=11 // pred_fallthru
          _
        // Predicated region
        $region53: #{tpu_custom_call.1} parent=11 // pred_check
          %p423 = pneg %p300
        $region54: #{tpu_custom_call.1} parent=11 // pred_check_branch
          %425 = sbr.rel (%p423) target = $region56
        $region55: #{tpu_custom_call.1} parent=11 // pred_region
          %s426 = smul.u32 4, %s33
          %p427 = scmp.lt.s32.totalorder %s426, 3
          %s428 = scalar_select %p427, %s426, 3
          %s429 = smul.addr %s428, 8
          %s430 = scalar_lea.vmem %s11, %s429
          %s431 = smul.u32 4, %s33
        $region56: #{tpu_custom_call.1} parent=11 // pred_fallthru
          _
        // Predicated region
        $region57: #{tpu_custom_call.1} parent=11 // pred_check
          %p432 = pneg %p326
        $region58: #{tpu_custom_call.1} parent=11 // pred_check_branch
          %434 = sbr.rel (%p432) target = $region60
        $region59: #{tpu_custom_call.1} parent=11 // pred_region
          %s435 = smul.u32 4, %s33
          %p436 = scmp.lt.s32.totalorder %s435, 3
          %s437 = scalar_select %p436, %s435, 3
          %s438 = smul.addr %s437, 8
          %s439 = scalar_lea.vmem %s12, %s438
          %s440 = smul.u32 4, %s33
        $region60: #{tpu_custom_call.1} parent=11 // pred_fallthru
          _
      $region12: #{tpu_custom_call.1} parent=5 // pred_fallthru
        _
      %p441 = scmp.lt.s32.totalorder %s24, 2
      // Predicated region
      $region61: #{tpu_custom_call.1} parent=5 // pred_check
        %p442 = pneg %p441
      $region62: #{tpu_custom_call.1} parent=5 // pred_check_branch
        %444 = sbr.rel (%p442) target = $region64
      $region63: #{tpu_custom_call.1} parent=5 // pred_region
        // Predicated region
        $region65: #{tpu_custom_call.1} parent=63 // pred_check
          %p445 = pneg %p58
        $region66: #{tpu_custom_call.1} parent=63 // pred_check_branch
          %447 = sbr.rel (%p445) target = $region68
        $region67: #{tpu_custom_call.1} parent=63 // pred_region
          %p448 = scmp.lt.s32.totalorder %s32, 1
          %s449 = scalar_select %p448, %s32, 1
          %p450 = scmp.lt.s32.totalorder %s31, 0
          %s451 = scalar_select %p450, %s31, 0
          %s452 = smul.addr %s449, 2
          %s453 = sadd.s32 %s451, %s452
          %s454 = smul.addr %s453, 8
          %s455 = scalar_lea.vmem %s0, %s454
        $region68: #{tpu_custom_call.1} parent=63 // pred_fallthru
          _
      $region64: #{tpu_custom_call.1} parent=5 // pred_fallthru
        _
      %p456 = scmp.le.s32.totalorder 1, %s24
      %p457 = scmp.lt.s32.totalorder %s24, 3
      %p458 = pnand %p456, %p457
      %p459 = pneg %p458
      // Predicated region
      $region69: #{tpu_custom_call.1} parent=5 // pred_check
        _
      $region70: #{tpu_custom_call.1} parent=5 // pred_check_branch
        %461 = sbr.rel (%p458) target = $region72
      $region71: #{tpu_custom_call.1} parent=5 // pred_region
        %s462 = ssub.s32 %s24, 1
        // Predicated region
        $region73: #{tpu_custom_call.1} parent=71 // pred_check
          %p463 = pneg %p85
        $region74: #{tpu_custom_call.1} parent=71 // pred_check_branch
          %465 = sbr.rel (%p463) target = $region76
        $region75: #{tpu_custom_call.1} parent=71 // pred_region
          %466 = dma.done [#allocation5], 128
        $region76: #{tpu_custom_call.1} parent=71 // pred_fallthru
          _
        // Predicated region
        $region77: #{tpu_custom_call.1} parent=71 // pred_check
          %p467 = pneg %p106
        $region78: #{tpu_custom_call.1} parent=71 // pred_check_branch
          %469 = sbr.rel (%p467) target = $region80
        $region79: #{tpu_custom_call.1} parent=71 // pred_region
          %470 = dma.done [#allocation8], 128
        $region80: #{tpu_custom_call.1} parent=71 // pred_fallthru
          _
        // Predicated region
        $region81: #{tpu_custom_call.1} parent=71 // pred_check
          %p471 = pneg %p274
        $region82: #{tpu_custom_call.1} parent=71 // pred_check_branch
          %473 = sbr.rel (%p471) target = $region84
        $region83: #{tpu_custom_call.1} parent=71 // pred_region
          %474 = dma.done [#allocation8], 128
        $region84: #{tpu_custom_call.1} parent=71 // pred_fallthru
          _
        %p475 = scmp.lt.s32.totalorder %s34, 1
        %s476 = scalar_select %p475, %s34, 1
        %p477 = scmp.lt.s32.totalorder %s33, 0
        %s478 = scalar_select %p477, %s33, 0
        %s479 = smul.addr %s476, 2
        %s480 = sadd.s32 %s478, %s479
        %s481 = smul.addr %s480, 8
        %s482 = scalar_lea.vmem %s0, %s481
        %p483 = pneg %p64
        %p484 = pneg %p61
        %p485 = pneg %p85
        %p486 = pneg %p82
        %p487 = pneg %p106
        %p488 = pneg %p103
        %p489 = pneg %p127
        %p490 = pneg %p124
        %p491 = pneg %p148
        %p492 = pneg %p145
        %p493 = pneg %p169
        %p494 = pneg %p166
        %p495 = pneg %p190
        %p496 = pneg %p187
        %p497 = pneg %p211
        %p498 = pneg %p208
        %p499 = pneg %p232
        %p500 = pneg %p229
        %p501 = pneg %p253
        %p502 = pneg %p250
        %p503 = pneg %p274
        %p504 = pneg %p271
        %s505 = smul.u32 4, %s33
        %p506 = scmp.lt.s32.totalorder %s505, 3
        %s507 = scalar_select %p506, %s505, 3
        %s508 = smul.addr %s507, 8
        %s509 = scalar_lea.vmem %s11, %s508
        %p510 = pneg %p300
        %p511 = pneg %p297
        %s512 = smul.u32 4, %s33
        %p513 = scmp.lt.s32.totalorder %s512, 3
        %s514 = scalar_select %p513, %s512, 3
        %s515 = smul.addr %s514, 8
        %s516 = scalar_lea.vmem %s12, %s515
        %p517 = pneg %p326
        %p518 = pneg %p323
        %p519 = pneg %p354
        %p520 = pneg %p351
        %s521 = sand.u32 %s341, 1
        %s522 = scalar_lea.sflag [#allocation6], %s521
        %s523 = sand.u32 %s341, 1
        %s524 = smul.addr %s523, 16
        %s525 = scalar_lea.vmem [#allocation10], %s524
        %p526 = scmp.lt.s32.totalorder %s34, 1
        %s527 = scalar_select %p526, %s34, 1
        %p528 = scmp.lt.s32.totalorder %s33, 0
        %s529 = scalar_select %p528, %s33, 0
        %s530 = smul.addr %s527, 2
        %s531 = sadd.s32 %s529, %s530
        %s532 = smul.addr %s531, 8
        %s533 = scalar_lea.vmem %s0, %s532
        %s534 = smul.u32 4, %s33
        %p535 = scmp.lt.s32.totalorder %s534, 3
        %s536 = scalar_select %p535, %s534, 3
        %s537 = smul.addr %s536, 8
        %s538 = scalar_lea.vmem %s11, %s537
        %s539 = smul.u32 4, %s33
        %s540 = smul.u32 4, %s33
        %p541 = scmp.lt.s32.totalorder %s540, 3
        %s542 = scalar_select %p541, %s540, 3
        %s543 = smul.addr %s542, 8
        %s544 = scalar_lea.vmem %s12, %s543
        %s545 = smul.u32 4, %s33
        %v546 = vld [vmem:[%s533] sm:$0xff]
        %v547 = vld [vmem:[%s533 + $0x8] sm:$0xff]
        %v548 = vld [vmem:[#allocation4] sm:$0xff]
        %v549 = vld [vmem:[#allocation7] sm:$0xff]
        %vm550 = vcmask 130048
        %v552 = vsel %vm550, %v548, 0
        %554 = vmatprep.subr.mxu0 0.0
        %555 = vmatpush1.msra.mxu0 %v546
        %556 = vmatprep.subr.mxu0 0.0
        %557 = vmatpush1.msra.mxu0 %v547
        %558 = vmatprep.subr.mxu0 0.0
        %559 = vmatpush1.msra.mxu0 0.0
        %560 = vmatprep.subr.mxu0 0.0
        %561 = vmatpush1.msra.mxu0 0.0
        %562 = vmatprep.subr.mxu0 0.0
        %563 = vmatpush1.msra.mxu0 0.0
        %564 = vmatprep.subr.mxu0 0.0
        %565 = vmatpush1.msra.mxu0 0.0
        %566 = vmatprep.subr.mxu0 0.0
        %567 = vmatpush1.msra.mxu0 0.0
        %568 = vmatprep.subr.mxu0 0.0
        %569 = vmatpush1.msra.mxu0 0.0
        %570 = vmatprep.subr.mxu0 0.0
        %571 = vmatpush1.msra.mxu0 0.0
        %572 = vmatprep.subr.mxu0 0.0
        %573 = vmatpush1.msra.mxu0 0.0
        %574 = vmatprep.subr.mxu0 0.0
        %575 = vmatpush1.msra.mxu0 0.0
        %576 = vmatprep.subr.mxu0 0.0
        %577 = vmatpush1.msra.mxu0 0.0
        %578 = vmatprep.subr.mxu0 0.0
        %579 = vmatpush1.msra.mxu0 0.0
        %580 = vmatprep.subr.mxu0 0.0
        %581 = vmatpush1.msra.mxu0 0.0
        %582 = vmatprep.subr.mxu0 0.0
        %583 = vmatpush1.msra.mxu0 0.0
        %584 = vmatprep.subr.mxu0 0.0
        %585 = vmatpush1.msra.mxu0 0.0
        %586 = vmatprep.subr.mxu0 0.0
        %587 = vmatpush1.msra.mxu0 0.0
        %588 = vmatprep.subr.mxu0 0.0
        %589 = vmatpush1.msra.mxu0 0.0
        %590 = vmatprep.subr.mxu0 0.0
        %591 = vmatpush1.msra.mxu0 0.0
        %592 = vmatprep.subr.mxu0 0.0
        %593 = vmatpush1.msra.mxu0 0.0
        %594 = vmatprep.subr.mxu0 0.0
        %595 = vmatpush1.msra.mxu0 0.0
        %596 = vmatprep.subr.mxu0 0.0
        %597 = vmatpush1.msra.mxu0 0.0
        %598 = vmatprep.subr.mxu0 0.0
        %599 = vmatpush1.msra.mxu0 0.0
        %600 = vmatprep.subr.mxu0 0.0
        %601 = vmatpush1.msra.mxu0 0.0
        %602 = vmatprep.subr.mxu0 0.0
        %603 = vmatpush1.msra.mxu0 0.0
        %604 = vmatprep.subr.mxu0 0.0
        %605 = vmatpush1.msra.mxu0 0.0
        %606 = vmatprep.subr.mxu0 0.0
        %607 = vmatpush1.msra.mxu0 0.0
        %608 = vmatprep.subr.mxu0 0.0
        %609 = vmatpush1.msra.mxu0 0.0
        %610 = vmatprep.subr.mxu0 0.0
        %611 = vmatpush1.msra.mxu0 0.0
        %612 = vmatprep.subr.mxu0 0.0
        %613 = vmatpush1.msra.mxu0 0.0
        %614 = vmatprep.subr.mxu0 0.0
        %615 = vmatpush1.msra.mxu0 0.0
        %616 = vmatprep.subr.mxu0 0.0
        %617 = vmatpush1.msra.mxu0 0.0
        %618 = vmatprep.mubr.f32.mxu0 0.0
        %619 = vmatmul.mubr.f32.gmra.mrb[0].mxu0 %v552
        %v620 = vpop.f32.mrb[0].mxu0
        %v621 = vadd.f32 0.0, %v620
        %v622 = vpop.f32.mrb[0].mxu0
        %623 = vdwg.mxu0
        %v625 = vsel %vm550, %v549, 0
        %627 = vmatprep.subr.mxu0 0.0
        %628 = vmatpush1.msra.mxu0 %v546
        %629 = vmatprep.subr.mxu0 0.0
        %630 = vmatpush1.msra.mxu0 %v547
        %631 = vmatprep.subr.mxu0 0.0
        %632 = vmatpush1.msra.mxu0 0.0
        %633 = vmatprep.subr.mxu0 0.0
        %634 = vmatpush1.msra.mxu0 0.0
        %635 = vmatprep.subr.mxu0 0.0
        %636 = vmatpush1.msra.mxu0 0.0
        %637 = vmatprep.subr.mxu0 0.0
        %638 = vmatpush1.msra.mxu0 0.0
        %639 = vmatprep.subr.mxu0 0.0
        %640 = vmatpush1.msra.mxu0 0.0
        %641 = vmatprep.subr.mxu0 0.0
        %642 = vmatpush1.msra.mxu0 0.0
        %643 = vmatprep.subr.mxu0 0.0
        %644 = vmatpush1.msra.mxu0 0.0
        %645 = vmatprep.subr.mxu0 0.0
        %646 = vmatpush1.msra.mxu0 0.0
        %647 = vmatprep.subr.mxu0 0.0
        %648 = vmatpush1.msra.mxu0 0.0
        %649 = vmatprep.subr.mxu0 0.0
        %650 = vmatpush1.msra.mxu0 0.0
        %651 = vmatprep.subr.mxu0 0.0
        %652 = vmatpush1.msra.mxu0 0.0
        %653 = vmatprep.subr.mxu0 0.0
        %654 = vmatpush1.msra.mxu0 0.0
        %655 = vmatprep.subr.mxu0 0.0
        %656 = vmatpush1.msra.mxu0 0.0
        %657 = vmatprep.subr.mxu0 0.0
        %658 = vmatpush1.msra.mxu0 0.0
        %659 = vmatprep.subr.mxu0 0.0
        %660 = vmatpush1.msra.mxu0 0.0
        %661 = vmatprep.subr.mxu0 0.0
        %662 = vmatpush1.msra.mxu0 0.0
        %663 = vmatprep.subr.mxu0 0.0
        %664 = vmatpush1.msra.mxu0 0.0
        %665 = vmatprep.subr.mxu0 0.0
        %666 = vmatpush1.msra.mxu0 0.0
        %667 = vmatprep.subr.mxu0 0.0
        %668 = vmatpush1.msra.mxu0 0.0
        %669 = vmatprep.subr.mxu0 0.0
        %670 = vmatpush1.msra.mxu0 0.0
        %671 = vmatprep.subr.mxu0 0.0
        %672 = vmatpush1.msra.mxu0 0.0
        %673 = vmatprep.subr.mxu0 0.0
        %674 = vmatpush1.msra.mxu0 0.0
        %675 = vmatprep.subr.mxu0 0.0
        %676 = vmatpush1.msra.mxu0 0.0
        %677 = vmatprep.subr.mxu0 0.0
        %678 = vmatpush1.msra.mxu0 0.0
        %679 = vmatprep.subr.mxu0 0.0
        %680 = vmatpush1.msra.mxu0 0.0
        %681 = vmatprep.subr.mxu0 0.0
        %682 = vmatpush1.msra.mxu0 0.0
        %683 = vmatprep.subr.mxu0 0.0
        %684 = vmatpush1.msra.mxu0 0.0
        %685 = vmatprep.subr.mxu0 0.0
        %686 = vmatpush1.msra.mxu0 0.0
        %687 = vmatprep.subr.mxu0 0.0
        %688 = vmatpush1.msra.mxu0 0.0
        %689 = vmatprep.subr.mxu0 0.0
        %690 = vmatpush1.msra.mxu0 0.0
        %691 = vmatprep.mubr.f32.mxu0 0.0
        %692 = vmatmul.mubr.f32.gmra.mrb[0].mxu0 %v625
        %v693 = vpop.f32.mrb[0].mxu0
        %v694 = vadd.f32 0.0, %v693
        %v695 = vpop.f32.mrb[0].mxu0
        %696 = vdwg.mxu0
        %v697 = vld [vmem:[%s5] sm:$0xff]
        %v698 = vld [vmem:[%s5 + $0x8] sm:$0xff]
        %v699 = vld [vmem:[%s6] sm:$0xff]
        %v700 = vld [vmem:[%s6 + $0x8] sm:$0xff]
        %v701 = vld [vmem:[%s7] sm:$0xff]
        %v702 = vld [vmem:[%s7 + $0x8] sm:$0xff]
        %v703 = vld [vmem:[%s8] sm:$0xff]
        %v704 = vld [vmem:[%s9] sm:$0xff]
        %v705 = vld [vmem:[#allocation9] sm:$0xff]
        %v707 = vsel %vm550, %v621, 0
        %709 = vmatprep.subr.mxu0 0.0
        %710 = vmatpush1.msra.mxu0 %v697
        %711 = vmatprep.subr.mxu0 0.0
        %712 = vmatpush1.msra.mxu0 %v698
        %713 = vmatprep.subr.mxu0 0.0
        %714 = vmatpush1.msra.mxu0 0.0
        %715 = vmatprep.subr.mxu0 0.0
        %716 = vmatpush1.msra.mxu0 0.0
        %717 = vmatprep.subr.mxu0 0.0
        %718 = vmatpush1.msra.mxu0 0.0
        %719 = vmatprep.subr.mxu0 0.0
        %720 = vmatpush1.msra.mxu0 0.0
        %721 = vmatprep.subr.mxu0 0.0
        %722 = vmatpush1.msra.mxu0 0.0
        %723 = vmatprep.subr.mxu0 0.0
        %724 = vmatpush1.msra.mxu0 0.0
        %725 = vmatprep.subr.mxu0 0.0
        %726 = vmatpush1.msra.mxu0 0.0
        %727 = vmatprep.subr.mxu0 0.0
        %728 = vmatpush1.msra.mxu0 0.0
        %729 = vmatprep.subr.mxu0 0.0
        %730 = vmatpush1.msra.mxu0 0.0
        %731 = vmatprep.subr.mxu0 0.0
        %732 = vmatpush1.msra.mxu0 0.0
        %733 = vmatprep.subr.mxu0 0.0
        %734 = vmatpush1.msra.mxu0 0.0
        %735 = vmatprep.subr.mxu0 0.0
        %736 = vmatpush1.msra.mxu0 0.0
        %737 = vmatprep.subr.mxu0 0.0
        %738 = vmatpush1.msra.mxu0 0.0
        %739 = vmatprep.subr.mxu0 0.0
        %740 = vmatpush1.msra.mxu0 0.0
        %741 = vmatprep.subr.mxu0 0.0
        %742 = vmatpush1.msra.mxu0 0.0
        %743 = vmatprep.subr.mxu0 0.0
        %744 = vmatpush1.msra.mxu0 0.0
        %745 = vmatprep.subr.mxu0 0.0
        %746 = vmatpush1.msra.mxu0 0.0
        %747 = vmatprep.subr.mxu0 0.0
        %748 = vmatpush1.msra.mxu0 0.0
        %749 = vmatprep.subr.mxu0 0.0
        %750 = vmatpush1.msra.mxu0 0.0
        %751 = vmatprep.subr.mxu0 0.0
        %752 = vmatpush1.msra.mxu0 0.0
        %753 = vmatprep.subr.mxu0 0.0
        %754 = vmatpush1.msra.mxu0 0.0
        %755 = vmatprep.subr.mxu0 0.0
        %756 = vmatpush1.msra.mxu0 0.0
        %757 = vmatprep.subr.mxu0 0.0
        %758 = vmatpush1.msra.mxu0 0.0
        %759 = vmatprep.subr.mxu0 0.0
        %760 = vmatpush1.msra.mxu0 0.0
        %761 = vmatprep.subr.mxu0 0.0
        %762 = vmatpush1.msra.mxu0 0.0
        %763 = vmatprep.subr.mxu0 0.0
        %764 = vmatpush1.msra.mxu0 0.0
        %765 = vmatprep.subr.mxu0 0.0
        %766 = vmatpush1.msra.mxu0 0.0
        %767 = vmatprep.subr.mxu0 0.0
        %768 = vmatpush1.msra.mxu0 0.0
        %769 = vmatprep.subr.mxu0 0.0
        %770 = vmatpush1.msra.mxu0 0.0
        %771 = vmatprep.subr.mxu0 0.0
        %772 = vmatpush1.msra.mxu0 0.0
        %773 = vmatprep.mubr.f32.mxu0 0.0
        %774 = vmatmul.mubr.f32.gmra.mrb[0].mxu0 %v707
        %v775 = vpop.f32.mrb[0].mxu0
        %v776 = vadd.f32 0.0, %v775
        %v777 = vpop.f32.mrb[0].mxu0
        %778 = vdwg.mxu0
        %v780 = vsel %vm550, %v694, 0
        %782 = vmatprep.subr.mxu0 0.0
        %783 = vmatpush1.msra.mxu0 %v699
        %784 = vmatprep.subr.mxu0 0.0
        %785 = vmatpush1.msra.mxu0 %v700
        %786 = vmatprep.subr.mxu0 0.0
        %787 = vmatpush1.msra.mxu0 0.0
        %788 = vmatprep.subr.mxu0 0.0
        %789 = vmatpush1.msra.mxu0 0.0
        %790 = vmatprep.subr.mxu0 0.0
        %791 = vmatpush1.msra.mxu0 0.0
        %792 = vmatprep.subr.mxu0 0.0
        %793 = vmatpush1.msra.mxu0 0.0
        %794 = vmatprep.subr.mxu0 0.0
        %795 = vmatpush1.msra.mxu0 0.0
        %796 = vmatprep.subr.mxu0 0.0
        %797 = vmatpush1.msra.mxu0 0.0
        %798 = vmatprep.subr.mxu0 0.0
        %799 = vmatpush1.msra.mxu0 0.0
        %800 = vmatprep.subr.mxu0 0.0
        %801 = vmatpush1.msra.mxu0 0.0
        %802 = vmatprep.subr.mxu0 0.0
        %803 = vmatpush1.msra.mxu0 0.0
        %804 = vmatprep.subr.mxu0 0.0
        %805 = vmatpush1.msra.mxu0 0.0
        %806 = vmatprep.subr.mxu0 0.0
        %807 = vmatpush1.msra.mxu0 0.0
        %808 = vmatprep.subr.mxu0 0.0
        %809 = vmatpush1.msra.mxu0 0.0
        %810 = vmatprep.subr.mxu0 0.0
        %811 = vmatpush1.msra.mxu0 0.0
        %812 = vmatprep.subr.mxu0 0.0
        %813 = vmatpush1.msra.mxu0 0.0
        %814 = vmatprep.subr.mxu0 0.0
        %815 = vmatpush1.msra.mxu0 0.0
        %816 = vmatprep.subr.mxu0 0.0
        %817 = vmatpush1.msra.mxu0 0.0
        %818 = vmatprep.subr.mxu0 0.0
        %819 = vmatpush1.msra.mxu0 0.0
        %820 = vmatprep.subr.mxu0 0.0
        %821 = vmatpush1.msra.mxu0 0.0
        %822 = vmatprep.subr.mxu0 0.0
        %823 = vmatpush1.msra.mxu0 0.0
        %824 = vmatprep.subr.mxu0 0.0
        %825 = vmatpush1.msra.mxu0 0.0
        %826 = vmatprep.subr.mxu0 0.0
        %827 = vmatpush1.msra.mxu0 0.0
        %828 = vmatprep.subr.mxu0 0.0
        %829 = vmatpush1.msra.mxu0 0.0
        %830 = vmatprep.subr.mxu0 0.0
        %831 = vmatpush1.msra.mxu0 0.0
        %832 = vmatprep.subr.mxu0 0.0
        %833 = vmatpush1.msra.mxu0 0.0
        %834 = vmatprep.subr.mxu0 0.0
        %835 = vmatpush1.msra.mxu0 0.0
        %836 = vmatprep.subr.mxu0 0.0
        %837 = vmatpush1.msra.mxu0 0.0
        %838 = vmatprep.subr.mxu0 0.0
        %839 = vmatpush1.msra.mxu0 0.0
        %840 = vmatprep.subr.mxu0 0.0
        %841 = vmatpush1.msra.mxu0 0.0
        %842 = vmatprep.subr.mxu0 0.0
        %843 = vmatpush1.msra.mxu0 0.0
        %844 = vmatprep.subr.mxu0 0.0
        %845 = vmatpush1.msra.mxu0 0.0
        %846 = vmatprep.mubr.f32.mxu0 0.0
        %847 = vmatmul.mubr.f32.gmra.mrb[0].mxu0 %v780
        %v848 = vpop.f32.mrb[0].mxu0
        %v849 = vadd.f32 0.0, %v848
        %v850 = vpop.f32.mrb[0].mxu0
        %851 = vdwg.mxu0
        %v852 = vadd.f32 %v621, %v694
        %v854 = vsel %vm550, %v852, 0
        %856 = vmatprep.subr.mxu0 0.0
        %857 = vmatpush1.msra.mxu0 %v701
        %858 = vmatprep.subr.mxu0 0.0
        %859 = vmatpush1.msra.mxu0 %v702
        %860 = vmatprep.subr.mxu0 0.0
        %861 = vmatpush1.msra.mxu0 0.0
        %862 = vmatprep.subr.mxu0 0.0
        %863 = vmatpush1.msra.mxu0 0.0
        %864 = vmatprep.subr.mxu0 0.0
        %865 = vmatpush1.msra.mxu0 0.0
        %866 = vmatprep.subr.mxu0 0.0
        %867 = vmatpush1.msra.mxu0 0.0
        %868 = vmatprep.subr.mxu0 0.0
        %869 = vmatpush1.msra.mxu0 0.0
        %870 = vmatprep.subr.mxu0 0.0
        %871 = vmatpush1.msra.mxu0 0.0
        %872 = vmatprep.subr.mxu0 0.0
        %873 = vmatpush1.msra.mxu0 0.0
        %874 = vmatprep.subr.mxu0 0.0
        %875 = vmatpush1.msra.mxu0 0.0
        %876 = vmatprep.subr.mxu0 0.0
        %877 = vmatpush1.msra.mxu0 0.0
        %878 = vmatprep.subr.mxu0 0.0
        %879 = vmatpush1.msra.mxu0 0.0
        %880 = vmatprep.subr.mxu0 0.0
        %881 = vmatpush1.msra.mxu0 0.0
        %882 = vmatprep.subr.mxu0 0.0
        %883 = vmatpush1.msra.mxu0 0.0
        %884 = vmatprep.subr.mxu0 0.0
        %885 = vmatpush1.msra.mxu0 0.0
        %886 = vmatprep.subr.mxu0 0.0
        %887 = vmatpush1.msra.mxu0 0.0
        %888 = vmatprep.subr.mxu0 0.0
        %889 = vmatpush1.msra.mxu0 0.0
        %890 = vmatprep.subr.mxu0 0.0
        %891 = vmatpush1.msra.mxu0 0.0
        %892 = vmatprep.subr.mxu0 0.0
        %893 = vmatpush1.msra.mxu0 0.0
        %894 = vmatprep.subr.mxu0 0.0
        %895 = vmatpush1.msra.mxu0 0.0
        %896 = vmatprep.subr.mxu0 0.0
        %897 = vmatpush1.msra.mxu0 0.0
        %898 = vmatprep.subr.mxu0 0.0
        %899 = vmatpush1.msra.mxu0 0.0
        %900 = vmatprep.subr.mxu0 0.0
        %901 = vmatpush1.msra.mxu0 0.0
        %902 = vmatprep.subr.mxu0 0.0
        %903 = vmatpush1.msra.mxu0 0.0
        %904 = vmatprep.subr.mxu0 0.0
        %905 = vmatpush1.msra.mxu0 0.0
        %906 = vmatprep.subr.mxu0 0.0
        %907 = vmatpush1.msra.mxu0 0.0
        %908 = vmatprep.subr.mxu0 0.0
        %909 = vmatpush1.msra.mxu0 0.0
        %910 = vmatprep.subr.mxu0 0.0
        %911 = vmatpush1.msra.mxu0 0.0
        %912 = vmatprep.subr.mxu0 0.0
        %913 = vmatpush1.msra.mxu0 0.0
        %914 = vmatprep.subr.mxu0 0.0
        %915 = vmatpush1.msra.mxu0 0.0
        %916 = vmatprep.subr.mxu0 0.0
        %917 = vmatpush1.msra.mxu0 0.0
        %918 = vmatprep.subr.mxu0 0.0
        %919 = vmatpush1.msra.mxu0 0.0
        %920 = vmatprep.mubr.f32.mxu0 0.0
        %921 = vmatmul.mubr.f32.gmra.mrb[0].mxu0 %v854
        %v922 = vpop.f32.mrb[0].mxu0
        %v923 = vadd.f32 0.0, %v922
        %v924 = vpop.f32.mrb[0].mxu0
        %925 = vdwg.mxu0
        %v926 = vsub.f32 %v776, %v849
        %v927 = vsub.f32 %v923, %v776
        %v928 = vsub.f32 %v927, %v849
        %v929 = vld [vmem:[%s538] sm:$0xff]
        %v930 = vld [vmem:[%s544] sm:$0xff]
        %v931 = vmul.f32 %v926, %v929
        %v932 = vmul.f32 %v928, %v930
        %v933 = vsub.f32 %v931, %v932
        %v934 = vmul.f32 %v926, %v930
        %v935 = vmul.f32 %v928, %v929
        %v936 = vadd.f32 %v934, %v935
        %vm937 = vcmask 64512
        %v939 = vsel %vm937, %v933, 0
        %941 = vmatprep.subr.mxu0 0.0
        %942 = vmatpush1.msra.mxu0 %v703
        %943 = vmatprep.subr.mxu0 0.0
        %944 = vmatpush1.msra.mxu0 0.0
        %945 = vmatprep.subr.mxu0 0.0
        %946 = vmatpush1.msra.mxu0 0.0
        %947 = vmatprep.subr.mxu0 0.0
        %948 = vmatpush1.msra.mxu0 0.0
        %949 = vmatprep.subr.mxu0 0.0
        %950 = vmatpush1.msra.mxu0 0.0
        %951 = vmatprep.subr.mxu0 0.0
        %952 = vmatpush1.msra.mxu0 0.0
        %953 = vmatprep.subr.mxu0 0.0
        %954 = vmatpush1.msra.mxu0 0.0
        %955 = vmatprep.subr.mxu0 0.0
        %956 = vmatpush1.msra.mxu0 0.0
        %957 = vmatprep.subr.mxu0 0.0
        %958 = vmatpush1.msra.mxu0 0.0
        %959 = vmatprep.subr.mxu0 0.0
        %960 = vmatpush1.msra.mxu0 0.0
        %961 = vmatprep.subr.mxu0 0.0
        %962 = vmatpush1.msra.mxu0 0.0
        %963 = vmatprep.subr.mxu0 0.0
        %964 = vmatpush1.msra.mxu0 0.0
        %965 = vmatprep.subr.mxu0 0.0
        %966 = vmatpush1.msra.mxu0 0.0
        %967 = vmatprep.subr.mxu0 0.0
        %968 = vmatpush1.msra.mxu0 0.0
        %969 = vmatprep.subr.mxu0 0.0
        %970 = vmatpush1.msra.mxu0 0.0
        %971 = vmatprep.subr.mxu0 0.0
        %972 = vmatpush1.msra.mxu0 0.0
        %973 = vmatprep.subr.mxu0 0.0
        %974 = vmatpush1.msra.mxu0 0.0
        %975 = vmatprep.subr.mxu0 0.0
        %976 = vmatpush1.msra.mxu0 0.0
        %977 = vmatprep.subr.mxu0 0.0
        %978 = vmatpush1.msra.mxu0 0.0
        %979 = vmatprep.subr.mxu0 0.0
        %980 = vmatpush1.msra.mxu0 0.0
        %981 = vmatprep.subr.mxu0 0.0
        %982 = vmatpush1.msra.mxu0 0.0
        %983 = vmatprep.subr.mxu0 0.0
        %984 = vmatpush1.msra.mxu0 0.0
        %985 = vmatprep.subr.mxu0 0.0
        %986 = vmatpush1.msra.mxu0 0.0
        %987 = vmatprep.subr.mxu0 0.0
        %988 = vmatpush1.msra.mxu0 0.0
        %989 = vmatprep.subr.mxu0 0.0
        %990 = vmatpush1.msra.mxu0 0.0
        %991 = vmatprep.subr.mxu0 0.0
        %992 = vmatpush1.msra.mxu0 0.0
        %993 = vmatprep.subr.mxu0 0.0
        %994 = vmatpush1.msra.mxu0 0.0
        %995 = vmatprep.subr.mxu0 0.0
        %996 = vmatpush1.msra.mxu0 0.0
        %997 = vmatprep.subr.mxu0 0.0
        %998 = vmatpush1.msra.mxu0 0.0
        %999 = vmatprep.subr.mxu0 0.0
        %1000 = vmatpush1.msra.mxu0 0.0
        %1001 = vmatprep.subr.mxu0 0.0
        %1002 = vmatpush1.msra.mxu0 0.0
        %1003 = vmatprep.subr.mxu0 0.0
        %1004 = vmatpush1.msra.mxu0 0.0
        %1005 = vmatprep.mubr.f32.mxu0 0.0
        %1006 = vmatmul.mubr.f32.gmra.mrb[0].mxu0 %v939
        %v1007 = vpop.f32.mrb[0].mxu0
        %v1008 = vadd.f32 0.0, %v1007
        %v1009 = vpop.f32.mrb[0].mxu0
        %1010 = vdwg.mxu0
        %v1012 = vsel %vm937, %v936, 0
        %1014 = vmatprep.subr.mxu0 0.0
        %1015 = vmatpush1.msra.mxu0 %v704
        %1016 = vmatprep.subr.mxu0 0.0
        %1017 = vmatpush1.msra.mxu0 0.0
        %1018 = vmatprep.subr.mxu0 0.0
        %1019 = vmatpush1.msra.mxu0 0.0
        %1020 = vmatprep.subr.mxu0 0.0
        %1021 = vmatpush1.msra.mxu0 0.0
        %1022 = vmatprep.subr.mxu0 0.0
        %1023 = vmatpush1.msra.mxu0 0.0
        %1024 = vmatprep.subr.mxu0 0.0
        %1025 = vmatpush1.msra.mxu0 0.0
        %1026 = vmatprep.subr.mxu0 0.0
        %1027 = vmatpush1.msra.mxu0 0.0
        %1028 = vmatprep.subr.mxu0 0.0
        %1029 = vmatpush1.msra.mxu0 0.0
        %1030 = vmatprep.subr.mxu0 0.0
        %1031 = vmatpush1.msra.mxu0 0.0
        %1032 = vmatprep.subr.mxu0 0.0
        %1033 = vmatpush1.msra.mxu0 0.0
        %1034 = vmatprep.subr.mxu0 0.0
        %1035 = vmatpush1.msra.mxu0 0.0
        %1036 = vmatprep.subr.mxu0 0.0
        %1037 = vmatpush1.msra.mxu0 0.0
        %1038 = vmatprep.subr.mxu0 0.0
        %1039 = vmatpush1.msra.mxu0 0.0
        %1040 = vmatprep.subr.mxu0 0.0
        %1041 = vmatpush1.msra.mxu0 0.0
        %1042 = vmatprep.subr.mxu0 0.0
        %1043 = vmatpush1.msra.mxu0 0.0
        %1044 = vmatprep.subr.mxu0 0.0
        %1045 = vmatpush1.msra.mxu0 0.0
        %1046 = vmatprep.subr.mxu0 0.0
        %1047 = vmatpush1.msra.mxu0 0.0
        %1048 = vmatprep.subr.mxu0 0.0
        %1049 = vmatpush1.msra.mxu0 0.0
        %1050 = vmatprep.subr.mxu0 0.0
        %1051 = vmatpush1.msra.mxu0 0.0
        %1052 = vmatprep.subr.mxu0 0.0
        %1053 = vmatpush1.msra.mxu0 0.0
        %1054 = vmatprep.subr.mxu0 0.0
        %1055 = vmatpush1.msra.mxu0 0.0
        %1056 = vmatprep.subr.mxu0 0.0
        %1057 = vmatpush1.msra.mxu0 0.0
        %1058 = vmatprep.subr.mxu0 0.0
        %1059 = vmatpush1.msra.mxu0 0.0
        %1060 = vmatprep.subr.mxu0 0.0
        %1061 = vmatpush1.msra.mxu0 0.0
        %1062 = vmatprep.subr.mxu0 0.0
        %1063 = vmatpush1.msra.mxu0 0.0
        %1064 = vmatprep.subr.mxu0 0.0
        %1065 = vmatpush1.msra.mxu0 0.0
        %1066 = vmatprep.subr.mxu0 0.0
        %1067 = vmatpush1.msra.mxu0 0.0
        %1068 = vmatprep.subr.mxu0 0.0
        %1069 = vmatpush1.msra.mxu0 0.0
        %1070 = vmatprep.subr.mxu0 0.0
        %1071 = vmatpush1.msra.mxu0 0.0
        %1072 = vmatprep.subr.mxu0 0.0
        %1073 = vmatpush1.msra.mxu0 0.0
        %1074 = vmatprep.subr.mxu0 0.0
        %1075 = vmatpush1.msra.mxu0 0.0
        %1076 = vmatprep.subr.mxu0 0.0
        %1077 = vmatpush1.msra.mxu0 0.0
        %1078 = vmatprep.mubr.f32.mxu0 0.0
        %1079 = vmatmul.mubr.f32.gmra.mrb[0].mxu0 %v1012
        %v1080 = vpop.f32.mrb[0].mxu0
        %v1081 = vadd.f32 0.0, %v1080
        %v1082 = vpop.f32.mrb[0].mxu0
        %1083 = vdwg.mxu0
        %v1084 = vadd.f32 %v933, %v936
        %v1086 = vsel %vm937, %v1084, 0
        %1088 = vmatprep.subr.mxu0 0.0
        %1089 = vmatpush1.msra.mxu0 %v705
        %1090 = vmatprep.subr.mxu0 0.0
        %1091 = vmatpush1.msra.mxu0 0.0
        %1092 = vmatprep.subr.mxu0 0.0
        %1093 = vmatpush1.msra.mxu0 0.0
        %1094 = vmatprep.subr.mxu0 0.0
        %1095 = vmatpush1.msra.mxu0 0.0
        %1096 = vmatprep.subr.mxu0 0.0
        %1097 = vmatpush1.msra.mxu0 0.0
        %1098 = vmatprep.subr.mxu0 0.0
        %1099 = vmatpush1.msra.mxu0 0.0
        %1100 = vmatprep.subr.mxu0 0.0
        %1101 = vmatpush1.msra.mxu0 0.0
        %1102 = vmatprep.subr.mxu0 0.0
        %1103 = vmatpush1.msra.mxu0 0.0
        %1104 = vmatprep.subr.mxu0 0.0
        %1105 = vmatpush1.msra.mxu0 0.0
        %1106 = vmatprep.subr.mxu0 0.0
        %1107 = vmatpush1.msra.mxu0 0.0
        %1108 = vmatprep.subr.mxu0 0.0
        %1109 = vmatpush1.msra.mxu0 0.0
        %1110 = vmatprep.subr.mxu0 0.0
        %1111 = vmatpush1.msra.mxu0 0.0
        %1112 = vmatprep.subr.mxu0 0.0
        %1113 = vmatpush1.msra.mxu0 0.0
        %1114 = vmatprep.subr.mxu0 0.0
        %1115 = vmatpush1.msra.mxu0 0.0
        %1116 = vmatprep.subr.mxu0 0.0
        %1117 = vmatpush1.msra.mxu0 0.0
        %1118 = vmatprep.subr.mxu0 0.0
        %1119 = vmatpush1.msra.mxu0 0.0
        %1120 = vmatprep.subr.mxu0 0.0
        %1121 = vmatpush1.msra.mxu0 0.0
        %1122 = vmatprep.subr.mxu0 0.0
        %1123 = vmatpush1.msra.mxu0 0.0
        %1124 = vmatprep.subr.mxu0 0.0
        %1125 = vmatpush1.msra.mxu0 0.0
        %1126 = vmatprep.subr.mxu0 0.0
        %1127 = vmatpush1.msra.mxu0 0.0
        %1128 = vmatprep.subr.mxu0 0.0
        %1129 = vmatpush1.msra.mxu0 0.0
        %1130 = vmatprep.subr.mxu0 0.0
        %1131 = vmatpush1.msra.mxu0 0.0
        %1132 = vmatprep.subr.mxu0 0.0
        %1133 = vmatpush1.msra.mxu0 0.0
        %1134 = vmatprep.subr.mxu0 0.0
        %1135 = vmatpush1.msra.mxu0 0.0
        %1136 = vmatprep.subr.mxu0 0.0
        %1137 = vmatpush1.msra.mxu0 0.0
        %1138 = vmatprep.subr.mxu0 0.0
        %1139 = vmatpush1.msra.mxu0 0.0
        %1140 = vmatprep.subr.mxu0 0.0
        %1141 = vmatpush1.msra.mxu0 0.0
        %1142 = vmatprep.subr.mxu0 0.0
        %1143 = vmatpush1.msra.mxu0 0.0
        %1144 = vmatprep.subr.mxu0 0.0
        %1145 = vmatpush1.msra.mxu0 0.0
        %1146 = vmatprep.subr.mxu0 0.0
        %1147 = vmatpush1.msra.mxu0 0.0
        %1148 = vmatprep.subr.mxu0 0.0
        %1149 = vmatpush1.msra.mxu0 0.0
        %1150 = vmatprep.subr.mxu0 0.0
        %1151 = vmatpush1.msra.mxu0 0.0
        %1152 = vmatprep.mubr.f32.mxu0 0.0
        %1153 = vmatmul.mubr.f32.gmra.mrb[0].mxu0 %v1086
        %v1154 = vpop.f32.mrb[0].mxu0
        %v1155 = vadd.f32 0.0, %v1154
        %v1156 = vpop.f32.mrb[0].mxu0
        %1157 = vdwg.mxu0
        %v1158 = vadd.f32 %v1008, %v1081
        %1159 = vst.msk [vmem:[#allocation2] sm:$0xff] %vm550, %v1158
        %v1160 = vsub.f32 %v1155, %v1008
        %v1161 = vadd.f32 %v1160, %v1081
        %1162 = vst.msk [vmem:[#allocation3] sm:$0xff] %vm550, %v1161
        %1163 = vrot.lane.b32.xlu0 %v621, 112
        %v1164 = vpop.permute.xlu0 %1163
        %v1165 = vsel %vm550, %v1164, 0
        %1167 = vmatprep.subr.mxu0 0.0
        %1168 = vmatpush1.msra.mxu0 %v697
        %1169 = vmatprep.subr.mxu0 0.0
        %1170 = vmatpush1.msra.mxu0 %v698
        %1171 = vmatprep.subr.mxu0 0.0
        %1172 = vmatpush1.msra.mxu0 0.0
        %1173 = vmatprep.subr.mxu0 0.0
        %1174 = vmatpush1.msra.mxu0 0.0
        %1175 = vmatprep.subr.mxu0 0.0
        %1176 = vmatpush1.msra.mxu0 0.0
        %1177 = vmatprep.subr.mxu0 0.0
        %1178 = vmatpush1.msra.mxu0 0.0
        %1179 = vmatprep.subr.mxu0 0.0
        %1180 = vmatpush1.msra.mxu0 0.0
        %1181 = vmatprep.subr.mxu0 0.0
        %1182 = vmatpush1.msra.mxu0 0.0
        %1183 = vmatprep.subr.mxu0 0.0
        %1184 = vmatpush1.msra.mxu0 0.0
        %1185 = vmatprep.subr.mxu0 0.0
        %1186 = vmatpush1.msra.mxu0 0.0
        %1187 = vmatprep.subr.mxu0 0.0
        %1188 = vmatpush1.msra.mxu0 0.0
        %1189 = vmatprep.subr.mxu0 0.0
        %1190 = vmatpush1.msra.mxu0 0.0
        %1191 = vmatprep.subr.mxu0 0.0
        %1192 = vmatpush1.msra.mxu0 0.0
        %1193 = vmatprep.subr.mxu0 0.0
        %1194 = vmatpush1.msra.mxu0 0.0
        %1195 = vmatprep.subr.mxu0 0.0
        %1196 = vmatpush1.msra.mxu0 0.0
        %1197 = vmatprep.subr.mxu0 0.0
        %1198 = vmatpush1.msra.mxu0 0.0
        %1199 = vmatprep.subr.mxu0 0.0
        %1200 = vmatpush1.msra.mxu0 0.0
        %1201 = vmatprep.subr.mxu0 0.0
        %1202 = vmatpush1.msra.mxu0 0.0
        %1203 = vmatprep.subr.mxu0 0.0
        %1204 = vmatpush1.msra.mxu0 0.0
        %1205 = vmatprep.subr.mxu0 0.0
        %1206 = vmatpush1.msra.mxu0 0.0
        %1207 = vmatprep.subr.mxu0 0.0
        %1208 = vmatpush1.msra.mxu0 0.0
        %1209 = vmatprep.subr.mxu0 0.0
        %1210 = vmatpush1.msra.mxu0 0.0
        %1211 = vmatprep.subr.mxu0 0.0
        %1212 = vmatpush1.msra.mxu0 0.0
        %1213 = vmatprep.subr.mxu0 0.0
        %1214 = vmatpush1.msra.mxu0 0.0
        %1215 = vmatprep.subr.mxu0 0.0
        %1216 = vmatpush1.msra.mxu0 0.0
        %1217 = vmatprep.subr.mxu0 0.0
        %1218 = vmatpush1.msra.mxu0 0.0
        %1219 = vmatprep.subr.mxu0 0.0
        %1220 = vmatpush1.msra.mxu0 0.0
        %1221 = vmatprep.subr.mxu0 0.0
        %1222 = vmatpush1.msra.mxu0 0.0
        %1223 = vmatprep.subr.mxu0 0.0
        %1224 = vmatpush1.msra.mxu0 0.0
        %1225 = vmatprep.subr.mxu0 0.0
        %1226 = vmatpush1.msra.mxu0 0.0
        %1227 = vmatprep.subr.mxu0 0.0
        %1228 = vmatpush1.msra.mxu0 0.0
        %1229 = vmatprep.subr.mxu0 0.0
        %1230 = vmatpush1.msra.mxu0 0.0
        %1231 = vmatprep.mubr.f32.mxu0 0.0
        %1232 = vmatmul.mubr.f32.gmra.mrb[0].mxu0 %v1165
        %v1233 = vpop.f32.mrb[0].mxu0
        %v1234 = vadd.f32 0.0, %v1233
        %v1235 = vpop.f32.mrb[0].mxu0
        %1236 = vdwg.mxu0
        %1237 = vrot.lane.b32.xlu0 %v694, 112
        %v1238 = vpop.permute.xlu0 %1237
        %v1239 = vsel %vm550, %v1238, 0
        %1241 = vmatprep.subr.mxu0 0.0
        %1242 = vmatpush1.msra.mxu0 %v699
        %1243 = vmatprep.subr.mxu0 0.0
        %1244 = vmatpush1.msra.mxu0 %v700
        %1245 = vmatprep.subr.mxu0 0.0
        %1246 = vmatpush1.msra.mxu0 0.0
        %1247 = vmatprep.subr.mxu0 0.0
        %1248 = vmatpush1.msra.mxu0 0.0
        %1249 = vmatprep.subr.mxu0 0.0
        %1250 = vmatpush1.msra.mxu0 0.0
        %1251 = vmatprep.subr.mxu0 0.0
        %1252 = vmatpush1.msra.mxu0 0.0
        %1253 = vmatprep.subr.mxu0 0.0
        %1254 = vmatpush1.msra.mxu0 0.0
        %1255 = vmatprep.subr.mxu0 0.0
        %1256 = vmatpush1.msra.mxu0 0.0
        %1257 = vmatprep.subr.mxu0 0.0
        %1258 = vmatpush1.msra.mxu0 0.0
        %1259 = vmatprep.subr.mxu0 0.0
        %1260 = vmatpush1.msra.mxu0 0.0
        %1261 = vmatprep.subr.mxu0 0.0
        %1262 = vmatpush1.msra.mxu0 0.0
        %1263 = vmatprep.subr.mxu0 0.0
        %1264 = vmatpush1.msra.mxu0 0.0
        %1265 = vmatprep.subr.mxu0 0.0
        %1266 = vmatpush1.msra.mxu0 0.0
        %1267 = vmatprep.subr.mxu0 0.0
        %1268 = vmatpush1.msra.mxu0 0.0
        %1269 = vmatprep.subr.mxu0 0.0
        %1270 = vmatpush1.msra.mxu0 0.0
        %1271 = vmatprep.subr.mxu0 0.0
        %1272 = vmatpush1.msra.mxu0 0.0
        %1273 = vmatprep.subr.mxu0 0.0
        %1274 = vmatpush1.msra.mxu0 0.0
        %1275 = vmatprep.subr.mxu0 0.0
        %1276 = vmatpush1.msra.mxu0 0.0
        %1277 = vmatprep.subr.mxu0 0.0
        %1278 = vmatpush1.msra.mxu0 0.0
        %1279 = vmatprep.subr.mxu0 0.0
        %1280 = vmatpush1.msra.mxu0 0.0
        %1281 = vmatprep.subr.mxu0 0.0
        %1282 = vmatpush1.msra.mxu0 0.0
        %1283 = vmatprep.subr.mxu0 0.0
        %1284 = vmatpush1.msra.mxu0 0.0
        %1285 = vmatprep.subr.mxu0 0.0
        %1286 = vmatpush1.msra.mxu0 0.0
        %1287 = vmatprep.subr.mxu0 0.0
        %1288 = vmatpush1.msra.mxu0 0.0
        %1289 = vmatprep.subr.mxu0 0.0
        %1290 = vmatpush1.msra.mxu0 0.0
        %1291 = vmatprep.subr.mxu0 0.0
        %1292 = vmatpush1.msra.mxu0 0.0
        %1293 = vmatprep.subr.mxu0 0.0
        %1294 = vmatpush1.msra.mxu0 0.0
        %1295 = vmatprep.subr.mxu0 0.0
        %1296 = vmatpush1.msra.mxu0 0.0
        %1297 = vmatprep.subr.mxu0 0.0
        %1298 = vmatpush1.msra.mxu0 0.0
        %1299 = vmatprep.subr.mxu0 0.0
        %1300 = vmatpush1.msra.mxu0 0.0
        %1301 = vmatprep.subr.mxu0 0.0
        %1302 = vmatpush1.msra.mxu0 0.0
        %1303 = vmatprep.subr.mxu0 0.0
        %1304 = vmatpush1.msra.mxu0 0.0
        %1305 = vmatprep.mubr.f32.mxu0 0.0
        %1306 = vmatmul.mubr.f32.gmra.mrb[0].mxu0 %v1239
        %v1307 = vpop.f32.mrb[0].mxu0
        %v1308 = vadd.f32 0.0, %v1307
        %v1309 = vpop.f32.mrb[0].mxu0
        %1310 = vdwg.mxu0
        %1311 = vrot.lane.b32.xlu0 %v852, 112
        %v1312 = vpop.permute.xlu0 %1311
        %v1313 = vsel %vm550, %v1312, 0
        %1315 = vmatprep.subr.mxu0 0.0
        %1316 = vmatpush1.msra.mxu0 %v701
        %1317 = vmatprep.subr.mxu0 0.0
        %1318 = vmatpush1.msra.mxu0 %v702
        %1319 = vmatprep.subr.mxu0 0.0
        %1320 = vmatpush1.msra.mxu0 0.0
        %1321 = vmatprep.subr.mxu0 0.0
        %1322 = vmatpush1.msra.mxu0 0.0
        %1323 = vmatprep.subr.mxu0 0.0
        %1324 = vmatpush1.msra.mxu0 0.0
        %1325 = vmatprep.subr.mxu0 0.0
        %1326 = vmatpush1.msra.mxu0 0.0
        %1327 = vmatprep.subr.mxu0 0.0
        %1328 = vmatpush1.msra.mxu0 0.0
        %1329 = vmatprep.subr.mxu0 0.0
        %1330 = vmatpush1.msra.mxu0 0.0
        %1331 = vmatprep.subr.mxu0 0.0
        %1332 = vmatpush1.msra.mxu0 0.0
        %1333 = vmatprep.subr.mxu0 0.0
        %1334 = vmatpush1.msra.mxu0 0.0
        %1335 = vmatprep.subr.mxu0 0.0
        %1336 = vmatpush1.msra.mxu0 0.0
        %1337 = vmatprep.subr.mxu0 0.0
        %1338 = vmatpush1.msra.mxu0 0.0
        %1339 = vmatprep.subr.mxu0 0.0
        %1340 = vmatpush1.msra.mxu0 0.0
        %1341 = vmatprep.subr.mxu0 0.0
        %1342 = vmatpush1.msra.mxu0 0.0
        %1343 = vmatprep.subr.mxu0 0.0
        %1344 = vmatpush1.msra.mxu0 0.0
        %1345 = vmatprep.subr.mxu0 0.0
        %1346 = vmatpush1.msra.mxu0 0.0
        %1347 = vmatprep.subr.mxu0 0.0
        %1348 = vmatpush1.msra.mxu0 0.0
        %1349 = vmatprep.subr.mxu0 0.0
        %1350 = vmatpush1.msra.mxu0 0.0
        %1351 = vmatprep.subr.mxu0 0.0
        %1352 = vmatpush1.msra.mxu0 0.0
        %1353 = vmatprep.subr.mxu0 0.0
        %1354 = vmatpush1.msra.mxu0 0.0
        %1355 = vmatprep.subr.mxu0 0.0
        %1356 = vmatpush1.msra.mxu0 0.0
        %1357 = vmatprep.subr.mxu0 0.0
        %1358 = vmatpush1.msra.mxu0 0.0
        %1359 = vmatprep.subr.mxu0 0.0
        %1360 = vmatpush1.msra.mxu0 0.0
        %1361 = vmatprep.subr.mxu0 0.0
        %1362 = vmatpush1.msra.mxu0 0.0
        %1363 = vmatprep.subr.mxu0 0.0
        %1364 = vmatpush1.msra.mxu0 0.0
        %1365 = vmatprep.subr.mxu0 0.0
        %1366 = vmatpush1.msra.mxu0 0.0
        %1367 = vmatprep.subr.mxu0 0.0
        %1368 = vmatpush1.msra.mxu0 0.0
        %1369 = vmatprep.subr.mxu0 0.0
        %1370 = vmatpush1.msra.mxu0 0.0
        %1371 = vmatprep.subr.mxu0 0.0
        %1372 = vmatpush1.msra.mxu0 0.0
        %1373 = vmatprep.subr.mxu0 0.0
        %1374 = vmatpush1.msra.mxu0 0.0
        %1375 = vmatprep.subr.mxu0 0.0
        %1376 = vmatpush1.msra.mxu0 0.0
        %1377 = vmatprep.subr.mxu0 0.0
        %1378 = vmatpush1.msra.mxu0 0.0
        %1379 = vmatprep.mubr.f32.mxu0 0.0
        %1380 = vmatmul.mubr.f32.gmra.mrb[0].mxu0 %v1313
        %v1381 = vpop.f32.mrb[0].mxu0
        %v1382 = vadd.f32 0.0, %v1381
        %v1383 = vpop.f32.mrb[0].mxu0
        %1384 = vdwg.mxu0
        %v1385 = vsub.f32 %v1234, %v1308
        %v1386 = vsub.f32 %v1382, %v1234
        %v1387 = vsub.f32 %v1386, %v1308
        %s1388 = scalar_lea.vmem %s538, 8
        %v1389 = vld [vmem:[%s1388] sm:$0xff]
        %s1390 = scalar_lea.vmem %s544, 8
        %v1391 = vld [vmem:[%s1390] sm:$0xff]
        %v1392 = vmul.f32 %v1385, %v1389
        %v1393 = vmul.f32 %v1387, %v1391
        %v1394 = vsub.f32 %v1392, %v1393
        %v1395 = vmul.f32 %v1385, %v1391
        %v1396 = vmul.f32 %v1387, %v1389
        %v1397 = vadd.f32 %v1395, %v1396
        %v1399 = vsel %vm937, %v1394, 0
        %1401 = vmatprep.subr.mxu0 0.0
        %1402 = vmatpush1.msra.mxu0 %v703
        %1403 = vmatprep.subr.mxu0 0.0
        %1404 = vmatpush1.msra.mxu0 0.0
        %1405 = vmatprep.subr.mxu0 0.0
        %1406 = vmatpush1.msra.mxu0 0.0
        %1407 = vmatprep.subr.mxu0 0.0
        %1408 = vmatpush1.msra.mxu0 0.0
        %1409 = vmatprep.subr.mxu0 0.0
        %1410 = vmatpush1.msra.mxu0 0.0
        %1411 = vmatprep.subr.mxu0 0.0
        %1412 = vmatpush1.msra.mxu0 0.0
        %1413 = vmatprep.subr.mxu0 0.0
        %1414 = vmatpush1.msra.mxu0 0.0
        %1415 = vmatprep.subr.mxu0 0.0
        %1416 = vmatpush1.msra.mxu0 0.0
        %1417 = vmatprep.subr.mxu0 0.0
        %1418 = vmatpush1.msra.mxu0 0.0
        %1419 = vmatprep.subr.mxu0 0.0
        %1420 = vmatpush1.msra.mxu0 0.0
        %1421 = vmatprep.subr.mxu0 0.0
        %1422 = vmatpush1.msra.mxu0 0.0
        %1423 = vmatprep.subr.mxu0 0.0
        %1424 = vmatpush1.msra.mxu0 0.0
        %1425 = vmatprep.subr.mxu0 0.0
        %1426 = vmatpush1.msra.mxu0 0.0
        %1427 = vmatprep.subr.mxu0 0.0
        %1428 = vmatpush1.msra.mxu0 0.0
        %1429 = vmatprep.subr.mxu0 0.0
        %1430 = vmatpush1.msra.mxu0 0.0
        %1431 = vmatprep.subr.mxu0 0.0
        %1432 = vmatpush1.msra.mxu0 0.0
        %1433 = vmatprep.subr.mxu0 0.0
        %1434 = vmatpush1.msra.mxu0 0.0
        %1435 = vmatprep.subr.mxu0 0.0
        %1436 = vmatpush1.msra.mxu0 0.0
        %1437 = vmatprep.subr.mxu0 0.0
        %1438 = vmatpush1.msra.mxu0 0.0
        %1439 = vmatprep.subr.mxu0 0.0
        %1440 = vmatpush1.msra.mxu0 0.0
        %1441 = vmatprep.subr.mxu0 0.0
        %1442 = vmatpush1.msra.mxu0 0.0
        %1443 = vmatprep.subr.mxu0 0.0
        %1444 = vmatpush1.msra.mxu0 0.0
        %1445 = vmatprep.subr.mxu0 0.0
        %1446 = vmatpush1.msra.mxu0 0.0
        %1447 = vmatprep.subr.mxu0 0.0
        %1448 = vmatpush1.msra.mxu0 0.0
        %1449 = vmatprep.subr.mxu0 0.0
        %1450 = vmatpush1.msra.mxu0 0.0
        %1451 = vmatprep.subr.mxu0 0.0
        %1452 = vmatpush1.msra.mxu0 0.0
        %1453 = vmatprep.subr.mxu0 0.0
        %1454 = vmatpush1.msra.mxu0 0.0
        %1455 = vmatprep.subr.mxu0 0.0
        %1456 = vmatpush1.msra.mxu0 0.0
        %1457 = vmatprep.subr.mxu0 0.0
        %1458 = vmatpush1.msra.mxu0 0.0
        %1459 = vmatprep.subr.mxu0 0.0
        %1460 = vmatpush1.msra.mxu0 0.0
        %1461 = vmatprep.subr.mxu0 0.0
        %1462 = vmatpush1.msra.mxu0 0.0
        %1463 = vmatprep.subr.mxu0 0.0
        %1464 = vmatpush1.msra.mxu0 0.0
        %1465 = vmatprep.mubr.f32.mxu0 0.0
        %1466 = vmatmul.mubr.f32.gmra.mrb[0].mxu0 %v1399
        %v1467 = vpop.f32.mrb[0].mxu0
        %v1468 = vadd.f32 0.0, %v1467
        %v1469 = vpop.f32.mrb[0].mxu0
        %1470 = vdwg.mxu0
        %v1472 = vsel %vm937, %v1397, 0
        %1474 = vmatprep.subr.mxu0 0.0
        %1475 = vmatpush1.msra.mxu0 %v704
        %1476 = vmatprep.subr.mxu0 0.0
        %1477 = vmatpush1.msra.mxu0 0.0
        %1478 = vmatprep.subr.mxu0 0.0
        %1479 = vmatpush1.msra.mxu0 0.0
        %1480 = vmatprep.subr.mxu0 0.0
        %1481 = vmatpush1.msra.mxu0 0.0
        %1482 = vmatprep.subr.mxu0 0.0
        %1483 = vmatpush1.msra.mxu0 0.0
        %1484 = vmatprep.subr.mxu0 0.0
        %1485 = vmatpush1.msra.mxu0 0.0
        %1486 = vmatprep.subr.mxu0 0.0
        %1487 = vmatpush1.msra.mxu0 0.0
        %1488 = vmatprep.subr.mxu0 0.0
        %1489 = vmatpush1.msra.mxu0 0.0
        %1490 = vmatprep.subr.mxu0 0.0
        %1491 = vmatpush1.msra.mxu0 0.0
        %1492 = vmatprep.subr.mxu0 0.0
        %1493 = vmatpush1.msra.mxu0 0.0
        %1494 = vmatprep.subr.mxu0 0.0
        %1495 = vmatpush1.msra.mxu0 0.0
        %1496 = vmatprep.subr.mxu0 0.0
        %1497 = vmatpush1.msra.mxu0 0.0
        %1498 = vmatprep.subr.mxu0 0.0
        %1499 = vmatpush1.msra.mxu0 0.0
        %1500 = vmatprep.subr.mxu0 0.0
        %1501 = vmatpush1.msra.mxu0 0.0
        %1502 = vmatprep.subr.mxu0 0.0
        %1503 = vmatpush1.msra.mxu0 0.0
        %1504 = vmatprep.subr.mxu0 0.0
        %1505 = vmatpush1.msra.mxu0 0.0
        %1506 = vmatprep.subr.mxu0 0.0
        %1507 = vmatpush1.msra.mxu0 0.0
        %1508 = vmatprep.subr.mxu0 0.0
        %1509 = vmatpush1.msra.mxu0 0.0
        %1510 = vmatprep.subr.mxu0 0.0
        %1511 = vmatpush1.msra.mxu0 0.0
        %1512 = vmatprep.subr.mxu0 0.0
        %1513 = vmatpush1.msra.mxu0 0.0
        %1514 = vmatprep.subr.mxu0 0.0
        %1515 = vmatpush1.msra.mxu0 0.0
        %1516 = vmatprep.subr.mxu0 0.0
        %1517 = vmatpush1.msra.mxu0 0.0
        %1518 = vmatprep.subr.mxu0 0.0
        %1519 = vmatpush1.msra.mxu0 0.0
        %1520 = vmatprep.subr.mxu0 0.0
        %1521 = vmatpush1.msra.mxu0 0.0
        %1522 = vmatprep.subr.mxu0 0.0
        %1523 = vmatpush1.msra.mxu0 0.0
        %1524 = vmatprep.subr.mxu0 0.0
        %1525 = vmatpush1.msra.mxu0 0.0
        %1526 = vmatprep.subr.mxu0 0.0
        %1527 = vmatpush1.msra.mxu0 0.0
        %1528 = vmatprep.subr.mxu0 0.0
        %1529 = vmatpush1.msra.mxu0 0.0
        %1530 = vmatprep.subr.mxu0 0.0
        %1531 = vmatpush1.msra.mxu0 0.0
        %1532 = vmatprep.subr.mxu0 0.0
        %1533 = vmatpush1.msra.mxu0 0.0
        %1534 = vmatprep.subr.mxu0 0.0
        %1535 = vmatpush1.msra.mxu0 0.0
        %1536 = vmatprep.subr.mxu0 0.0
        %1537 = vmatpush1.msra.mxu0 0.0
        %1538 = vmatprep.mubr.f32.mxu0 0.0
        %1539 = vmatmul.mubr.f32.gmra.mrb[0].mxu0 %v1472
        %v1540 = vpop.f32.mrb[0].mxu0
        %v1541 = vadd.f32 0.0, %v1540
        %v1542 = vpop.f32.mrb[0].mxu0
        %1543 = vdwg.mxu0
        %v1544 = vadd.f32 %v1394, %v1397
        %v1546 = vsel %vm937, %v1544, 0
        %1548 = vmatprep.subr.mxu0 0.0
        %1549 = vmatpush1.msra.mxu0 %v705
        %1550 = vmatprep.subr.mxu0 0.0
        %1551 = vmatpush1.msra.mxu0 0.0
        %1552 = vmatprep.subr.mxu0 0.0
        %1553 = vmatpush1.msra.mxu0 0.0
        %1554 = vmatprep.subr.mxu0 0.0
        %1555 = vmatpush1.msra.mxu0 0.0
        %1556 = vmatprep.subr.mxu0 0.0
        %1557 = vmatpush1.msra.mxu0 0.0
        %1558 = vmatprep.subr.mxu0 0.0
        %1559 = vmatpush1.msra.mxu0 0.0
        %1560 = vmatprep.subr.mxu0 0.0
        %1561 = vmatpush1.msra.mxu0 0.0
        %1562 = vmatprep.subr.mxu0 0.0
        %1563 = vmatpush1.msra.mxu0 0.0
        %1564 = vmatprep.subr.mxu0 0.0
        %1565 = vmatpush1.msra.mxu0 0.0
        %1566 = vmatprep.subr.mxu0 0.0
        %1567 = vmatpush1.msra.mxu0 0.0
        %1568 = vmatprep.subr.mxu0 0.0
        %1569 = vmatpush1.msra.mxu0 0.0
        %1570 = vmatprep.subr.mxu0 0.0
        %1571 = vmatpush1.msra.mxu0 0.0
        %1572 = vmatprep.subr.mxu0 0.0
        %1573 = vmatpush1.msra.mxu0 0.0
        %1574 = vmatprep.subr.mxu0 0.0
        %1575 = vmatpush1.msra.mxu0 0.0
        %1576 = vmatprep.subr.mxu0 0.0
        %1577 = vmatpush1.msra.mxu0 0.0
        %1578 = vmatprep.subr.mxu0 0.0
        %1579 = vmatpush1.msra.mxu0 0.0
        %1580 = vmatprep.subr.mxu0 0.0
        %1581 = vmatpush1.msra.mxu0 0.0
        %1582 = vmatprep.subr.mxu0 0.0
        %1583 = vmatpush1.msra.mxu0 0.0
        %1584 = vmatprep.subr.mxu0 0.0
        %1585 = vmatpush1.msra.mxu0 0.0
        %1586 = vmatprep.subr.mxu0 0.0
        %1587 = vmatpush1.msra.mxu0 0.0
        %1588 = vmatprep.subr.mxu0 0.0
        %1589 = vmatpush1.msra.mxu0 0.0
        %1590 = vmatprep.subr.mxu0 0.0
        %1591 = vmatpush1.msra.mxu0 0.0
        %1592 = vmatprep.subr.mxu0 0.0
        %1593 = vmatpush1.msra.mxu0 0.0
        %1594 = vmatprep.subr.mxu0 0.0
        %1595 = vmatpush1.msra.mxu0 0.0
        %1596 = vmatprep.subr.mxu0 0.0
        %1597 = vmatpush1.msra.mxu0 0.0
        %1598 = vmatprep.subr.mxu0 0.0
        %1599 = vmatpush1.msra.mxu0 0.0
        %1600 = vmatprep.subr.mxu0 0.0
        %1601 = vmatpush1.msra.mxu0 0.0
        %1602 = vmatprep.subr.mxu0 0.0
        %1603 = vmatpush1.msra.mxu0 0.0
        %1604 = vmatprep.subr.mxu0 0.0
        %1605 = vmatpush1.msra.mxu0 0.0
        %1606 = vmatprep.subr.mxu0 0.0
        %1607 = vmatpush1.msra.mxu0 0.0
        %1608 = vmatprep.subr.mxu0 0.0
        %1609 = vmatpush1.msra.mxu0 0.0
        %1610 = vmatprep.subr.mxu0 0.0
        %1611 = vmatpush1.msra.mxu0 0.0
        %1612 = vmatprep.mubr.f32.mxu0 0.0
        %1613 = vmatmul.mubr.f32.gmra.mrb[0].mxu0 %v1546
        %v1614 = vpop.f32.mrb[0].mxu0
        %v1615 = vadd.f32 0.0, %v1614
        %v1616 = vpop.f32.mrb[0].mxu0
        %1617 = vdwg.mxu0
        %v1618 = vadd.f32 %v1468, %v1541
        %1620 = vrot.lane.b32.xlu0 %v1618, 16
        %v1621 = vpop.permute.xlu0 %1620
        %vm1623 = vcmask 261248
        %1624 = vst.msk [vmem:[#allocation2] sm:$0xff] %vm1623, %v1621
        %v1625 = vsub.f32 %v1615, %v1468
        %v1626 = vadd.f32 %v1625, %v1541
        %1628 = vrot.lane.b32.xlu0 %v1626, 16
        %v1629 = vpop.permute.xlu0 %1628
        %1631 = vst.msk [vmem:[#allocation3] sm:$0xff] %vm1623, %v1629
        %1632 = vrot.lane.b32.xlu0 %v621, 96
        %v1633 = vpop.permute.xlu0 %1632
        %v1634 = vsel %vm550, %v1633, 0
        %1636 = vmatprep.subr.mxu0 0.0
        %1637 = vmatpush1.msra.mxu0 %v697
        %1638 = vmatprep.subr.mxu0 0.0
        %1639 = vmatpush1.msra.mxu0 %v698
        %1640 = vmatprep.subr.mxu0 0.0
        %1641 = vmatpush1.msra.mxu0 0.0
        %1642 = vmatprep.subr.mxu0 0.0
        %1643 = vmatpush1.msra.mxu0 0.0
        %1644 = vmatprep.subr.mxu0 0.0
        %1645 = vmatpush1.msra.mxu0 0.0
        %1646 = vmatprep.subr.mxu0 0.0
        %1647 = vmatpush1.msra.mxu0 0.0
        %1648 = vmatprep.subr.mxu0 0.0
        %1649 = vmatpush1.msra.mxu0 0.0
        %1650 = vmatprep.subr.mxu0 0.0
        %1651 = vmatpush1.msra.mxu0 0.0
        %1652 = vmatprep.subr.mxu0 0.0
        %1653 = vmatpush1.msra.mxu0 0.0
        %1654 = vmatprep.subr.mxu0 0.0
        %1655 = vmatpush1.msra.mxu0 0.0
        %1656 = vmatprep.subr.mxu0 0.0
        %1657 = vmatpush1.msra.mxu0 0.0
        %1658 = vmatprep.subr.mxu0 0.0
        %1659 = vmatpush1.msra.mxu0 0.0
        %1660 = vmatprep.subr.mxu0 0.0
        %1661 = vmatpush1.msra.mxu0 0.0
        %1662 = vmatprep.subr.mxu0 0.0
        %1663 = vmatpush1.msra.mxu0 0.0
        %1664 = vmatprep.subr.mxu0 0.0
        %1665 = vmatpush1.msra.mxu0 0.0
        %1666 = vmatprep.subr.mxu0 0.0
        %1667 = vmatpush1.msra.mxu0 0.0
        %1668 = vmatprep.subr.mxu0 0.0
        %1669 = vmatpush1.msra.mxu0 0.0
        %1670 = vmatprep.subr.mxu0 0.0
        %1671 = vmatpush1.msra.mxu0 0.0
        %1672 = vmatprep.subr.mxu0 0.0
        %1673 = vmatpush1.msra.mxu0 0.0
        %1674 = vmatprep.subr.mxu0 0.0
        %1675 = vmatpush1.msra.mxu0 0.0
        %1676 = vmatprep.subr.mxu0 0.0
        %1677 = vmatpush1.msra.mxu0 0.0
        %1678 = vmatprep.subr.mxu0 0.0
        %1679 = vmatpush1.msra.mxu0 0.0
        %1680 = vmatprep.subr.mxu0 0.0
        %1681 = vmatpush1.msra.mxu0 0.0
        %1682 = vmatprep.subr.mxu0 0.0
        %1683 = vmatpush1.msra.mxu0 0.0
        %1684 = vmatprep.subr.mxu0 0.0
        %1685 = vmatpush1.msra.mxu0 0.0
        %1686 = vmatprep.subr.mxu0 0.0
        %1687 = vmatpush1.msra.mxu0 0.0
        %1688 = vmatprep.subr.mxu0 0.0
        %1689 = vmatpush1.msra.mxu0 0.0
        %1690 = vmatprep.subr.mxu0 0.0
        %1691 = vmatpush1.msra.mxu0 0.0
        %1692 = vmatprep.subr.mxu0 0.0
        %1693 = vmatpush1.msra.mxu0 0.0
        %1694 = vmatprep.subr.mxu0 0.0
        %1695 = vmatpush1.msra.mxu0 0.0
        %1696 = vmatprep.subr.mxu0 0.0
        %1697 = vmatpush1.msra.mxu0 0.0
        %1698 = vmatprep.subr.mxu0 0.0
        %1699 = vmatpush1.msra.mxu0 0.0
        %1700 = vmatprep.mubr.f32.mxu0 0.0
        %1701 = vmatmul.mubr.f32.gmra.mrb[0].mxu0 %v1634
        %v1702 = vpop.f32.mrb[0].mxu0
        %v1703 = vadd.f32 0.0, %v1702
        %v1704 = vpop.f32.mrb[0].mxu0
        %1705 = vdwg.mxu0
        %1706 = vrot.lane.b32.xlu0 %v694, 96
        %v1707 = vpop.permute.xlu0 %1706
        %v1708 = vsel %vm550, %v1707, 0
        %1710 = vmatprep.subr.mxu0 0.0
        %1711 = vmatpush1.msra.mxu0 %v699
        %1712 = vmatprep.subr.mxu0 0.0
        %1713 = vmatpush1.msra.mxu0 %v700
        %1714 = vmatprep.subr.mxu0 0.0
        %1715 = vmatpush1.msra.mxu0 0.0
        %1716 = vmatprep.subr.mxu0 0.0
        %1717 = vmatpush1.msra.mxu0 0.0
        %1718 = vmatprep.subr.mxu0 0.0
        %1719 = vmatpush1.msra.mxu0 0.0
        %1720 = vmatprep.subr.mxu0 0.0
        %1721 = vmatpush1.msra.mxu0 0.0
        %1722 = vmatprep.subr.mxu0 0.0
        %1723 = vmatpush1.msra.mxu0 0.0
        %1724 = vmatprep.subr.mxu0 0.0
        %1725 = vmatpush1.msra.mxu0 0.0
        %1726 = vmatprep.subr.mxu0 0.0
        %1727 = vmatpush1.msra.mxu0 0.0
        %1728 = vmatprep.subr.mxu0 0.0
        %1729 = vmatpush1.msra.mxu0 0.0
        %1730 = vmatprep.subr.mxu0 0.0
        %1731 = vmatpush1.msra.mxu0 0.0
        %1732 = vmatprep.subr.mxu0 0.0
        %1733 = vmatpush1.msra.mxu0 0.0
        %1734 = vmatprep.subr.mxu0 0.0
        %1735 = vmatpush1.msra.mxu0 0.0
        %1736 = vmatprep.subr.mxu0 0.0
        %1737 = vmatpush1.msra.mxu0 0.0
        %1738 = vmatprep.subr.mxu0 0.0
        %1739 = vmatpush1.msra.mxu0 0.0
        %1740 = vmatprep.subr.mxu0 0.0
        %1741 = vmatpush1.msra.mxu0 0.0
        %1742 = vmatprep.subr.mxu0 0.0
        %1743 = vmatpush1.msra.mxu0 0.0
        %1744 = vmatprep.subr.mxu0 0.0
        %1745 = vmatpush1.msra.mxu0 0.0
        %1746 = vmatprep.subr.mxu0 0.0
        %1747 = vmatpush1.msra.mxu0 0.0
        %1748 = vmatprep.subr.mxu0 0.0
        %1749 = vmatpush1.msra.mxu0 0.0
        %1750 = vmatprep.subr.mxu0 0.0
        %1751 = vmatpush1.msra.mxu0 0.0
        %1752 = vmatprep.subr.mxu0 0.0
        %1753 = vmatpush1.msra.mxu0 0.0
        %1754 = vmatprep.subr.mxu0 0.0
        %1755 = vmatpush1.msra.mxu0 0.0
        %1756 = vmatprep.subr.mxu0 0.0
        %1757 = vmatpush1.msra.mxu0 0.0
        %1758 = vmatprep.subr.mxu0 0.0
        %1759 = vmatpush1.msra.mxu0 0.0
        %1760 = vmatprep.subr.mxu0 0.0
        %1761 = vmatpush1.msra.mxu0 0.0
        %1762 = vmatprep.subr.mxu0 0.0
        %1763 = vmatpush1.msra.mxu0 0.0
        %1764 = vmatprep.subr.mxu0 0.0
        %1765 = vmatpush1.msra.mxu0 0.0
        %1766 = vmatprep.subr.mxu0 0.0
        %1767 = vmatpush1.msra.mxu0 0.0
        %1768 = vmatprep.subr.mxu0 0.0
        %1769 = vmatpush1.msra.mxu0 0.0
        %1770 = vmatprep.subr.mxu0 0.0
        %1771 = vmatpush1.msra.mxu0 0.0
        %1772 = vmatprep.subr.mxu0 0.0
        %1773 = vmatpush1.msra.mxu0 0.0
        %1774 = vmatprep.mubr.f32.mxu0 0.0
        %1775 = vmatmul.mubr.f32.gmra.mrb[0].mxu0 %v1708
        %v1776 = vpop.f32.mrb[0].mxu0
        %v1777 = vadd.f32 0.0, %v1776
        %v1778 = vpop.f32.mrb[0].mxu0
        %1779 = vdwg.mxu0
        %1780 = vrot.lane.b32.xlu0 %v852, 96
        %v1781 = vpop.permute.xlu0 %1780
        %v1782 = vsel %vm550, %v1781, 0
        %1784 = vmatprep.subr.mxu0 0.0
        %1785 = vmatpush1.msra.mxu0 %v701
        %1786 = vmatprep.subr.mxu0 0.0
        %1787 = vmatpush1.msra.mxu0 %v702
        %1788 = vmatprep.subr.mxu0 0.0
        %1789 = vmatpush1.msra.mxu0 0.0
        %1790 = vmatprep.subr.mxu0 0.0
        %1791 = vmatpush1.msra.mxu0 0.0
        %1792 = vmatprep.subr.mxu0 0.0
        %1793 = vmatpush1.msra.mxu0 0.0
        %1794 = vmatprep.subr.mxu0 0.0
        %1795 = vmatpush1.msra.mxu0 0.0
        %1796 = vmatprep.subr.mxu0 0.0
        %1797 = vmatpush1.msra.mxu0 0.0
        %1798 = vmatprep.subr.mxu0 0.0
        %1799 = vmatpush1.msra.mxu0 0.0
        %1800 = vmatprep.subr.mxu0 0.0
        %1801 = vmatpush1.msra.mxu0 0.0
        %1802 = vmatprep.subr.mxu0 0.0
        %1803 = vmatpush1.msra.mxu0 0.0
        %1804 = vmatprep.subr.mxu0 0.0
        %1805 = vmatpush1.msra.mxu0 0.0
        %1806 = vmatprep.subr.mxu0 0.0
        %1807 = vmatpush1.msra.mxu0 0.0
        %1808 = vmatprep.subr.mxu0 0.0
        %1809 = vmatpush1.msra.mxu0 0.0
        %1810 = vmatprep.subr.mxu0 0.0
        %1811 = vmatpush1.msra.mxu0 0.0
        %1812 = vmatprep.subr.mxu0 0.0
        %1813 = vmatpush1.msra.mxu0 0.0
        %1814 = vmatprep.subr.mxu0 0.0
        %1815 = vmatpush1.msra.mxu0 0.0
        %1816 = vmatprep.subr.mxu0 0.0
        %1817 = vmatpush1.msra.mxu0 0.0
        %1818 = vmatprep.subr.mxu0 0.0
        %1819 = vmatpush1.msra.mxu0 0.0
        %1820 = vmatprep.subr.mxu0 0.0
        %1821 = vmatpush1.msra.mxu0 0.0
        %1822 = vmatprep.subr.mxu0 0.0
        %1823 = vmatpush1.msra.mxu0 0.0
        %1824 = vmatprep.subr.mxu0 0.0
        %1825 = vmatpush1.msra.mxu0 0.0
        %1826 = vmatprep.subr.mxu0 0.0
        %1827 = vmatpush1.msra.mxu0 0.0
        %1828 = vmatprep.subr.mxu0 0.0
        %1829 = vmatpush1.msra.mxu0 0.0
        %1830 = vmatprep.subr.mxu0 0.0
        %1831 = vmatpush1.msra.mxu0 0.0
        %1832 = vmatprep.subr.mxu0 0.0
        %1833 = vmatpush1.msra.mxu0 0.0
        %1834 = vmatprep.subr.mxu0 0.0
        %1835 = vmatpush1.msra.mxu0 0.0
        %1836 = vmatprep.subr.mxu0 0.0
        %1837 = vmatpush1.msra.mxu0 0.0
        %1838 = vmatprep.subr.mxu0 0.0
        %1839 = vmatpush1.msra.mxu0 0.0
        %1840 = vmatprep.subr.mxu0 0.0
        %1841 = vmatpush1.msra.mxu0 0.0
        %1842 = vmatprep.subr.mxu0 0.0
        %1843 = vmatpush1.msra.mxu0 0.0
        %1844 = vmatprep.subr.mxu0 0.0
        %1845 = vmatpush1.msra.mxu0 0.0
        %1846 = vmatprep.subr.mxu0 0.0
        %1847 = vmatpush1.msra.mxu0 0.0
        %1848 = vmatprep.mubr.f32.mxu0 0.0
        %1849 = vmatmul.mubr.f32.gmra.mrb[0].mxu0 %v1782
        %v1850 = vpop.f32.mrb[0].mxu0
        %v1851 = vadd.f32 0.0, %v1850
        %v1852 = vpop.f32.mrb[0].mxu0
        %1853 = vdwg.mxu0
        %v1854 = vsub.f32 %v1703, %v1777
        %v1855 = vsub.f32 %v1851, %v1703
        %v1856 = vsub.f32 %v1855, %v1777
        %s1857 = scalar_lea.vmem %s538, 16
        %v1858 = vld [vmem:[%s1857] sm:$0xff]
        %s1859 = scalar_lea.vmem %s544, 16
        %v1860 = vld [vmem:[%s1859] sm:$0xff]
        %v1861 = vmul.f32 %v1854, %v1858
        %v1862 = vmul.f32 %v1856, %v1860
        %v1863 = vsub.f32 %v1861, %v1862
        %v1864 = vmul.f32 %v1854, %v1860
        %v1865 = vmul.f32 %v1856, %v1858
        %v1866 = vadd.f32 %v1864, %v1865
        %v1868 = vsel %vm937, %v1863, 0
        %1870 = vmatprep.subr.mxu0 0.0
        %1871 = vmatpush1.msra.mxu0 %v703
        %1872 = vmatprep.subr.mxu0 0.0
        %1873 = vmatpush1.msra.mxu0 0.0
        %1874 = vmatprep.subr.mxu0 0.0
        %1875 = vmatpush1.msra.mxu0 0.0
        %1876 = vmatprep.subr.mxu0 0.0
        %1877 = vmatpush1.msra.mxu0 0.0
        %1878 = vmatprep.subr.mxu0 0.0
        %1879 = vmatpush1.msra.mxu0 0.0
        %1880 = vmatprep.subr.mxu0 0.0
        %1881 = vmatpush1.msra.mxu0 0.0
        %1882 = vmatprep.subr.mxu0 0.0
        %1883 = vmatpush1.msra.mxu0 0.0
        %1884 = vmatprep.subr.mxu0 0.0
        %1885 = vmatpush1.msra.mxu0 0.0
        %1886 = vmatprep.subr.mxu0 0.0
        %1887 = vmatpush1.msra.mxu0 0.0
        %1888 = vmatprep.subr.mxu0 0.0
        %1889 = vmatpush1.msra.mxu0 0.0
        %1890 = vmatprep.subr.mxu0 0.0
        %1891 = vmatpush1.msra.mxu0 0.0
        %1892 = vmatprep.subr.mxu0 0.0
        %1893 = vmatpush1.msra.mxu0 0.0
        %1894 = vmatprep.subr.mxu0 0.0
        %1895 = vmatpush1.msra.mxu0 0.0
        %1896 = vmatprep.subr.mxu0 0.0
        %1897 = vmatpush1.msra.mxu0 0.0
        %1898 = vmatprep.subr.mxu0 0.0
        %1899 = vmatpush1.msra.mxu0 0.0
        %1900 = vmatprep.subr.mxu0 0.0
        %1901 = vmatpush1.msra.mxu0 0.0
        %1902 = vmatprep.subr.mxu0 0.0
        %1903 = vmatpush1.msra.mxu0 0.0
        %1904 = vmatprep.subr.mxu0 0.0
        %1905 = vmatpush1.msra.mxu0 0.0
        %1906 = vmatprep.subr.mxu0 0.0
        %1907 = vmatpush1.msra.mxu0 0.0
        %1908 = vmatprep.subr.mxu0 0.0
        %1909 = vmatpush1.msra.mxu0 0.0
        %1910 = vmatprep.subr.mxu0 0.0
        %1911 = vmatpush1.msra.mxu0 0.0
        %1912 = vmatprep.subr.mxu0 0.0
        %1913 = vmatpush1.msra.mxu0 0.0
        %1914 = vmatprep.subr.mxu0 0.0
        %1915 = vmatpush1.msra.mxu0 0.0
        %1916 = vmatprep.subr.mxu0 0.0
        %1917 = vmatpush1.msra.mxu0 0.0
        %1918 = vmatprep.subr.mxu0 0.0
        %1919 = vmatpush1.msra.mxu0 0.0
        %1920 = vmatprep.subr.mxu0 0.0
        %1921 = vmatpush1.msra.mxu0 0.0
        %1922 = vmatprep.subr.mxu0 0.0
        %1923 = vmatpush1.msra.mxu0 0.0
        %1924 = vmatprep.subr.mxu0 0.0
        %1925 = vmatpush1.msra.mxu0 0.0
        %1926 = vmatprep.subr.mxu0 0.0
        %1927 = vmatpush1.msra.mxu0 0.0
        %1928 = vmatprep.subr.mxu0 0.0
        %1929 = vmatpush1.msra.mxu0 0.0
        %1930 = vmatprep.subr.mxu0 0.0
        %1931 = vmatpush1.msra.mxu0 0.0
        %1932 = vmatprep.subr.mxu0 0.0
        %1933 = vmatpush1.msra.mxu0 0.0
        %1934 = vmatprep.mubr.f32.mxu0 0.0
        %1935 = vmatmul.mubr.f32.gmra.mrb[0].mxu0 %v1868
        %v1936 = vpop.f32.mrb[0].mxu0
        %v1937 = vadd.f32 0.0, %v1936
        %v1938 = vpop.f32.mrb[0].mxu0
        %1939 = vdwg.mxu0
        %v1941 = vsel %vm937, %v1866, 0
        %1943 = vmatprep.subr.mxu0 0.0
        %1944 = vmatpush1.msra.mxu0 %v704
        %1945 = vmatprep.subr.mxu0 0.0
        %1946 = vmatpush1.msra.mxu0 0.0
        %1947 = vmatprep.subr.mxu0 0.0
        %1948 = vmatpush1.msra.mxu0 0.0
        %1949 = vmatprep.subr.mxu0 0.0
        %1950 = vmatpush1.msra.mxu0 0.0
        %1951 = vmatprep.subr.mxu0 0.0
        %1952 = vmatpush1.msra.mxu0 0.0
        %1953 = vmatprep.subr.mxu0 0.0
        %1954 = vmatpush1.msra.mxu0 0.0
        %1955 = vmatprep.subr.mxu0 0.0
        %1956 = vmatpush1.msra.mxu0 0.0
        %1957 = vmatprep.subr.mxu0 0.0
        %1958 = vmatpush1.msra.mxu0 0.0
        %1959 = vmatprep.subr.mxu0 0.0
        %1960 = vmatpush1.msra.mxu0 0.0
        %1961 = vmatprep.subr.mxu0 0.0
        %1962 = vmatpush1.msra.mxu0 0.0
        %1963 = vmatprep.subr.mxu0 0.0
        %1964 = vmatpush1.msra.mxu0 0.0
        %1965 = vmatprep.subr.mxu0 0.0
        %1966 = vmatpush1.msra.mxu0 0.0
        %1967 = vmatprep.subr.mxu0 0.0
        %1968 = vmatpush1.msra.mxu0 0.0
        %1969 = vmatprep.subr.mxu0 0.0
        %1970 = vmatpush1.msra.mxu0 0.0
        %1971 = vmatprep.subr.mxu0 0.0
        %1972 = vmatpush1.msra.mxu0 0.0
        %1973 = vmatprep.subr.mxu0 0.0
        %1974 = vmatpush1.msra.mxu0 0.0
        %1975 = vmatprep.subr.mxu0 0.0
        %1976 = vmatpush1.msra.mxu0 0.0
        %1977 = vmatprep.subr.mxu0 0.0
        %1978 = vmatpush1.msra.mxu0 0.0
        %1979 = vmatprep.subr.mxu0 0.0
        %1980 = vmatpush1.msra.mxu0 0.0
        %1981 = vmatprep.subr.mxu0 0.0
        %1982 = vmatpush1.msra.mxu0 0.0
        %1983 = vmatprep.subr.mxu0 0.0
        %1984 = vmatpush1.msra.mxu0 0.0
        %1985 = vmatprep.subr.mxu0 0.0
        %1986 = vmatpush1.msra.mxu0 0.0
        %1987 = vmatprep.subr.mxu0 0.0
        %1988 = vmatpush1.msra.mxu0 0.0
        %1989 = vmatprep.subr.mxu0 0.0
        %1990 = vmatpush1.msra.mxu0 0.0
        %1991 = vmatprep.subr.mxu0 0.0
        %1992 = vmatpush1.msra.mxu0 0.0
        %1993 = vmatprep.subr.mxu0 0.0
        %1994 = vmatpush1.msra.mxu0 0.0
        %1995 = vmatprep.subr.mxu0 0.0
        %1996 = vmatpush1.msra.mxu0 0.0
        %1997 = vmatprep.subr.mxu0 0.0
        %1998 = vmatpush1.msra.mxu0 0.0
        %1999 = vmatprep.subr.mxu0 0.0
        %2000 = vmatpush1.msra.mxu0 0.0
        %2001 = vmatprep.subr.mxu0 0.0
        %2002 = vmatpush1.msra.mxu0 0.0
        %2003 = vmatprep.subr.mxu0 0.0
        %2004 = vmatpush1.msra.mxu0 0.0
        %2005 = vmatprep.subr.mxu0 0.0
        %2006 = vmatpush1.msra.mxu0 0.0
        %2007 = vmatprep.mubr.f32.mxu0 0.0
        %2008 = vmatmul.mubr.f32.gmra.mrb[0].mxu0 %v1941
        %v2009 = vpop.f32.mrb[0].mxu0
        %v2010 = vadd.f32 0.0, %v2009
        %v2011 = vpop.f32.mrb[0].mxu0
        %2012 = vdwg.mxu0
        %v2013 = vadd.f32 %v1863, %v1866
        %v2015 = vsel %vm937, %v2013, 0
        %2017 = vmatprep.subr.mxu0 0.0
        %2018 = vmatpush1.msra.mxu0 %v705
        %2019 = vmatprep.subr.mxu0 0.0
        %2020 = vmatpush1.msra.mxu0 0.0
        %2021 = vmatprep.subr.mxu0 0.0
        %2022 = vmatpush1.msra.mxu0 0.0
        %2023 = vmatprep.subr.mxu0 0.0
        %2024 = vmatpush1.msra.mxu0 0.0
        %2025 = vmatprep.subr.mxu0 0.0
        %2026 = vmatpush1.msra.mxu0 0.0
        %2027 = vmatprep.subr.mxu0 0.0
        %2028 = vmatpush1.msra.mxu0 0.0
        %2029 = vmatprep.subr.mxu0 0.0
        %2030 = vmatpush1.msra.mxu0 0.0
        %2031 = vmatprep.subr.mxu0 0.0
        %2032 = vmatpush1.msra.mxu0 0.0
        %2033 = vmatprep.subr.mxu0 0.0
        %2034 = vmatpush1.msra.mxu0 0.0
        %2035 = vmatprep.subr.mxu0 0.0
        %2036 = vmatpush1.msra.mxu0 0.0
        %2037 = vmatprep.subr.mxu0 0.0
        %2038 = vmatpush1.msra.mxu0 0.0
        %2039 = vmatprep.subr.mxu0 0.0
        %2040 = vmatpush1.msra.mxu0 0.0
        %2041 = vmatprep.subr.mxu0 0.0
        %2042 = vmatpush1.msra.mxu0 0.0
        %2043 = vmatprep.subr.mxu0 0.0
        %2044 = vmatpush1.msra.mxu0 0.0
        %2045 = vmatprep.subr.mxu0 0.0
        %2046 = vmatpush1.msra.mxu0 0.0
        %2047 = vmatprep.subr.mxu0 0.0
        %2048 = vmatpush1.msra.mxu0 0.0
        %2049 = vmatprep.subr.mxu0 0.0
        %2050 = vmatpush1.msra.mxu0 0.0
        %2051 = vmatprep.subr.mxu0 0.0
        %2052 = vmatpush1.msra.mxu0 0.0
        %2053 = vmatprep.subr.mxu0 0.0
        %2054 = vmatpush1.msra.mxu0 0.0
        %2055 = vmatprep.subr.mxu0 0.0
        %2056 = vmatpush1.msra.mxu0 0.0
        %2057 = vmatprep.subr.mxu0 0.0
        %2058 = vmatpush1.msra.mxu0 0.0
        %2059 = vmatprep.subr.mxu0 0.0
        %2060 = vmatpush1.msra.mxu0 0.0
        %2061 = vmatprep.subr.mxu0 0.0
        %2062 = vmatpush1.msra.mxu0 0.0
        %2063 = vmatprep.subr.mxu0 0.0
        %2064 = vmatpush1.msra.mxu0 0.0
        %2065 = vmatprep.subr.mxu0 0.0
        %2066 = vmatpush1.msra.mxu0 0.0
        %2067 = vmatprep.subr.mxu0 0.0
        %2068 = vmatpush1.msra.mxu0 0.0
        %2069 = vmatprep.subr.mxu0 0.0
        %2070 = vmatpush1.msra.mxu0 0.0
        %2071 = vmatprep.subr.mxu0 0.0
        %2072 = vmatpush1.msra.mxu0 0.0
        %2073 = vmatprep.subr.mxu0 0.0
        %2074 = vmatpush1.msra.mxu0 0.0
        %2075 = vmatprep.subr.mxu0 0.0
        %2076 = vmatpush1.msra.mxu0 0.0
        %2077 = vmatprep.subr.mxu0 0.0
        %2078 = vmatpush1.msra.mxu0 0.0
        %2079 = vmatprep.subr.mxu0 0.0
        %2080 = vmatpush1.msra.mxu0 0.0
        %2081 = vmatprep.mubr.f32.mxu0 0.0
        %2082 = vmatmul.mubr.f32.gmra.mrb[0].mxu0 %v2015
        %v2083 = vpop.f32.mrb[0].mxu0
        %v2084 = vadd.f32 0.0, %v2083
        %v2085 = vpop.f32.mrb[0].mxu0
        %2086 = vdwg.mxu0
        %v2087 = vadd.f32 %v1937, %v2010
        %2089 = vrot.lane.b32.xlu0 %v2087, 32
        %v2090 = vpop.permute.xlu0 %2089
        %vm2092 = vcmask 392448
        %2093 = vst.msk [vmem:[#allocation2] sm:$0xff] %vm2092, %v2090
        %v2094 = vsub.f32 %v2084, %v1937
        %v2095 = vadd.f32 %v2094, %v2010
        %2097 = vrot.lane.b32.xlu0 %v2095, 32
        %v2098 = vpop.permute.xlu0 %2097
        %2100 = vst.msk [vmem:[#allocation3] sm:$0xff] %vm2092, %v2098
        %2101 = vrot.lane.b32.xlu0 %v621, 80
        %v2102 = vpop.permute.xlu0 %2101
        %v2103 = vsel %vm550, %v2102, 0
        %2105 = vmatprep.subr.mxu0 0.0
        %2106 = vmatpush1.msra.mxu0 %v697
        %2107 = vmatprep.subr.mxu0 0.0
        %2108 = vmatpush1.msra.mxu0 %v698
        %2109 = vmatprep.subr.mxu0 0.0
        %2110 = vmatpush1.msra.mxu0 0.0
        %2111 = vmatprep.subr.mxu0 0.0
        %2112 = vmatpush1.msra.mxu0 0.0
        %2113 = vmatprep.subr.mxu0 0.0
        %2114 = vmatpush1.msra.mxu0 0.0
        %2115 = vmatprep.subr.mxu0 0.0
        %2116 = vmatpush1.msra.mxu0 0.0
        %2117 = vmatprep.subr.mxu0 0.0
        %2118 = vmatpush1.msra.mxu0 0.0
        %2119 = vmatprep.subr.mxu0 0.0
        %2120 = vmatpush1.msra.mxu0 0.0
        %2121 = vmatprep.subr.mxu0 0.0
        %2122 = vmatpush1.msra.mxu0 0.0
        %2123 = vmatprep.subr.mxu0 0.0
        %2124 = vmatpush1.msra.mxu0 0.0
        %2125 = vmatprep.subr.mxu0 0.0
        %2126 = vmatpush1.msra.mxu0 0.0
        %2127 = vmatprep.subr.mxu0 0.0
        %2128 = vmatpush1.msra.mxu0 0.0
        %2129 = vmatprep.subr.mxu0 0.0
        %2130 = vmatpush1.msra.mxu0 0.0
        %2131 = vmatprep.subr.mxu0 0.0
        %2132 = vmatpush1.msra.mxu0 0.0
        %2133 = vmatprep.subr.mxu0 0.0
        %2134 = vmatpush1.msra.mxu0 0.0
        %2135 = vmatprep.subr.mxu0 0.0
        %2136 = vmatpush1.msra.mxu0 0.0
        %2137 = vmatprep.subr.mxu0 0.0
        %2138 = vmatpush1.msra.mxu0 0.0
        %2139 = vmatprep.subr.mxu0 0.0
        %2140 = vmatpush1.msra.mxu0 0.0
        %2141 = vmatprep.subr.mxu0 0.0
        %2142 = vmatpush1.msra.mxu0 0.0
        %2143 = vmatprep.subr.mxu0 0.0
        %2144 = vmatpush1.msra.mxu0 0.0
        %2145 = vmatprep.subr.mxu0 0.0
        %2146 = vmatpush1.msra.mxu0 0.0
        %2147 = vmatprep.subr.mxu0 0.0
        %2148 = vmatpush1.msra.mxu0 0.0
        %2149 = vmatprep.subr.mxu0 0.0
        %2150 = vmatpush1.msra.mxu0 0.0
        %2151 = vmatprep.subr.mxu0 0.0
        %2152 = vmatpush1.msra.mxu0 0.0
        %2153 = vmatprep.subr.mxu0 0.0
        %2154 = vmatpush1.msra.mxu0 0.0
        %2155 = vmatprep.subr.mxu0 0.0
        %2156 = vmatpush1.msra.mxu0 0.0
        %2157 = vmatprep.subr.mxu0 0.0
        %2158 = vmatpush1.msra.mxu0 0.0
        %2159 = vmatprep.subr.mxu0 0.0
        %2160 = vmatpush1.msra.mxu0 0.0
        %2161 = vmatprep.subr.mxu0 0.0
        %2162 = vmatpush1.msra.mxu0 0.0
        %2163 = vmatprep.subr.mxu0 0.0
        %2164 = vmatpush1.msra.mxu0 0.0
        %2165 = vmatprep.subr.mxu0 0.0
        %2166 = vmatpush1.msra.mxu0 0.0
        %2167 = vmatprep.subr.mxu0 0.0
        %2168 = vmatpush1.msra.mxu0 0.0
        %2169 = vmatprep.mubr.f32.mxu0 0.0
        %2170 = vmatmul.mubr.f32.gmra.mrb[0].mxu0 %v2103
        %v2171 = vpop.f32.mrb[0].mxu0
        %v2172 = vadd.f32 0.0, %v2171
        %v2173 = vpop.f32.mrb[0].mxu0
        %2174 = vdwg.mxu0
        %2175 = vrot.lane.b32.xlu0 %v694, 80
        %v2176 = vpop.permute.xlu0 %2175
        %v2177 = vsel %vm550, %v2176, 0
        %2179 = vmatprep.subr.mxu0 0.0
        %2180 = vmatpush1.msra.mxu0 %v699
        %2181 = vmatprep.subr.mxu0 0.0
        %2182 = vmatpush1.msra.mxu0 %v700
        %2183 = vmatprep.subr.mxu0 0.0
        %2184 = vmatpush1.msra.mxu0 0.0
        %2185 = vmatprep.subr.mxu0 0.0
        %2186 = vmatpush1.msra.mxu0 0.0
        %2187 = vmatprep.subr.mxu0 0.0
        %2188 = vmatpush1.msra.mxu0 0.0
        %2189 = vmatprep.subr.mxu0 0.0
        %2190 = vmatpush1.msra.mxu0 0.0
        %2191 = vmatprep.subr.mxu0 0.0
        %2192 = vmatpush1.msra.mxu0 0.0
        %2193 = vmatprep.subr.mxu0 0.0
        %2194 = vmatpush1.msra.mxu0 0.0
        %2195 = vmatprep.subr.mxu0 0.0
        %2196 = vmatpush1.msra.mxu0 0.0
        %2197 = vmatprep.subr.mxu0 0.0
        %2198 = vmatpush1.msra.mxu0 0.0
        %2199 = vmatprep.subr.mxu0 0.0
        %2200 = vmatpush1.msra.mxu0 0.0
        %2201 = vmatprep.subr.mxu0 0.0
        %2202 = vmatpush1.msra.mxu0 0.0
        %2203 = vmatprep.subr.mxu0 0.0
        %2204 = vmatpush1.msra.mxu0 0.0
        %2205 = vmatprep.subr.mxu0 0.0
        %2206 = vmatpush1.msra.mxu0 0.0
        %2207 = vmatprep.subr.mxu0 0.0
        %2208 = vmatpush1.msra.mxu0 0.0
        %2209 = vmatprep.subr.mxu0 0.0
        %2210 = vmatpush1.msra.mxu0 0.0
        %2211 = vmatprep.subr.mxu0 0.0
        %2212 = vmatpush1.msra.mxu0 0.0
        %2213 = vmatprep.subr.mxu0 0.0
        %2214 = vmatpush1.msra.mxu0 0.0
        %2215 = vmatprep.subr.mxu0 0.0
        %2216 = vmatpush1.msra.mxu0 0.0
        %2217 = vmatprep.subr.mxu0 0.0
        %2218 = vmatpush1.msra.mxu0 0.0
        %2219 = vmatprep.subr.mxu0 0.0
        %2220 = vmatpush1.msra.mxu0 0.0
        %2221 = vmatprep.subr.mxu0 0.0
        %2222 = vmatpush1.msra.mxu0 0.0
        %2223 = vmatprep.subr.mxu0 0.0
        %2224 = vmatpush1.msra.mxu0 0.0
        %2225 = vmatprep.subr.mxu0 0.0
        %2226 = vmatpush1.msra.mxu0 0.0
        %2227 = vmatprep.subr.mxu0 0.0
        %2228 = vmatpush1.msra.mxu0 0.0
        %2229 = vmatprep.subr.mxu0 0.0
        %2230 = vmatpush1.msra.mxu0 0.0
        %2231 = vmatprep.subr.mxu0 0.0
        %2232 = vmatpush1.msra.mxu0 0.0
        %2233 = vmatprep.subr.mxu0 0.0
        %2234 = vmatpush1.msra.mxu0 0.0
        %2235 = vmatprep.subr.mxu0 0.0
        %2236 = vmatpush1.msra.mxu0 0.0
        %2237 = vmatprep.subr.mxu0 0.0
        %2238 = vmatpush1.msra.mxu0 0.0
        %2239 = vmatprep.subr.mxu0 0.0
        %2240 = vmatpush1.msra.mxu0 0.0
        %2241 = vmatprep.subr.mxu0 0.0
        %2242 = vmatpush1.msra.mxu0 0.0
        %2243 = vmatprep.mubr.f32.mxu0 0.0
        %2244 = vmatmul.mubr.f32.gmra.mrb[0].mxu0 %v2177
        %v2245 = vpop.f32.mrb[0].mxu0
        %v2246 = vadd.f32 0.0, %v2245
        %v2247 = vpop.f32.mrb[0].mxu0
        %2248 = vdwg.mxu0
        %2249 = vrot.lane.b32.xlu0 %v852, 80
        %v2250 = vpop.permute.xlu0 %2249
        %v2251 = vsel %vm550, %v2250, 0
        %2253 = vmatprep.subr.mxu0 0.0
        %2254 = vmatpush1.msra.mxu0 %v701
        %2255 = vmatprep.subr.mxu0 0.0
        %2256 = vmatpush1.msra.mxu0 %v702
        %2257 = vmatprep.subr.mxu0 0.0
        %2258 = vmatpush1.msra.mxu0 0.0
        %2259 = vmatprep.subr.mxu0 0.0
        %2260 = vmatpush1.msra.mxu0 0.0
        %2261 = vmatprep.subr.mxu0 0.0
        %2262 = vmatpush1.msra.mxu0 0.0
        %2263 = vmatprep.subr.mxu0 0.0
        %2264 = vmatpush1.msra.mxu0 0.0
        %2265 = vmatprep.subr.mxu0 0.0
        %2266 = vmatpush1.msra.mxu0 0.0
        %2267 = vmatprep.subr.mxu0 0.0
        %2268 = vmatpush1.msra.mxu0 0.0
        %2269 = vmatprep.subr.mxu0 0.0
        %2270 = vmatpush1.msra.mxu0 0.0
        %2271 = vmatprep.subr.mxu0 0.0
        %2272 = vmatpush1.msra.mxu0 0.0
        %2273 = vmatprep.subr.mxu0 0.0
        %2274 = vmatpush1.msra.mxu0 0.0
        %2275 = vmatprep.subr.mxu0 0.0
        %2276 = vmatpush1.msra.mxu0 0.0
        %2277 = vmatprep.subr.mxu0 0.0
        %2278 = vmatpush1.msra.mxu0 0.0
        %2279 = vmatprep.subr.mxu0 0.0
        %2280 = vmatpush1.msra.mxu0 0.0
        %2281 = vmatprep.subr.mxu0 0.0
        %2282 = vmatpush1.msra.mxu0 0.0
        %2283 = vmatprep.subr.mxu0 0.0
        %2284 = vmatpush1.msra.mxu0 0.0
        %2285 = vmatprep.subr.mxu0 0.0
        %2286 = vmatpush1.msra.mxu0 0.0
        %2287 = vmatprep.subr.mxu0 0.0
        %2288 = vmatpush1.msra.mxu0 0.0
        %2289 = vmatprep.subr.mxu0 0.0
        %2290 = vmatpush1.msra.mxu0 0.0
        %2291 = vmatprep.subr.mxu0 0.0
        %2292 = vmatpush1.msra.mxu0 0.0
        %2293 = vmatprep.subr.mxu0 0.0
        %2294 = vmatpush1.msra.mxu0 0.0
        %2295 = vmatprep.subr.mxu0 0.0
        %2296 = vmatpush1.msra.mxu0 0.0
        %2297 = vmatprep.subr.mxu0 0.0
        %2298 = vmatpush1.msra.mxu0 0.0
        %2299 = vmatprep.subr.mxu0 0.0
        %2300 = vmatpush1.msra.mxu0 0.0
        %2301 = vmatprep.subr.mxu0 0.0
        %2302 = vmatpush1.msra.mxu0 0.0
        %2303 = vmatprep.subr.mxu0 0.0
        %2304 = vmatpush1.msra.mxu0 0.0
        %2305 = vmatprep.subr.mxu0 0.0
        %2306 = vmatpush1.msra.mxu0 0.0
        %2307 = vmatprep.subr.mxu0 0.0
        %2308 = vmatpush1.msra.mxu0 0.0
        %2309 = vmatprep.subr.mxu0 0.0
        %2310 = vmatpush1.msra.mxu0 0.0
        %2311 = vmatprep.subr.mxu0 0.0
        %2312 = vmatpush1.msra.mxu0 0.0
        %2313 = vmatprep.subr.mxu0 0.0
        %2314 = vmatpush1.msra.mxu0 0.0
        %2315 = vmatprep.subr.mxu0 0.0
        %2316 = vmatpush1.msra.mxu0 0.0
        %2317 = vmatprep.mubr.f32.mxu0 0.0
        %2318 = vmatmul.mubr.f32.gmra.mrb[0].mxu0 %v2251
        %v2319 = vpop.f32.mrb[0].mxu0
        %v2320 = vadd.f32 0.0, %v2319
        %v2321 = vpop.f32.mrb[0].mxu0
        %2322 = vdwg.mxu0
        %v2323 = vsub.f32 %v2172, %v2246
        %v2324 = vsub.f32 %v2320, %v2172
        %v2325 = vsub.f32 %v2324, %v2246
        %s2326 = scalar_lea.vmem %s538, 24
        %v2327 = vld [vmem:[%s2326] sm:$0xff]
        %s2328 = scalar_lea.vmem %s544, 24
        %v2329 = vld [vmem:[%s2328] sm:$0xff]
        %v2330 = vmul.f32 %v2323, %v2327
        %v2331 = vmul.f32 %v2325, %v2329
        %v2332 = vsub.f32 %v2330, %v2331
        %v2333 = vmul.f32 %v2323, %v2329
        %v2334 = vmul.f32 %v2325, %v2327
        %v2335 = vadd.f32 %v2333, %v2334
        %v2337 = vsel %vm937, %v2332, 0
        %2339 = vmatprep.subr.mxu0 0.0
        %2340 = vmatpush1.msra.mxu0 %v703
        %2341 = vmatprep.subr.mxu0 0.0
        %2342 = vmatpush1.msra.mxu0 0.0
        %2343 = vmatprep.subr.mxu0 0.0
        %2344 = vmatpush1.msra.mxu0 0.0
        %2345 = vmatprep.subr.mxu0 0.0
        %2346 = vmatpush1.msra.mxu0 0.0
        %2347 = vmatprep.subr.mxu0 0.0
        %2348 = vmatpush1.msra.mxu0 0.0
        %2349 = vmatprep.subr.mxu0 0.0
        %2350 = vmatpush1.msra.mxu0 0.0
        %2351 = vmatprep.subr.mxu0 0.0
        %2352 = vmatpush1.msra.mxu0 0.0
        %2353 = vmatprep.subr.mxu0 0.0
        %2354 = vmatpush1.msra.mxu0 0.0
        %2355 = vmatprep.subr.mxu0 0.0
        %2356 = vmatpush1.msra.mxu0 0.0
        %2357 = vmatprep.subr.mxu0 0.0
        %2358 = vmatpush1.msra.mxu0 0.0
        %2359 = vmatprep.subr.mxu0 0.0
        %2360 = vmatpush1.msra.mxu0 0.0
        %2361 = vmatprep.subr.mxu0 0.0
        %2362 = vmatpush1.msra.mxu0 0.0
        %2363 = vmatprep.subr.mxu0 0.0
        %2364 = vmatpush1.msra.mxu0 0.0
        %2365 = vmatprep.subr.mxu0 0.0
        %2366 = vmatpush1.msra.mxu0 0.0
        %2367 = vmatprep.subr.mxu0 0.0
        %2368 = vmatpush1.msra.mxu0 0.0
        %2369 = vmatprep.subr.mxu0 0.0
        %2370 = vmatpush1.msra.mxu0 0.0
        %2371 = vmatprep.subr.mxu0 0.0
        %2372 = vmatpush1.msra.mxu0 0.0
        %2373 = vmatprep.subr.mxu0 0.0
        %2374 = vmatpush1.msra.mxu0 0.0
        %2375 = vmatprep.subr.mxu0 0.0
        %2376 = vmatpush1.msra.mxu0 0.0
        %2377 = vmatprep.subr.mxu0 0.0
        %2378 = vmatpush1.msra.mxu0 0.0
        %2379 = vmatprep.subr.mxu0 0.0
        %2380 = vmatpush1.msra.mxu0 0.0
        %2381 = vmatprep.subr.mxu0 0.0
        %2382 = vmatpush1.msra.mxu0 0.0
        %2383 = vmatprep.subr.mxu0 0.0
        %2384 = vmatpush1.msra.mxu0 0.0
        %2385 = vmatprep.subr.mxu0 0.0
        %2386 = vmatpush1.msra.mxu0 0.0
        %2387 = vmatprep.subr.mxu0 0.0
        %2388 = vmatpush1.msra.mxu0 0.0
        %2389 = vmatprep.subr.mxu0 0.0
        %2390 = vmatpush1.msra.mxu0 0.0
        %2391 = vmatprep.subr.mxu0 0.0
        %2392 = vmatpush1.msra.mxu0 0.0
        %2393 = vmatprep.subr.mxu0 0.0
        %2394 = vmatpush1.msra.mxu0 0.0
        %2395 = vmatprep.subr.mxu0 0.0
        %2396 = vmatpush1.msra.mxu0 0.0
        %2397 = vmatprep.subr.mxu0 0.0
        %2398 = vmatpush1.msra.mxu0 0.0
        %2399 = vmatprep.subr.mxu0 0.0
        %2400 = vmatpush1.msra.mxu0 0.0
        %2401 = vmatprep.subr.mxu0 0.0
        %2402 = vmatpush1.msra.mxu0 0.0
        %2403 = vmatprep.mubr.f32.mxu0 0.0
        %2404 = vmatmul.mubr.f32.gmra.mrb[0].mxu0 %v2337
        %v2405 = vpop.f32.mrb[0].mxu0
        %v2406 = vadd.f32 0.0, %v2405
        %v2407 = vpop.f32.mrb[0].mxu0
        %2408 = vdwg.mxu0
        %v2410 = vsel %vm937, %v2335, 0
        %2412 = vmatprep.subr.mxu0 0.0
        %2413 = vmatpush1.msra.mxu0 %v704
        %2414 = vmatprep.subr.mxu0 0.0
        %2415 = vmatpush1.msra.mxu0 0.0
        %2416 = vmatprep.subr.mxu0 0.0
        %2417 = vmatpush1.msra.mxu0 0.0
        %2418 = vmatprep.subr.mxu0 0.0
        %2419 = vmatpush1.msra.mxu0 0.0
        %2420 = vmatprep.subr.mxu0 0.0
        %2421 = vmatpush1.msra.mxu0 0.0
        %2422 = vmatprep.subr.mxu0 0.0
        %2423 = vmatpush1.msra.mxu0 0.0
        %2424 = vmatprep.subr.mxu0 0.0
        %2425 = vmatpush1.msra.mxu0 0.0
        %2426 = vmatprep.subr.mxu0 0.0
        %2427 = vmatpush1.msra.mxu0 0.0
        %2428 = vmatprep.subr.mxu0 0.0
        %2429 = vmatpush1.msra.mxu0 0.0
        %2430 = vmatprep.subr.mxu0 0.0
        %2431 = vmatpush1.msra.mxu0 0.0
        %2432 = vmatprep.subr.mxu0 0.0
        %2433 = vmatpush1.msra.mxu0 0.0
        %2434 = vmatprep.subr.mxu0 0.0
        %2435 = vmatpush1.msra.mxu0 0.0
        %2436 = vmatprep.subr.mxu0 0.0
        %2437 = vmatpush1.msra.mxu0 0.0
        %2438 = vmatprep.subr.mxu0 0.0
        %2439 = vmatpush1.msra.mxu0 0.0
        %2440 = vmatprep.subr.mxu0 0.0
        %2441 = vmatpush1.msra.mxu0 0.0
        %2442 = vmatprep.subr.mxu0 0.0
        %2443 = vmatpush1.msra.mxu0 0.0
        %2444 = vmatprep.subr.mxu0 0.0
        %2445 = vmatpush1.msra.mxu0 0.0
        %2446 = vmatprep.subr.mxu0 0.0
        %2447 = vmatpush1.msra.mxu0 0.0
        %2448 = vmatprep.subr.mxu0 0.0
        %2449 = vmatpush1.msra.mxu0 0.0
        %2450 = vmatprep.subr.mxu0 0.0
        %2451 = vmatpush1.msra.mxu0 0.0
        %2452 = vmatprep.subr.mxu0 0.0
        %2453 = vmatpush1.msra.mxu0 0.0
        %2454 = vmatprep.subr.mxu0 0.0
        %2455 = vmatpush1.msra.mxu0 0.0
        %2456 = vmatprep.subr.mxu0 0.0
        %2457 = vmatpush1.msra.mxu0 0.0
        %2458 = vmatprep.subr.mxu0 0.0
        %2459 = vmatpush1.msra.mxu0 0.0
        %2460 = vmatprep.subr.mxu0 0.0
        %2461 = vmatpush1.msra.mxu0 0.0
        %2462 = vmatprep.subr.mxu0 0.0
        %2463 = vmatpush1.msra.mxu0 0.0
        %2464 = vmatprep.subr.mxu0 0.0
        %2465 = vmatpush1.msra.mxu0 0.0
        %2466 = vmatprep.subr.mxu0 0.0
        %2467 = vmatpush1.msra.mxu0 0.0
        %2468 = vmatprep.subr.mxu0 0.0
        %2469 = vmatpush1.msra.mxu0 0.0
        %2470 = vmatprep.subr.mxu0 0.0
        %2471 = vmatpush1.msra.mxu0 0.0
        %2472 = vmatprep.subr.mxu0 0.0
        %2473 = vmatpush1.msra.mxu0 0.0
        %2474 = vmatprep.subr.mxu0 0.0
        %2475 = vmatpush1.msra.mxu0 0.0
        %2476 = vmatprep.mubr.f32.mxu0 0.0
        %2477 = vmatmul.mubr.f32.gmra.mrb[0].mxu0 %v2410
        %v2478 = vpop.f32.mrb[0].mxu0
        %v2479 = vadd.f32 0.0, %v2478
        %v2480 = vpop.f32.mrb[0].mxu0
        %2481 = vdwg.mxu0
        %v2482 = vadd.f32 %v2332, %v2335
        %v2484 = vsel %vm937, %v2482, 0
        %2486 = vmatprep.subr.mxu0 0.0
        %2487 = vmatpush1.msra.mxu0 %v705
        %2488 = vmatprep.subr.mxu0 0.0
        %2489 = vmatpush1.msra.mxu0 0.0
        %2490 = vmatprep.subr.mxu0 0.0
        %2491 = vmatpush1.msra.mxu0 0.0
        %2492 = vmatprep.subr.mxu0 0.0
        %2493 = vmatpush1.msra.mxu0 0.0
        %2494 = vmatprep.subr.mxu0 0.0
        %2495 = vmatpush1.msra.mxu0 0.0
        %2496 = vmatprep.subr.mxu0 0.0
        %2497 = vmatpush1.msra.mxu0 0.0
        %2498 = vmatprep.subr.mxu0 0.0
        %2499 = vmatpush1.msra.mxu0 0.0
        %2500 = vmatprep.subr.mxu0 0.0
        %2501 = vmatpush1.msra.mxu0 0.0
        %2502 = vmatprep.subr.mxu0 0.0
        %2503 = vmatpush1.msra.mxu0 0.0
        %2504 = vmatprep.subr.mxu0 0.0
        %2505 = vmatpush1.msra.mxu0 0.0
        %2506 = vmatprep.subr.mxu0 0.0
        %2507 = vmatpush1.msra.mxu0 0.0
        %2508 = vmatprep.subr.mxu0 0.0
        %2509 = vmatpush1.msra.mxu0 0.0
        %2510 = vmatprep.subr.mxu0 0.0
        %2511 = vmatpush1.msra.mxu0 0.0
        %2512 = vmatprep.subr.mxu0 0.0
        %2513 = vmatpush1.msra.mxu0 0.0
        %2514 = vmatprep.subr.mxu0 0.0
        %2515 = vmatpush1.msra.mxu0 0.0
        %2516 = vmatprep.subr.mxu0 0.0
        %2517 = vmatpush1.msra.mxu0 0.0
        %2518 = vmatprep.subr.mxu0 0.0
        %2519 = vmatpush1.msra.mxu0 0.0
        %2520 = vmatprep.subr.mxu0 0.0
        %2521 = vmatpush1.msra.mxu0 0.0
        %2522 = vmatprep.subr.mxu0 0.0
        %2523 = vmatpush1.msra.mxu0 0.0
        %2524 = vmatprep.subr.mxu0 0.0
        %2525 = vmatpush1.msra.mxu0 0.0
        %2526 = vmatprep.subr.mxu0 0.0
        %2527 = vmatpush1.msra.mxu0 0.0
        %2528 = vmatprep.subr.mxu0 0.0
        %2529 = vmatpush1.msra.mxu0 0.0
        %2530 = vmatprep.subr.mxu0 0.0
        %2531 = vmatpush1.msra.mxu0 0.0
        %2532 = vmatprep.subr.mxu0 0.0
        %2533 = vmatpush1.msra.mxu0 0.0
        %2534 = vmatprep.subr.mxu0 0.0
        %2535 = vmatpush1.msra.mxu0 0.0
        %2536 = vmatprep.subr.mxu0 0.0
        %2537 = vmatpush1.msra.mxu0 0.0
        %2538 = vmatprep.subr.mxu0 0.0
        %2539 = vmatpush1.msra.mxu0 0.0
        %2540 = vmatprep.subr.mxu0 0.0
        %2541 = vmatpush1.msra.mxu0 0.0
        %2542 = vmatprep.subr.mxu0 0.0
        %2543 = vmatpush1.msra.mxu0 0.0
        %2544 = vmatprep.subr.mxu0 0.0
        %2545 = vmatpush1.msra.mxu0 0.0
        %2546 = vmatprep.subr.mxu0 0.0
        %2547 = vmatpush1.msra.mxu0 0.0
        %2548 = vmatprep.subr.mxu0 0.0
        %2549 = vmatpush1.msra.mxu0 0.0
        %2550 = vmatprep.mubr.f32.mxu0 0.0
        %2551 = vmatmul.mubr.f32.gmra.mrb[0].mxu0 %v2484
        %v2552 = vpop.f32.mrb[0].mxu0
        %v2553 = vadd.f32 0.0, %v2552
        %v2554 = vpop.f32.mrb[0].mxu0
        %2555 = vdwg.mxu0
        %v2556 = vadd.f32 %v2406, %v2479
        %2558 = vrot.lane.b32.xlu0 %v2556, 48
        %v2559 = vpop.permute.xlu0 %2558
        %vm2561 = vcmask 523648
        %2562 = vst.msk [vmem:[#allocation2] sm:$0xff] %vm2561, %v2559
        %v2563 = vsub.f32 %v2553, %v2406
        %v2564 = vadd.f32 %v2563, %v2479
        %2566 = vrot.lane.b32.xlu0 %v2564, 48
        %v2567 = vpop.permute.xlu0 %2566
        %2569 = vst.msk [vmem:[#allocation3] sm:$0xff] %vm2561, %v2567
        %v2570 = vld [vmem:[%s3] sm:$0xff]
        %v2571 = vld [vmem:[%s3 + $0x8] sm:$0xff]
        %v2572 = vld [vmem:[%s4] sm:$0xff]
        %v2573 = vld [vmem:[%s4 + $0x8] sm:$0xff]
        %v2574 = vld [vmem:[#allocation2] sm:$0xff]
        %v2575 = vld [vmem:[#allocation3] sm:$0xff]
        %v2577 = vsel %vm937, %v2572, 0
        %v2580 = vsel %vm937, %v2573, 0
        %2582 = vmatprep.subr.mxu0 0.0
        %2583 = vmatpush1.msra.mxu0 %v2575
        %2584 = vmatprep.subr.mxu0 0.0
        %2585 = vmatpush1.msra.mxu0 0.0
        %2586 = vmatprep.subr.mxu0 0.0
        %2587 = vmatpush1.msra.mxu0 0.0
        %2588 = vmatprep.subr.mxu0 0.0
        %2589 = vmatpush1.msra.mxu0 0.0
        %2590 = vmatprep.subr.mxu0 0.0
        %2591 = vmatpush1.msra.mxu0 0.0
        %2592 = vmatprep.subr.mxu0 0.0
        %2593 = vmatpush1.msra.mxu0 0.0
        %2594 = vmatprep.subr.mxu0 0.0
        %2595 = vmatpush1.msra.mxu0 0.0
        %2596 = vmatprep.subr.mxu0 0.0
        %2597 = vmatpush1.msra.mxu0 0.0
        %2598 = vmatprep.subr.mxu0 0.0
        %2599 = vmatpush1.msra.mxu0 0.0
        %2600 = vmatprep.subr.mxu0 0.0
        %2601 = vmatpush1.msra.mxu0 0.0
        %2602 = vmatprep.subr.mxu0 0.0
        %2603 = vmatpush1.msra.mxu0 0.0
        %2604 = vmatprep.subr.mxu0 0.0
        %2605 = vmatpush1.msra.mxu0 0.0
        %2606 = vmatprep.subr.mxu0 0.0
        %2607 = vmatpush1.msra.mxu0 0.0
        %2608 = vmatprep.subr.mxu0 0.0
        %2609 = vmatpush1.msra.mxu0 0.0
        %2610 = vmatprep.subr.mxu0 0.0
        %2611 = vmatpush1.msra.mxu0 0.0
        %2612 = vmatprep.subr.mxu0 0.0
        %2613 = vmatpush1.msra.mxu0 0.0
        %2614 = vmatprep.subr.mxu0 0.0
        %2615 = vmatpush1.msra.mxu0 0.0
        %2616 = vmatprep.subr.mxu0 0.0
        %2617 = vmatpush1.msra.mxu0 0.0
        %2618 = vmatprep.subr.mxu0 0.0
        %2619 = vmatpush1.msra.mxu0 0.0
        %2620 = vmatprep.subr.mxu0 0.0
        %2621 = vmatpush1.msra.mxu0 0.0
        %2622 = vmatprep.subr.mxu0 0.0
        %2623 = vmatpush1.msra.mxu0 0.0
        %2624 = vmatprep.subr.mxu0 0.0
        %2625 = vmatpush1.msra.mxu0 0.0
        %2626 = vmatprep.subr.mxu0 0.0
        %2627 = vmatpush1.msra.mxu0 0.0
        %2628 = vmatprep.subr.mxu0 0.0
        %2629 = vmatpush1.msra.mxu0 0.0
        %2630 = vmatprep.subr.mxu0 0.0
        %2631 = vmatpush1.msra.mxu0 0.0
        %2632 = vmatprep.subr.mxu0 0.0
        %2633 = vmatpush1.msra.mxu0 0.0
        %2634 = vmatprep.subr.mxu0 0.0
        %2635 = vmatpush1.msra.mxu0 0.0
        %2636 = vmatprep.subr.mxu0 0.0
        %2637 = vmatpush1.msra.mxu0 0.0
        %2638 = vmatprep.subr.mxu0 0.0
        %2639 = vmatpush1.msra.mxu0 0.0
        %2640 = vmatprep.subr.mxu0 0.0
        %2641 = vmatpush1.msra.mxu0 0.0
        %2642 = vmatprep.subr.mxu0 0.0
        %2643 = vmatpush1.msra.mxu0 0.0
        %2644 = vmatprep.subr.mxu0 0.0
        %2645 = vmatpush1.msra.mxu0 0.0
        %2646 = vmatprep.mubr.f32.mxu0 0.0
        %2647 = vmatmul.mubr.f32.gmra.mrb[0].mxu0 %v2577
        %v2648 = vpop.f32.mrb[0].mxu0
        %v2649 = vadd.f32 0.0, %v2648
        %v2650 = vpop.f32.mrb[0].mxu0
        %2651 = vmatprep.mubr.f32.mxu0 0.0
        %2652 = vmatmul.mubr.f32.gmra.mrb[0].mxu0 %v2580
        %v2653 = vpop.f32.mrb[0].mxu0
        %v2654 = vadd.f32 0.0, %v2653
        %v2655 = vpop.f32.mrb[0].mxu0
        %2656 = vdwg.mxu0
        %v2658 = vsel %vm937, %v2570, 0
        %v2661 = vsel %vm937, %v2571, 0
        %2663 = vmatprep.subr.mxu0 0.0
        %2664 = vmatpush1.msra.mxu0 %v2574
        %2665 = vmatprep.subr.mxu0 0.0
        %2666 = vmatpush1.msra.mxu0 0.0
        %2667 = vmatprep.subr.mxu0 0.0
        %2668 = vmatpush1.msra.mxu0 0.0
        %2669 = vmatprep.subr.mxu0 0.0
        %2670 = vmatpush1.msra.mxu0 0.0
        %2671 = vmatprep.subr.mxu0 0.0
        %2672 = vmatpush1.msra.mxu0 0.0
        %2673 = vmatprep.subr.mxu0 0.0
        %2674 = vmatpush1.msra.mxu0 0.0
        %2675 = vmatprep.subr.mxu0 0.0
        %2676 = vmatpush1.msra.mxu0 0.0
        %2677 = vmatprep.subr.mxu0 0.0
        %2678 = vmatpush1.msra.mxu0 0.0
        %2679 = vmatprep.subr.mxu0 0.0
        %2680 = vmatpush1.msra.mxu0 0.0
        %2681 = vmatprep.subr.mxu0 0.0
        %2682 = vmatpush1.msra.mxu0 0.0
        %2683 = vmatprep.subr.mxu0 0.0
        %2684 = vmatpush1.msra.mxu0 0.0
        %2685 = vmatprep.subr.mxu0 0.0
        %2686 = vmatpush1.msra.mxu0 0.0
        %2687 = vmatprep.subr.mxu0 0.0
        %2688 = vmatpush1.msra.mxu0 0.0
        %2689 = vmatprep.subr.mxu0 0.0
        %2690 = vmatpush1.msra.mxu0 0.0
        %2691 = vmatprep.subr.mxu0 0.0
        %2692 = vmatpush1.msra.mxu0 0.0
        %2693 = vmatprep.subr.mxu0 0.0
        %2694 = vmatpush1.msra.mxu0 0.0
        %2695 = vmatprep.subr.mxu0 0.0
        %2696 = vmatpush1.msra.mxu0 0.0
        %2697 = vmatprep.subr.mxu0 0.0
        %2698 = vmatpush1.msra.mxu0 0.0
        %2699 = vmatprep.subr.mxu0 0.0
        %2700 = vmatpush1.msra.mxu0 0.0
        %2701 = vmatprep.subr.mxu0 0.0
        %2702 = vmatpush1.msra.mxu0 0.0
        %2703 = vmatprep.subr.mxu0 0.0
        %2704 = vmatpush1.msra.mxu0 0.0
        %2705 = vmatprep.subr.mxu0 0.0
        %2706 = vmatpush1.msra.mxu0 0.0
        %2707 = vmatprep.subr.mxu0 0.0
        %2708 = vmatpush1.msra.mxu0 0.0
        %2709 = vmatprep.subr.mxu0 0.0
        %2710 = vmatpush1.msra.mxu0 0.0
        %2711 = vmatprep.subr.mxu0 0.0
        %2712 = vmatpush1.msra.mxu0 0.0
        %2713 = vmatprep.subr.mxu0 0.0
        %2714 = vmatpush1.msra.mxu0 0.0
        %2715 = vmatprep.subr.mxu0 0.0
        %2716 = vmatpush1.msra.mxu0 0.0
        %2717 = vmatprep.subr.mxu0 0.0
        %2718 = vmatpush1.msra.mxu0 0.0
        %2719 = vmatprep.subr.mxu0 0.0
        %2720 = vmatpush1.msra.mxu0 0.0
        %2721 = vmatprep.subr.mxu0 0.0
        %2722 = vmatpush1.msra.mxu0 0.0
        %2723 = vmatprep.subr.mxu0 0.0
        %2724 = vmatpush1.msra.mxu0 0.0
        %2725 = vmatprep.subr.mxu0 0.0
        %2726 = vmatpush1.msra.mxu0 0.0
        %2727 = vmatprep.mubr.f32.mxu0 0.0
        %2728 = vmatmul.mubr.f32.gmra.mrb[0].mxu0 %v2658
        %v2729 = vpop.f32.mrb[0].mxu0
        %v2730 = vadd.f32 %v2649, %v2729
        %v2731 = vpop.f32.mrb[0].mxu0
        %2732 = vmatprep.mubr.f32.mxu0 0.0
        %2733 = vmatmul.mubr.f32.gmra.mrb[0].mxu0 %v2661
        %v2734 = vpop.f32.mrb[0].mxu0
        %v2735 = vadd.f32 %v2654, %v2734
        %v2736 = vpop.f32.mrb[0].mxu0
        %2737 = vdwg.mxu0
        %v2738 = vmul.f32 %v2730, 0.00390625
        %v2739 = vmul.f32 %v2735, 0.00390625
        %vm2740 = vcmask 523264
        %2741 = vst.msk [vmem:[%s525] sm:$0xff] %vm2740, %v2738
        %2742 = vst.msk [vmem:[%s525 + $0x8] sm:$0xff] %vm2740, %v2739
        %s2743 = sand.u32 %s341, 1
        %s2744 = scalar_lea.sflag [#allocation6], %s2743
        %s2745 = sand.u32 %s341, 1
        %s2746 = smul.addr %s2745, 16
        %s2747 = scalar_lea.vmem [#allocation10], %s2746
        // Predicated region
        $region85: #{tpu_custom_call.1} parent=71 // pred_check
          %p2748 = pneg %p351
        $region86: #{tpu_custom_call.1} parent=71 // pred_check_branch
          %2750 = sbr.rel (%p2748) target = $region88
        $region87: #{tpu_custom_call.1} parent=71 // pred_region
          %s2752 = ssub.s32 256, 256
          %2753 = vsyncadd %s2744, %s2752
          %s2754 = smul.addr %s34, 2
          %s2755 = sadd.s32 %s33, %s2754
          %s2756 = smul.addr %s2755, 128
          %s2757 = scalar_lea.hbm %s13, %s2756
          %s2758 = sshll.u32 %s2747, 4
          %s2759 = int_to_ptr.vmem [resolvable:$true] %s2758
          %2764 = dma.vmem_to_hbm [thread:$0]  %s2759, 256, %s2757, %s2744, 128, 128, 8
        $region88: #{tpu_custom_call.1} parent=71 // pred_fallthru
          _
      $region72: #{tpu_custom_call.1} parent=5 // pred_fallthru
        _
      %p2765 = scmp.le.s32.totalorder 2, %s24
      // Predicated region
      $region89: #{tpu_custom_call.1} parent=5 // pred_check
        %p2766 = pneg %p2765
      $region90: #{tpu_custom_call.1} parent=5 // pred_check_branch
        %2768 = sbr.rel (%p2766) target = $region92
      $region91: #{tpu_custom_call.1} parent=5 // pred_region
        %s2769 = ssub.s32 %s24, 2
        // Predicated region
        $region93: #{tpu_custom_call.1} parent=91 // pred_check
          %p2770 = pneg %p357
        $region94: #{tpu_custom_call.1} parent=91 // pred_check_branch
          %2772 = sbr.rel (%p2770) target = $region96
        $region95: #{tpu_custom_call.1} parent=91 // pred_region
          %s2773 = sand.u32 %s342, 1
          %s2774 = scalar_lea.sflag [#allocation6], %s2773
          %s2775 = sand.u32 %s342, 1
          %s2776 = smul.addr %s2775, 16
          %s2777 = scalar_lea.vmem [#allocation10], %s2776
          %2778 = dma.done %s2774, 256
        $region96: #{tpu_custom_call.1} parent=91 // pred_fallthru
          _
      $region92: #{tpu_custom_call.1} parent=5 // pred_fallthru
        _
    $region6: #{tpu_custom_call.1} parent=1 // loop_footer
      %s28 = sadd.s32 1, %s24
    $region7: #{tpu_custom_call.1} parent=1 // loop_footer_branch
      %23 = sbr.rel target = $region3
    $region8: #{tpu_custom_call.1} parent=1 // loop_exit
      _
    %2779 = vsyncpa [#allocation5], 1
    %s2780 = scalar_lea.sflag [#allocation5], 1
    %2781 = vsyncpa %s2780, 1
    %2782 = vsyncpa [#allocation8], 1
    %2783 = vsyncpa [#allocation6], 1
    %s2784 = scalar_lea.sflag [#allocation6], 1
    %2785 = vsyncpa %s2784, 1

</llo_original>
